<compile_context>
chip_gen: v6e
topology: v6e:2x2x1
jax: 0.10.0
libtpu: 0.0.40
codegen_flags: <defaults>
</compile_context>

<pallas_src>
import functools

import jax
import jax.numpy as jnp
from jax.experimental import pallas as pl
from jax.experimental.pallas import tpu as pltpu


_TAPS = tuple((dh, dw) for dh in range(3) for dw in range(3))  # t = dh*3 + dw


def _primarycap_kernel(phases_ref, wdw_ref, bdw_ref, wpw_ref, bpw_ref, o_ref,
                       *, N, C, Ho, Wo, Dout, slope):
    """Whole-batch PrimaryCap_32 forward.

    phases_ref : VMEM (N*C*4, Ho+1, Wo+1)  stride-2 phase decomposition of the
                 zero-padded input: row (n*C+c)*4 + ph*2 + pw, element [i, j]
                 equals x_pad[n, c, 2*i + ph, 2*j + pw].
    wdw_ref    : SMEM (9*C,)    depthwise weight[(dh*3+dw)*C + c]
    bdw_ref    : SMEM (C,)      depthwise bias
    wpw_ref    : SMEM (Dout*C,) 1x1 conv weight[d*C + c]
    bpw_ref    : SMEM (Dout,)   1x1 conv bias
    o_ref      : VMEM (N*Dout, Ho, Wo)  row n*Dout+d == PyTorch out[n, d]
    """
    for n in range(N):                                # whole batch, one call
        acts = []
        for c in range(C):
            # --- depthwise 3x3 / stride 2: 9 scalar-broadcast MACs on the VPU.
            terms = []
            for t, (dh, dw) in enumerate(_TAPS):
                ph, rh = dh % 2, dh // 2
                pw, rw = dw % 2, dw // 2
                row = (n * C + c) * 4 + ph * 2 + pw
                tap = phases_ref[row, pl.ds(rh, Ho), pl.ds(rw, Wo)]  # (Ho, Wo)
                terms.append(tap * wdw_ref[t * C + c])
            # pairwise tree: break the 9-long serial accumulator chain
            while len(terms) > 1:
                nxt = [terms[i] + terms[i + 1]
                       for i in range(0, len(terms) - 1, 2)]
                if len(terms) % 2:
                    nxt.append(terms[-1])
                terms = nxt
            z = terms[0] + bdw_ref[c]
            acts.append(jnp.where(z >= 0, z, slope * z))  # LeakyReLU(0.01)

        # --- 1x1 conv: K = C is tiny -> C scalar-broadcast FMAs per output
        # channel on the VPU, written directly in (Dout, Ho, Wo) order.
        for d in range(Dout):
            y = acts[0] * wpw_ref[d * C]
            for c in range(1, C):
                y = y + acts[c] * wpw_ref[d * C + c]
            o_ref[n * Dout + d] = (y + bpw_ref[d]).astype(o_ref.dtype)


def primary_cap_32(x_nchw, w_dw, b_dw, w_pw, b_pw, *, n_channels, dim_capsule):
    """Forward pass of PrimaryCap_32.

    x_nchw : (N, C, H, W)     PyTorch NCHW input
    w_dw   : (C, 1, 3, 3)     depthwise conv weight (PyTorch layout)
    b_dw   : (C,)             depthwise conv bias
    w_pw   : (Dout, C, 1, 1)  1x1 conv weight, Dout = dim_capsule * n_channels
    b_pw   : (Dout,)          1x1 conv bias
    returns: (N, n_channels, dim_capsule, Ho, Wo)
    """
    N, C, H, W = x_nchw.shape
    Ho, Wo = (H + 1) // 2, (W + 1) // 2        # k=3, stride=2, pad=1
    Dout = n_channels * dim_capsule
    assert w_dw.shape == (C, 1, 3, 3)
    assert w_pw.shape[:2] == (Dout, C)

    # ---- glue (~1x input traffic, no 9x im2row): zero-pad (pad=1 plus
    # alignment rows/cols that are never read) and split the padded image into
    # its 4 stride-2 phases. phases[(n*C+c)*4 + ph*2 + pw, i, j] ==
    # x_pad[n, c, 2*i + ph, 2*j + pw]. ----
    Hp2, Wp2 = 2 * (Ho + 1), 2 * (Wo + 1)
    x_pad = jnp.pad(x_nchw, ((0, 0), (0, 0), (1, Hp2 - H - 1), (1, Wp2 - W - 1)))
    phases = (x_pad.reshape(N, C, Ho + 1, 2, Wo + 1, 2)
              .transpose(0, 1, 3, 5, 2, 4)
              .reshape(N * C * 4, Ho + 1, Wo + 1))

    # ---- weights -> flat SMEM scalar tables ----
    wdw = jnp.transpose(w_dw[:, 0, :, :], (1, 2, 0)).reshape(9 * C)  # [(dh*3+dw)*C + c]
    wpw = w_pw[:, :, 0, 0].reshape(Dout * C)                         # [d*C + c]
    bdw = b_dw.reshape(C)
    bpw = b_pw.reshape(Dout)

    kern = functools.partial(_primarycap_kernel, N=N, C=C, Ho=Ho, Wo=Wo,
                             Dout=Dout, slope=0.01)
    smem = pl.BlockSpec(memory_space=pltpu.MemorySpace.SMEM)
    vmem = pl.BlockSpec(memory_space=pltpu.MemorySpace.VMEM)
    out = pl.pallas_call(
        kern,
        out_shape=jax.ShapeDtypeStruct((N * Dout, Ho, Wo), x_nchw.dtype),
        in_specs=[vmem, smem, smem, smem, smem],
        out_specs=vmem,
        # explicit VMEM budget (v7x has 64 MiB physical / 32 MiB scoped default)
        compiler_params=pltpu.CompilerParams(vmem_limit_bytes=32 * 1024 * 1024),
    )(phases, wdw, bdw, wpw, bpw)

    # (N*Dout, Ho, Wo) is already the PyTorch conv output layout; the capsule
    # view is a free reshape (no transpose / extra HBM pass).
    return out.reshape(N, n_channels, dim_capsule, Ho, Wo)


def _reference(x, w_dw, b_dw, w_pw, b_pw, n_channels, dim_capsule):
    """Pure-JAX (XLA conv) reference mirroring the PyTorch module."""
    N, C, H, W = x.shape
    y = jax.lax.conv_general_dilated(
        x, w_dw, window_strides=(2, 2), padding=((1, 1), (1, 1)),
        dimension_numbers=("NCHW", "OIHW", "NCHW"), feature_group_count=C)
    y = y + b_dw[None, :, None, None]
    y = jnp.where(y >= 0, y, 0.01 * y)
    z = jax.lax.conv_general_dilated(
        y, w_pw, window_strides=(1, 1), padding="VALID",
        dimension_numbers=("NCHW", "OIHW", "NCHW"))
    z = z + b_pw[None, :, None, None]
    Ho, Wo = z.shape[-2], z.shape[-1]
    return z.reshape(N, n_channels, dim_capsule, Ho, Wo)


if __name__ == "__main__":
    N, C, H, W = 2, 4, 16, 16
    n_channels, dim_capsule = 4, 8
    Dout = n_channels * dim_capsule

    key = jax.random.PRNGKey(0)
    k1, k2, k3, k4, k5 = jax.random.split(key, 5)
    x = jax.random.normal(k1, (N, C, H, W), jnp.float32)
    # deterministic synthetic parameters (shapes match nn.Conv2d in __init__)
    w_dw = jax.random.normal(k2, (C, 1, 3, 3), jnp.float32) * 0.3
    b_dw = jax.random.normal(k3, (C,), jnp.float32) * 0.1
    w_pw = jax.random.normal(k4, (Dout, C, 1, 1), jnp.float32) * 0.3
    b_pw = jax.random.normal(k5, (Dout,), jnp.float32) * 0.1

    out = primary_cap_32(x, w_dw, b_dw, w_pw, b_pw,
                         n_channels=n_channels, dim_capsule=dim_capsule)
    out = jax.block_until_ready(out)

    ref = _reference(x, w_dw, b_dw, w_pw, b_pw, n_channels, dim_capsule)
    assert out.shape == (N, n_channels, dim_capsule, H // 2, W // 2), out.shape
    assert jnp.allclose(out, ref, atol=1e-4, rtol=1e-4), "mismatch vs reference"

    print("KERNEL_OK")
</pallas_src>

<mosaic_0001>
module attributes {stable_mosaic.version = 11 : i64} {
  func.func @_primarycap_kernel(%arg0: memref<32x9x9xf32, #tpu.memory_space<vmem>>, %arg1: memref<36xf32, #tpu.memory_space<smem>>, %arg2: memref<4xf32, #tpu.memory_space<smem>>, %arg3: memref<128xf32, #tpu.memory_space<smem>>, %arg4: memref<32xf32, #tpu.memory_space<smem>>, %arg5: memref<64x8x8xf32, #tpu.memory_space<vmem>>) attributes {dimension_semantics = [], scalar_prefetch = 0 : i64, scratch_operands = 0 : i64, tpu.core_type = #tpu.core_type<tc>} {
    %c0 = arith.constant 0 : index
    %c0_0 = arith.constant 0 : index
    %c0_1 = arith.constant 0 : index
    %0 = vector.load %arg0[%c0, %c0_0, %c0_1] : memref<32x9x9xf32, #tpu.memory_space<vmem>>, vector<1x8x8xf32>
    %1 = vector.shape_cast %0 : vector<1x8x8xf32> to vector<8x8xf32>
    %c0_2 = arith.constant 0 : index
    %2 = memref.load %arg1[%c0_2] : memref<36xf32, #tpu.memory_space<smem>>
    %3 = vector.broadcast %2 : f32 to vector<8x8xf32>
    %4 = arith.mulf %1, %3 : vector<8x8xf32>
    %c1 = arith.constant 1 : index
    %c0_3 = arith.constant 0 : index
    %c0_4 = arith.constant 0 : index
    %5 = vector.load %arg0[%c1, %c0_3, %c0_4] : memref<32x9x9xf32, #tpu.memory_space<vmem>>, vector<1x8x8xf32>
    %6 = vector.shape_cast %5 : vector<1x8x8xf32> to vector<8x8xf32>
    %c4 = arith.constant 4 : index
    %7 = memref.load %arg1[%c4] : memref<36xf32, #tpu.memory_space<smem>>
    %8 = vector.broadcast %7 : f32 to vector<8x8xf32>
    %9 = arith.mulf %6, %8 : vector<8x8xf32>
    %c0_5 = arith.constant 0 : index
    %c0_6 = arith.constant 0 : index
    %c1_7 = arith.constant 1 : index
    %10 = vector.load %arg0[%c0_5, %c0_6, %c1_7] : memref<32x9x9xf32, #tpu.memory_space<vmem>>, vector<1x8x8xf32>
    %11 = vector.shape_cast %10 : vector<1x8x8xf32> to vector<8x8xf32>
    %c8 = arith.constant 8 : index
    %12 = memref.load %arg1[%c8] : memref<36xf32, #tpu.memory_space<smem>>
    %13 = vector.broadcast %12 : f32 to vector<8x8xf32>
    %14 = arith.mulf %11, %13 : vector<8x8xf32>
    %c2 = arith.constant 2 : index
    %c0_8 = arith.constant 0 : index
    %c0_9 = arith.constant 0 : index
    %15 = vector.load %arg0[%c2, %c0_8, %c0_9] : memref<32x9x9xf32, #tpu.memory_space<vmem>>, vector<1x8x8xf32>
    %16 = vector.shape_cast %15 : vector<1x8x8xf32> to vector<8x8xf32>
    %c12 = arith.constant 12 : index
    %17 = memref.load %arg1[%c12] : memref<36xf32, #tpu.memory_space<smem>>
    %18 = vector.broadcast %17 : f32 to vector<8x8xf32>
    %19 = arith.mulf %16, %18 : vector<8x8xf32>
    %c3 = arith.constant 3 : index
    %c0_10 = arith.constant 0 : index
    %c0_11 = arith.constant 0 : index
    %20 = vector.load %arg0[%c3, %c0_10, %c0_11] : memref<32x9x9xf32, #tpu.memory_space<vmem>>, vector<1x8x8xf32>
    %21 = vector.shape_cast %20 : vector<1x8x8xf32> to vector<8x8xf32>
    %c16 = arith.constant 16 : index
    %22 = memref.load %arg1[%c16] : memref<36xf32, #tpu.memory_space<smem>>
    %23 = vector.broadcast %22 : f32 to vector<8x8xf32>
    %24 = arith.mulf %21, %23 : vector<8x8xf32>
    %c2_12 = arith.constant 2 : index
    %c0_13 = arith.constant 0 : index
    %c1_14 = arith.constant 1 : index
    %25 = vector.load %arg0[%c2_12, %c0_13, %c1_14] : memref<32x9x9xf32, #tpu.memory_space<vmem>>, vector<1x8x8xf32>
    %26 = vector.shape_cast %25 : vector<1x8x8xf32> to vector<8x8xf32>
    %c20 = arith.constant 20 : index
    %27 = memref.load %arg1[%c20] : memref<36xf32, #tpu.memory_space<smem>>
    %28 = vector.broadcast %27 : f32 to vector<8x8xf32>
    %29 = arith.mulf %26, %28 : vector<8x8xf32>
    %c0_15 = arith.constant 0 : index
    %c1_16 = arith.constant 1 : index
    %c0_17 = arith.constant 0 : index
    %30 = vector.load %arg0[%c0_15, %c1_16, %c0_17] : memref<32x9x9xf32, #tpu.memory_space<vmem>>, vector<1x8x8xf32>
    %31 = vector.shape_cast %30 : vector<1x8x8xf32> to vector<8x8xf32>
    %c24 = arith.constant 24 : index
    %32 = memref.load %arg1[%c24] : memref<36xf32, #tpu.memory_space<smem>>
    %33 = vector.broadcast %32 : f32 to vector<8x8xf32>
    %34 = arith.mulf %31, %33 : vector<8x8xf32>
    %c1_18 = arith.constant 1 : index
    %c1_19 = arith.constant 1 : index
    %c0_20 = arith.constant 0 : index
    %35 = vector.load %arg0[%c1_18, %c1_19, %c0_20] : memref<32x9x9xf32, #tpu.memory_space<vmem>>, vector<1x8x8xf32>
    %36 = vector.shape_cast %35 : vector<1x8x8xf32> to vector<8x8xf32>
    %c28 = arith.constant 28 : index
    %37 = memref.load %arg1[%c28] : memref<36xf32, #tpu.memory_space<smem>>
    %38 = vector.broadcast %37 : f32 to vector<8x8xf32>
    %39 = arith.mulf %36, %38 : vector<8x8xf32>
    %c0_21 = arith.constant 0 : index
    %c1_22 = arith.constant 1 : index
    %c1_23 = arith.constant 1 : index
    %40 = vector.load %arg0[%c0_21, %c1_22, %c1_23] : memref<32x9x9xf32, #tpu.memory_space<vmem>>, vector<1x8x8xf32>
    %41 = vector.shape_cast %40 : vector<1x8x8xf32> to vector<8x8xf32>
    %c32 = arith.constant 32 : index
    %42 = memref.load %arg1[%c32] : memref<36xf32, #tpu.memory_space<smem>>
    %43 = vector.broadcast %42 : f32 to vector<8x8xf32>
    %44 = arith.mulf %41, %43 : vector<8x8xf32>
    %45 = arith.addf %4, %9 : vector<8x8xf32>
    %46 = arith.addf %14, %19 : vector<8x8xf32>
    %47 = arith.addf %24, %29 : vector<8x8xf32>
    %48 = arith.addf %34, %39 : vector<8x8xf32>
    %49 = arith.addf %45, %46 : vector<8x8xf32>
    %50 = arith.addf %47, %48 : vector<8x8xf32>
    %51 = arith.addf %49, %50 : vector<8x8xf32>
    %52 = arith.addf %51, %44 : vector<8x8xf32>
    %c0_24 = arith.constant 0 : index
    %53 = memref.load %arg2[%c0_24] : memref<4xf32, #tpu.memory_space<smem>>
    %54 = vector.broadcast %53 : f32 to vector<8x8xf32>
    %55 = arith.addf %52, %54 : vector<8x8xf32>
    %cst = arith.constant 0.000000e+00 : f32
    %56 = vector.broadcast %cst : f32 to vector<8x8xf32>
    %57 = arith.cmpf oge, %55, %56 : vector<8x8xf32>
    %cst_25 = arith.constant 0.00999999977 : f32
    %58 = vector.broadcast %cst_25 : f32 to vector<8x8xf32>
    %59 = arith.mulf %58, %55 : vector<8x8xf32>
    %60 = arith.select %57, %55, %59 : vector<8x8xi1>, vector<8x8xf32>
    %c4_26 = arith.constant 4 : index
    %c0_27 = arith.constant 0 : index
    %c0_28 = arith.constant 0 : index
    %61 = vector.load %arg0[%c4_26, %c0_27, %c0_28] : memref<32x9x9xf32, #tpu.memory_space<vmem>>, vector<1x8x8xf32>
    %62 = vector.shape_cast %61 : vector<1x8x8xf32> to vector<8x8xf32>
    %c1_29 = arith.constant 1 : index
    %63 = memref.load %arg1[%c1_29] : memref<36xf32, #tpu.memory_space<smem>>
    %64 = vector.broadcast %63 : f32 to vector<8x8xf32>
    %65 = arith.mulf %62, %64 : vector<8x8xf32>
    %c5 = arith.constant 5 : index
    %c0_30 = arith.constant 0 : index
    %c0_31 = arith.constant 0 : index
    %66 = vector.load %arg0[%c5, %c0_30, %c0_31] : memref<32x9x9xf32, #tpu.memory_space<vmem>>, vector<1x8x8xf32>
    %67 = vector.shape_cast %66 : vector<1x8x8xf32> to vector<8x8xf32>
    %c5_32 = arith.constant 5 : index
    %68 = memref.load %arg1[%c5_32] : memref<36xf32, #tpu.memory_space<smem>>
    %69 = vector.broadcast %68 : f32 to vector<8x8xf32>
    %70 = arith.mulf %67, %69 : vector<8x8xf32>
    %c4_33 = arith.constant 4 : index
    %c0_34 = arith.constant 0 : index
    %c1_35 = arith.constant 1 : index
    %71 = vector.load %arg0[%c4_33, %c0_34, %c1_35] : memref<32x9x9xf32, #tpu.memory_space<vmem>>, vector<1x8x8xf32>
    %72 = vector.shape_cast %71 : vector<1x8x8xf32> to vector<8x8xf32>
    %c9 = arith.constant 9 : index
    %73 = memref.load %arg1[%c9] : memref<36xf32, #tpu.memory_space<smem>>
    %74 = vector.broadcast %73 : f32 to vector<8x8xf32>
    %75 = arith.mulf %72, %74 : vector<8x8xf32>
    %c6 = arith.constant 6 : index
    %c0_36 = arith.constant 0 : index
    %c0_37 = arith.constant 0 : index
    %76 = vector.load %arg0[%c6, %c0_36, %c0_37] : memref<32x9x9xf32, #tpu.memory_space<vmem>>, vector<1x8x8xf32>
    %77 = vector.shape_cast %76 : vector<1x8x8xf32> to vector<8x8xf32>
    %c13 = arith.constant 13 : index
    %78 = memref.load %arg1[%c13] : memref<36xf32, #tpu.memory_space<smem>>
    %79 = vector.broadcast %78 : f32 to vector<8x8xf32>
    %80 = arith.mulf %77, %79 : vector<8x8xf32>
    %c7 = arith.constant 7 : index
    %c0_38 = arith.constant 0 : index
    %c0_39 = arith.constant 0 : index
    %81 = vector.load %arg0[%c7, %c0_38, %c0_39] : memref<32x9x9xf32, #tpu.memory_space<vmem>>, vector<1x8x8xf32>
    %82 = vector.shape_cast %81 : vector<1x8x8xf32> to vector<8x8xf32>
    %c17 = arith.constant 17 : index
    %83 = memref.load %arg1[%c17] : memref<36xf32, #tpu.memory_space<smem>>
    %84 = vector.broadcast %83 : f32 to vector<8x8xf32>
    %85 = arith.mulf %82, %84 : vector<8x8xf32>
    %c6_40 = arith.constant 6 : index
    %c0_41 = arith.constant 0 : index
    %c1_42 = arith.constant 1 : index
    %86 = vector.load %arg0[%c6_40, %c0_41, %c1_42] : memref<32x9x9xf32, #tpu.memory_space<vmem>>, vector<1x8x8xf32>
    %87 = vector.shape_cast %86 : vector<1x8x8xf32> to vector<8x8xf32>
    %c21 = arith.constant 21 : index
    %88 = memref.load %arg1[%c21] : memref<36xf32, #tpu.memory_space<smem>>
    %89 = vector.broadcast %88 : f32 to vector<8x8xf32>
    %90 = arith.mulf %87, %89 : vector<8x8xf32>
    %c4_43 = arith.constant 4 : index
    %c1_44 = arith.constant 1 : index
    %c0_45 = arith.constant 0 : index
    %91 = vector.load %arg0[%c4_43, %c1_44, %c0_45] : memref<32x9x9xf32, #tpu.memory_space<vmem>>, vector<1x8x8xf32>
    %92 = vector.shape_cast %91 : vector<1x8x8xf32> to vector<8x8xf32>
    %c25 = arith.constant 25 : index
    %93 = memref.load %arg1[%c25] : memref<36xf32, #tpu.memory_space<smem>>
    %94 = vector.broadcast %93 : f32 to vector<8x8xf32>
    %95 = arith.mulf %92, %94 : vector<8x8xf32>
    %c5_46 = arith.constant 5 : index
    %c1_47 = arith.constant 1 : index
    %c0_48 = arith.constant 0 : index
    %96 = vector.load %arg0[%c5_46, %c1_47, %c0_48] : memref<32x9x9xf32, #tpu.memory_space<vmem>>, vector<1x8x8xf32>
    %97 = vector.shape_cast %96 : vector<1x8x8xf32> to vector<8x8xf32>
    %c29 = arith.constant 29 : index
    %98 = memref.load %arg1[%c29] : memref<36xf32, #tpu.memory_space<smem>>
    %99 = vector.broadcast %98 : f32 to vector<8x8xf32>
    %100 = arith.mulf %97, %99 : vector<8x8xf32>
    %c4_49 = arith.constant 4 : index
    %c1_50 = arith.constant 1 : index
    %c1_51 = arith.constant 1 : index
    %101 = vector.load %arg0[%c4_49, %c1_50, %c1_51] : memref<32x9x9xf32, #tpu.memory_space<vmem>>, vector<1x8x8xf32>
    %102 = vector.shape_cast %101 : vector<1x8x8xf32> to vector<8x8xf32>
    %c33 = arith.constant 33 : index
    %103 = memref.load %arg1[%c33] : memref<36xf32, #tpu.memory_space<smem>>
    %104 = vector.broadcast %103 : f32 to vector<8x8xf32>
    %105 = arith.mulf %102, %104 : vector<8x8xf32>
    %106 = arith.addf %65, %70 : vector<8x8xf32>
    %107 = arith.addf %75, %80 : vector<8x8xf32>
    %108 = arith.addf %85, %90 : vector<8x8xf32>
    %109 = arith.addf %95, %100 : vector<8x8xf32>
    %110 = arith.addf %106, %107 : vector<8x8xf32>
    %111 = arith.addf %108, %109 : vector<8x8xf32>
    %112 = arith.addf %110, %111 : vector<8x8xf32>
    %113 = arith.addf %112, %105 : vector<8x8xf32>
    %c1_52 = arith.constant 1 : index
    %114 = memref.load %arg2[%c1_52] : memref<4xf32, #tpu.memory_space<smem>>
    %115 = vector.broadcast %114 : f32 to vector<8x8xf32>
    %116 = arith.addf %113, %115 : vector<8x8xf32>
    %cst_53 = arith.constant 0.000000e+00 : f32
    %117 = vector.broadcast %cst_53 : f32 to vector<8x8xf32>
    %118 = arith.cmpf oge, %116, %117 : vector<8x8xf32>
    %cst_54 = arith.constant 0.00999999977 : f32
    %119 = vector.broadcast %cst_54 : f32 to vector<8x8xf32>
    %120 = arith.mulf %119, %116 : vector<8x8xf32>
    %121 = arith.select %118, %116, %120 : vector<8x8xi1>, vector<8x8xf32>
    %c8_55 = arith.constant 8 : index
    %c0_56 = arith.constant 0 : index
    %c0_57 = arith.constant 0 : index
    %122 = vector.load %arg0[%c8_55, %c0_56, %c0_57] : memref<32x9x9xf32, #tpu.memory_space<vmem>>, vector<1x8x8xf32>
    %123 = vector.shape_cast %122 : vector<1x8x8xf32> to vector<8x8xf32>
    %c2_58 = arith.constant 2 : index
    %124 = memref.load %arg1[%c2_58] : memref<36xf32, #tpu.memory_space<smem>>
    %125 = vector.broadcast %124 : f32 to vector<8x8xf32>
    %126 = arith.mulf %123, %125 : vector<8x8xf32>
    %c9_59 = arith.constant 9 : index
    %c0_60 = arith.constant 0 : index
    %c0_61 = arith.constant 0 : index
    %127 = vector.load %arg0[%c9_59, %c0_60, %c0_61] : memref<32x9x9xf32, #tpu.memory_space<vmem>>, vector<1x8x8xf32>
    %128 = vector.shape_cast %127 : vector<1x8x8xf32> to vector<8x8xf32>
    %c6_62 = arith.constant 6 : index
    %129 = memref.load %arg1[%c6_62] : memref<36xf32, #tpu.memory_space<smem>>
    %130 = vector.broadcast %129 : f32 to vector<8x8xf32>
    %131 = arith.mulf %128, %130 : vector<8x8xf32>
    %c8_63 = arith.constant 8 : index
    %c0_64 = arith.constant 0 : index
    %c1_65 = arith.constant 1 : index
    %132 = vector.load %arg0[%c8_63, %c0_64, %c1_65] : memref<32x9x9xf32, #tpu.memory_space<vmem>>, vector<1x8x8xf32>
    %133 = vector.shape_cast %132 : vector<1x8x8xf32> to vector<8x8xf32>
    %c10 = arith.constant 10 : index
    %134 = memref.load %arg1[%c10] : memref<36xf32, #tpu.memory_space<smem>>
    %135 = vector.broadcast %134 : f32 to vector<8x8xf32>
    %136 = arith.mulf %133, %135 : vector<8x8xf32>
    %c10_66 = arith.constant 10 : index
    %c0_67 = arith.constant 0 : index
    %c0_68 = arith.constant 0 : index
    %137 = vector.load %arg0[%c10_66, %c0_67, %c0_68] : memref<32x9x9xf32, #tpu.memory_space<vmem>>, vector<1x8x8xf32>
    %138 = vector.shape_cast %137 : vector<1x8x8xf32> to vector<8x8xf32>
    %c14 = arith.constant 14 : index
    %139 = memref.load %arg1[%c14] : memref<36xf32, #tpu.memory_space<smem>>
    %140 = vector.broadcast %139 : f32 to vector<8x8xf32>
    %141 = arith.mulf %138, %140 : vector<8x8xf32>
    %c11 = arith.constant 11 : index
    %c0_69 = arith.constant 0 : index
    %c0_70 = arith.constant 0 : index
    %142 = vector.load %arg0[%c11, %c0_69, %c0_70] : memref<32x9x9xf32, #tpu.memory_space<vmem>>, vector<1x8x8xf32>
    %143 = vector.shape_cast %142 : vector<1x8x8xf32> to vector<8x8xf32>
    %c18 = arith.constant 18 : index
    %144 = memref.load %arg1[%c18] : memref<36xf32, #tpu.memory_space<smem>>
    %145 = vector.broadcast %144 : f32 to vector<8x8xf32>
    %146 = arith.mulf %143, %145 : vector<8x8xf32>
    %c10_71 = arith.constant 10 : index
    %c0_72 = arith.constant 0 : index
    %c1_73 = arith.constant 1 : index
    %147 = vector.load %arg0[%c10_71, %c0_72, %c1_73] : memref<32x9x9xf32, #tpu.memory_space<vmem>>, vector<1x8x8xf32>
    %148 = vector.shape_cast %147 : vector<1x8x8xf32> to vector<8x8xf32>
    %c22 = arith.constant 22 : index
    %149 = memref.load %arg1[%c22] : memref<36xf32, #tpu.memory_space<smem>>
    %150 = vector.broadcast %149 : f32 to vector<8x8xf32>
    %151 = arith.mulf %148, %150 : vector<8x8xf32>
    %c8_74 = arith.constant 8 : index
    %c1_75 = arith.constant 1 : index
    %c0_76 = arith.constant 0 : index
    %152 = vector.load %arg0[%c8_74, %c1_75, %c0_76] : memref<32x9x9xf32, #tpu.memory_space<vmem>>, vector<1x8x8xf32>
    %153 = vector.shape_cast %152 : vector<1x8x8xf32> to vector<8x8xf32>
    %c26 = arith.constant 26 : index
    %154 = memref.load %arg1[%c26] : memref<36xf32, #tpu.memory_space<smem>>
    %155 = vector.broadcast %154 : f32 to vector<8x8xf32>
    %156 = arith.mulf %153, %155 : vector<8x8xf32>
    %c9_77 = arith.constant 9 : index
    %c1_78 = arith.constant 1 : index
    %c0_79 = arith.constant 0 : index
    %157 = vector.load %arg0[%c9_77, %c1_78, %c0_79] : memref<32x9x9xf32, #tpu.memory_space<vmem>>, vector<1x8x8xf32>
    %158 = vector.shape_cast %157 : vector<1x8x8xf32> to vector<8x8xf32>
    %c30 = arith.constant 30 : index
    %159 = memref.load %arg1[%c30] : memref<36xf32, #tpu.memory_space<smem>>
    %160 = vector.broadcast %159 : f32 to vector<8x8xf32>
    %161 = arith.mulf %158, %160 : vector<8x8xf32>
    %c8_80 = arith.constant 8 : index
    %c1_81 = arith.constant 1 : index
    %c1_82 = arith.constant 1 : index
    %162 = vector.load %arg0[%c8_80, %c1_81, %c1_82] : memref<32x9x9xf32, #tpu.memory_space<vmem>>, vector<1x8x8xf32>
    %163 = vector.shape_cast %162 : vector<1x8x8xf32> to vector<8x8xf32>
    %c34 = arith.constant 34 : index
    %164 = memref.load %arg1[%c34] : memref<36xf32, #tpu.memory_space<smem>>
    %165 = vector.broadcast %164 : f32 to vector<8x8xf32>
    %166 = arith.mulf %163, %165 : vector<8x8xf32>
    %167 = arith.addf %126, %131 : vector<8x8xf32>
    %168 = arith.addf %136, %141 : vector<8x8xf32>
    %169 = arith.addf %146, %151 : vector<8x8xf32>
    %170 = arith.addf %156, %161 : vector<8x8xf32>
    %171 = arith.addf %167, %168 : vector<8x8xf32>
    %172 = arith.addf %169, %170 : vector<8x8xf32>
    %173 = arith.addf %171, %172 : vector<8x8xf32>
    %174 = arith.addf %173, %166 : vector<8x8xf32>
    %c2_83 = arith.constant 2 : index
    %175 = memref.load %arg2[%c2_83] : memref<4xf32, #tpu.memory_space<smem>>
    %176 = vector.broadcast %175 : f32 to vector<8x8xf32>
    %177 = arith.addf %174, %176 : vector<8x8xf32>
    %cst_84 = arith.constant 0.000000e+00 : f32
    %178 = vector.broadcast %cst_84 : f32 to vector<8x8xf32>
    %179 = arith.cmpf oge, %177, %178 : vector<8x8xf32>
    %cst_85 = arith.constant 0.00999999977 : f32
    %180 = vector.broadcast %cst_85 : f32 to vector<8x8xf32>
    %181 = arith.mulf %180, %177 : vector<8x8xf32>
    %182 = arith.select %179, %177, %181 : vector<8x8xi1>, vector<8x8xf32>
    %c12_86 = arith.constant 12 : index
    %c0_87 = arith.constant 0 : index
    %c0_88 = arith.constant 0 : index
    %183 = vector.load %arg0[%c12_86, %c0_87, %c0_88] : memref<32x9x9xf32, #tpu.memory_space<vmem>>, vector<1x8x8xf32>
    %184 = vector.shape_cast %183 : vector<1x8x8xf32> to vector<8x8xf32>
    %c3_89 = arith.constant 3 : index
    %185 = memref.load %arg1[%c3_89] : memref<36xf32, #tpu.memory_space<smem>>
    %186 = vector.broadcast %185 : f32 to vector<8x8xf32>
    %187 = arith.mulf %184, %186 : vector<8x8xf32>
    %c13_90 = arith.constant 13 : index
    %c0_91 = arith.constant 0 : index
    %c0_92 = arith.constant 0 : index
    %188 = vector.load %arg0[%c13_90, %c0_91, %c0_92] : memref<32x9x9xf32, #tpu.memory_space<vmem>>, vector<1x8x8xf32>
    %189 = vector.shape_cast %188 : vector<1x8x8xf32> to vector<8x8xf32>
    %c7_93 = arith.constant 7 : index
    %190 = memref.load %arg1[%c7_93] : memref<36xf32, #tpu.memory_space<smem>>
    %191 = vector.broadcast %190 : f32 to vector<8x8xf32>
    %192 = arith.mulf %189, %191 : vector<8x8xf32>
    %c12_94 = arith.constant 12 : index
    %c0_95 = arith.constant 0 : index
    %c1_96 = arith.constant 1 : index
    %193 = vector.load %arg0[%c12_94, %c0_95, %c1_96] : memref<32x9x9xf32, #tpu.memory_space<vmem>>, vector<1x8x8xf32>
    %194 = vector.shape_cast %193 : vector<1x8x8xf32> to vector<8x8xf32>
    %c11_97 = arith.constant 11 : index
    %195 = memref.load %arg1[%c11_97] : memref<36xf32, #tpu.memory_space<smem>>
    %196 = vector.broadcast %195 : f32 to vector<8x8xf32>
    %197 = arith.mulf %194, %196 : vector<8x8xf32>
    %c14_98 = arith.constant 14 : index
    %c0_99 = arith.constant 0 : index
    %c0_100 = arith.constant 0 : index
    %198 = vector.load %arg0[%c14_98, %c0_99, %c0_100] : memref<32x9x9xf32, #tpu.memory_space<vmem>>, vector<1x8x8xf32>
    %199 = vector.shape_cast %198 : vector<1x8x8xf32> to vector<8x8xf32>
    %c15 = arith.constant 15 : index
    %200 = memref.load %arg1[%c15] : memref<36xf32, #tpu.memory_space<smem>>
    %201 = vector.broadcast %200 : f32 to vector<8x8xf32>
    %202 = arith.mulf %199, %201 : vector<8x8xf32>
    %c15_101 = arith.constant 15 : index
    %c0_102 = arith.constant 0 : index
    %c0_103 = arith.constant 0 : index
    %203 = vector.load %arg0[%c15_101, %c0_102, %c0_103] : memref<32x9x9xf32, #tpu.memory_space<vmem>>, vector<1x8x8xf32>
    %204 = vector.shape_cast %203 : vector<1x8x8xf32> to vector<8x8xf32>
    %c19 = arith.constant 19 : index
    %205 = memref.load %arg1[%c19] : memref<36xf32, #tpu.memory_space<smem>>
    %206 = vector.broadcast %205 : f32 to vector<8x8xf32>
    %207 = arith.mulf %204, %206 : vector<8x8xf32>
    %c14_104 = arith.constant 14 : index
    %c0_105 = arith.constant 0 : index
    %c1_106 = arith.constant 1 : index
    %208 = vector.load %arg0[%c14_104, %c0_105, %c1_106] : memref<32x9x9xf32, #tpu.memory_space<vmem>>, vector<1x8x8xf32>
    %209 = vector.shape_cast %208 : vector<1x8x8xf32> to vector<8x8xf32>
    %c23 = arith.constant 23 : index
    %210 = memref.load %arg1[%c23] : memref<36xf32, #tpu.memory_space<smem>>
    %211 = vector.broadcast %210 : f32 to vector<8x8xf32>
    %212 = arith.mulf %209, %211 : vector<8x8xf32>
    %c12_107 = arith.constant 12 : index
    %c1_108 = arith.constant 1 : index
    %c0_109 = arith.constant 0 : index
    %213 = vector.load %arg0[%c12_107, %c1_108, %c0_109] : memref<32x9x9xf32, #tpu.memory_space<vmem>>, vector<1x8x8xf32>
    %214 = vector.shape_cast %213 : vector<1x8x8xf32> to vector<8x8xf32>
    %c27 = arith.constant 27 : index
    %215 = memref.load %arg1[%c27] : memref<36xf32, #tpu.memory_space<smem>>
    %216 = vector.broadcast %215 : f32 to vector<8x8xf32>
    %217 = arith.mulf %214, %216 : vector<8x8xf32>
    %c13_110 = arith.constant 13 : index
    %c1_111 = arith.constant 1 : index
    %c0_112 = arith.constant 0 : index
    %218 = vector.load %arg0[%c13_110, %c1_111, %c0_112] : memref<32x9x9xf32, #tpu.memory_space<vmem>>, vector<1x8x8xf32>
    %219 = vector.shape_cast %218 : vector<1x8x8xf32> to vector<8x8xf32>
    %c31 = arith.constant 31 : index
    %220 = memref.load %arg1[%c31] : memref<36xf32, #tpu.memory_space<smem>>
    %221 = vector.broadcast %220 : f32 to vector<8x8xf32>
    %222 = arith.mulf %219, %221 : vector<8x8xf32>
    %c12_113 = arith.constant 12 : index
    %c1_114 = arith.constant 1 : index
    %c1_115 = arith.constant 1 : index
    %223 = vector.load %arg0[%c12_113, %c1_114, %c1_115] : memref<32x9x9xf32, #tpu.memory_space<vmem>>, vector<1x8x8xf32>
    %224 = vector.shape_cast %223 : vector<1x8x8xf32> to vector<8x8xf32>
    %c35 = arith.constant 35 : index
    %225 = memref.load %arg1[%c35] : memref<36xf32, #tpu.memory_space<smem>>
    %226 = vector.broadcast %225 : f32 to vector<8x8xf32>
    %227 = arith.mulf %224, %226 : vector<8x8xf32>
    %228 = arith.addf %187, %192 : vector<8x8xf32>
    %229 = arith.addf %197, %202 : vector<8x8xf32>
    %230 = arith.addf %207, %212 : vector<8x8xf32>
    %231 = arith.addf %217, %222 : vector<8x8xf32>
    %232 = arith.addf %228, %229 : vector<8x8xf32>
    %233 = arith.addf %230, %231 : vector<8x8xf32>
    %234 = arith.addf %232, %233 : vector<8x8xf32>
    %235 = arith.addf %234, %227 : vector<8x8xf32>
    %c3_116 = arith.constant 3 : index
    %236 = memref.load %arg2[%c3_116] : memref<4xf32, #tpu.memory_space<smem>>
    %237 = vector.broadcast %236 : f32 to vector<8x8xf32>
    %238 = arith.addf %235, %237 : vector<8x8xf32>
    %cst_117 = arith.constant 0.000000e+00 : f32
    %239 = vector.broadcast %cst_117 : f32 to vector<8x8xf32>
    %240 = arith.cmpf oge, %238, %239 : vector<8x8xf32>
    %cst_118 = arith.constant 0.00999999977 : f32
    %241 = vector.broadcast %cst_118 : f32 to vector<8x8xf32>
    %242 = arith.mulf %241, %238 : vector<8x8xf32>
    %243 = arith.select %240, %238, %242 : vector<8x8xi1>, vector<8x8xf32>
    %c0_119 = arith.constant 0 : index
    %244 = memref.load %arg3[%c0_119] : memref<128xf32, #tpu.memory_space<smem>>
    %245 = vector.broadcast %244 : f32 to vector<8x8xf32>
    %246 = arith.mulf %60, %245 : vector<8x8xf32>
    %c1_120 = arith.constant 1 : index
    %247 = memref.load %arg3[%c1_120] : memref<128xf32, #tpu.memory_space<smem>>
    %248 = vector.broadcast %247 : f32 to vector<8x8xf32>
    %249 = arith.mulf %121, %248 : vector<8x8xf32>
    %250 = arith.addf %246, %249 : vector<8x8xf32>
    %c2_121 = arith.constant 2 : index
    %251 = memref.load %arg3[%c2_121] : memref<128xf32, #tpu.memory_space<smem>>
    %252 = vector.broadcast %251 : f32 to vector<8x8xf32>
    %253 = arith.mulf %182, %252 : vector<8x8xf32>
    %254 = arith.addf %250, %253 : vector<8x8xf32>
    %c3_122 = arith.constant 3 : index
    %255 = memref.load %arg3[%c3_122] : memref<128xf32, #tpu.memory_space<smem>>
    %256 = vector.broadcast %255 : f32 to vector<8x8xf32>
    %257 = arith.mulf %243, %256 : vector<8x8xf32>
    %258 = arith.addf %254, %257 : vector<8x8xf32>
    %c0_123 = arith.constant 0 : index
    %259 = memref.load %arg4[%c0_123] : memref<32xf32, #tpu.memory_space<smem>>
    %260 = vector.broadcast %259 : f32 to vector<8x8xf32>
    %261 = arith.addf %258, %260 : vector<8x8xf32>
    %c0_124 = arith.constant 0 : index
    %c0_125 = arith.constant 0 : index
    %c0_126 = arith.constant 0 : index
    %262 = vector.load %arg5[%c0_124, %c0_125, %c0_126] : memref<64x8x8xf32, #tpu.memory_space<vmem>>, vector<1x8x8xf32>
    %263 = vector.shape_cast %262 : vector<1x8x8xf32> to vector<8x8xf32>
    %264 = vector.shape_cast %261 : vector<8x8xf32> to vector<1x8x8xf32>
    tpu.vector_store %arg5[%c0_124, %c0_125, %c0_126], %264 {strides = array<i32>} : memref<64x8x8xf32, #tpu.memory_space<vmem>>, vector<1x8x8xf32>,
    %c4_127 = arith.constant 4 : index
    %265 = memref.load %arg3[%c4_127] : memref<128xf32, #tpu.memory_space<smem>>
    %266 = vector.broadcast %265 : f32 to vector<8x8xf32>
    %267 = arith.mulf %60, %266 : vector<8x8xf32>
    %c5_128 = arith.constant 5 : index
    %268 = memref.load %arg3[%c5_128] : memref<128xf32, #tpu.memory_space<smem>>
    %269 = vector.broadcast %268 : f32 to vector<8x8xf32>
    %270 = arith.mulf %121, %269 : vector<8x8xf32>
    %271 = arith.addf %267, %270 : vector<8x8xf32>
    %c6_129 = arith.constant 6 : index
    %272 = memref.load %arg3[%c6_129] : memref<128xf32, #tpu.memory_space<smem>>
    %273 = vector.broadcast %272 : f32 to vector<8x8xf32>
    %274 = arith.mulf %182, %273 : vector<8x8xf32>
    %275 = arith.addf %271, %274 : vector<8x8xf32>
    %c7_130 = arith.constant 7 : index
    %276 = memref.load %arg3[%c7_130] : memref<128xf32, #tpu.memory_space<smem>>
    %277 = vector.broadcast %276 : f32 to vector<8x8xf32>
    %278 = arith.mulf %243, %277 : vector<8x8xf32>
    %279 = arith.addf %275, %278 : vector<8x8xf32>
    %c1_131 = arith.constant 1 : index
    %280 = memref.load %arg4[%c1_131] : memref<32xf32, #tpu.memory_space<smem>>
    %281 = vector.broadcast %280 : f32 to vector<8x8xf32>
    %282 = arith.addf %279, %281 : vector<8x8xf32>
    %c1_132 = arith.constant 1 : index
    %c0_133 = arith.constant 0 : index
    %c0_134 = arith.constant 0 : index
    %283 = vector.load %arg5[%c1_132, %c0_133, %c0_134] : memref<64x8x8xf32, #tpu.memory_space<vmem>>, vector<1x8x8xf32>
    %284 = vector.shape_cast %283 : vector<1x8x8xf32> to vector<8x8xf32>
    %285 = vector.shape_cast %282 : vector<8x8xf32> to vector<1x8x8xf32>
    tpu.vector_store %arg5[%c1_132, %c0_133, %c0_134], %285 {strides = array<i32>} : memref<64x8x8xf32, #tpu.memory_space<vmem>>, vector<1x8x8xf32>,
    %c8_135 = arith.constant 8 : index
    %286 = memref.load %arg3[%c8_135] : memref<128xf32, #tpu.memory_space<smem>>
    %287 = vector.broadcast %286 : f32 to vector<8x8xf32>
    %288 = arith.mulf %60, %287 : vector<8x8xf32>
    %c9_136 = arith.constant 9 : index
    %289 = memref.load %arg3[%c9_136] : memref<128xf32, #tpu.memory_space<smem>>
    %290 = vector.broadcast %289 : f32 to vector<8x8xf32>
    %291 = arith.mulf %121, %290 : vector<8x8xf32>
    %292 = arith.addf %288, %291 : vector<8x8xf32>
    %c10_137 = arith.constant 10 : index
    %293 = memref.load %arg3[%c10_137] : memref<128xf32, #tpu.memory_space<smem>>
    %294 = vector.broadcast %293 : f32 to vector<8x8xf32>
    %295 = arith.mulf %182, %294 : vector<8x8xf32>
    %296 = arith.addf %292, %295 : vector<8x8xf32>
    %c11_138 = arith.constant 11 : index
    %297 = memref.load %arg3[%c11_138] : memref<128xf32, #tpu.memory_space<smem>>
    %298 = vector.broadcast %297 : f32 to vector<8x8xf32>
    %299 = arith.mulf %243, %298 : vector<8x8xf32>
    %300 = arith.addf %296, %299 : vector<8x8xf32>
    %c2_139 = arith.constant 2 : index
    %301 = memref.load %arg4[%c2_139] : memref<32xf32, #tpu.memory_space<smem>>
    %302 = vector.broadcast %301 : f32 to vector<8x8xf32>
    %303 = arith.addf %300, %302 : vector<8x8xf32>
    %c2_140 = arith.constant 2 : index
    %c0_141 = arith.constant 0 : index
    %c0_142 = arith.constant 0 : index
    %304 = vector.load %arg5[%c2_140, %c0_141, %c0_142] : memref<64x8x8xf32, #tpu.memory_space<vmem>>, vector<1x8x8xf32>
    %305 = vector.shape_cast %304 : vector<1x8x8xf32> to vector<8x8xf32>
    %306 = vector.shape_cast %303 : vector<8x8xf32> to vector<1x8x8xf32>
    tpu.vector_store %arg5[%c2_140, %c0_141, %c0_142], %306 {strides = array<i32>} : memref<64x8x8xf32, #tpu.memory_space<vmem>>, vector<1x8x8xf32>,
    %c12_143 = arith.constant 12 : index
    %307 = memref.load %arg3[%c12_143] : memref<128xf32, #tpu.memory_space<smem>>
    %308 = vector.broadcast %307 : f32 to vector<8x8xf32>
    %309 = arith.mulf %60, %308 : vector<8x8xf32>
    %c13_144 = arith.constant 13 : index
    %310 = memref.load %arg3[%c13_144] : memref<128xf32, #tpu.memory_space<smem>>
    %311 = vector.broadcast %310 : f32 to vector<8x8xf32>
    %312 = arith.mulf %121, %311 : vector<8x8xf32>
    %313 = arith.addf %309, %312 : vector<8x8xf32>
    %c14_145 = arith.constant 14 : index
    %314 = memref.load %arg3[%c14_145] : memref<128xf32, #tpu.memory_space<smem>>
    %315 = vector.broadcast %314 : f32 to vector<8x8xf32>
    %316 = arith.mulf %182, %315 : vector<8x8xf32>
    %317 = arith.addf %313, %316 : vector<8x8xf32>
    %c15_146 = arith.constant 15 : index
    %318 = memref.load %arg3[%c15_146] : memref<128xf32, #tpu.memory_space<smem>>
    %319 = vector.broadcast %318 : f32 to vector<8x8xf32>
    %320 = arith.mulf %243, %319 : vector<8x8xf32>
    %321 = arith.addf %317, %320 : vector<8x8xf32>
    %c3_147 = arith.constant 3 : index
    %322 = memref.load %arg4[%c3_147] : memref<32xf32, #tpu.memory_space<smem>>
    %323 = vector.broadcast %322 : f32 to vector<8x8xf32>
    %324 = arith.addf %321, %323 : vector<8x8xf32>
    %c3_148 = arith.constant 3 : index
    %c0_149 = arith.constant 0 : index
    %c0_150 = arith.constant 0 : index
    %325 = vector.load %arg5[%c3_148, %c0_149, %c0_150] : memref<64x8x8xf32, #tpu.memory_space<vmem>>, vector<1x8x8xf32>
    %326 = vector.shape_cast %325 : vector<1x8x8xf32> to vector<8x8xf32>
    %327 = vector.shape_cast %324 : vector<8x8xf32> to vector<1x8x8xf32>
    tpu.vector_store %arg5[%c3_148, %c0_149, %c0_150], %327 {strides = array<i32>} : memref<64x8x8xf32, #tpu.memory_space<vmem>>, vector<1x8x8xf32>,
    %c16_151 = arith.constant 16 : index
    %328 = memref.load %arg3[%c16_151] : memref<128xf32, #tpu.memory_space<smem>>
    %329 = vector.broadcast %328 : f32 to vector<8x8xf32>
    %330 = arith.mulf %60, %329 : vector<8x8xf32>
    %c17_152 = arith.constant 17 : index
    %331 = memref.load %arg3[%c17_152] : memref<128xf32, #tpu.memory_space<smem>>
    %332 = vector.broadcast %331 : f32 to vector<8x8xf32>
    %333 = arith.mulf %121, %332 : vector<8x8xf32>
    %334 = arith.addf %330, %333 : vector<8x8xf32>
    %c18_153 = arith.constant 18 : index
    %335 = memref.load %arg3[%c18_153] : memref<128xf32, #tpu.memory_space<smem>>
    %336 = vector.broadcast %335 : f32 to vector<8x8xf32>
    %337 = arith.mulf %182, %336 : vector<8x8xf32>
    %338 = arith.addf %334, %337 : vector<8x8xf32>
    %c19_154 = arith.constant 19 : index
    %339 = memref.load %arg3[%c19_154] : memref<128xf32, #tpu.memory_space<smem>>
    %340 = vector.broadcast %339 : f32 to vector<8x8xf32>
    %341 = arith.mulf %243, %340 : vector<8x8xf32>
    %342 = arith.addf %338, %341 : vector<8x8xf32>
    %c4_155 = arith.constant 4 : index
    %343 = memref.load %arg4[%c4_155] : memref<32xf32, #tpu.memory_space<smem>>
    %344 = vector.broadcast %343 : f32 to vector<8x8xf32>
    %345 = arith.addf %342, %344 : vector<8x8xf32>
    %c4_156 = arith.constant 4 : index
    %c0_157 = arith.constant 0 : index
    %c0_158 = arith.constant 0 : index
    %346 = vector.load %arg5[%c4_156, %c0_157, %c0_158] : memref<64x8x8xf32, #tpu.memory_space<vmem>>, vector<1x8x8xf32>
    %347 = vector.shape_cast %346 : vector<1x8x8xf32> to vector<8x8xf32>
    %348 = vector.shape_cast %345 : vector<8x8xf32> to vector<1x8x8xf32>
    tpu.vector_store %arg5[%c4_156, %c0_157, %c0_158], %348 {strides = array<i32>} : memref<64x8x8xf32, #tpu.memory_space<vmem>>, vector<1x8x8xf32>,
    %c20_159 = arith.constant 20 : index
    %349 = memref.load %arg3[%c20_159] : memref<128xf32, #tpu.memory_space<smem>>
    %350 = vector.broadcast %349 : f32 to vector<8x8xf32>
    %351 = arith.mulf %60, %350 : vector<8x8xf32>
    %c21_160 = arith.constant 21 : index
    %352 = memref.load %arg3[%c21_160] : memref<128xf32, #tpu.memory_space<smem>>
    %353 = vector.broadcast %352 : f32 to vector<8x8xf32>
    %354 = arith.mulf %121, %353 : vector<8x8xf32>
    %355 = arith.addf %351, %354 : vector<8x8xf32>
    %c22_161 = arith.constant 22 : index
    %356 = memref.load %arg3[%c22_161] : memref<128xf32, #tpu.memory_space<smem>>
    %357 = vector.broadcast %356 : f32 to vector<8x8xf32>
    %358 = arith.mulf %182, %357 : vector<8x8xf32>
    %359 = arith.addf %355, %358 : vector<8x8xf32>
    %c23_162 = arith.constant 23 : index
    %360 = memref.load %arg3[%c23_162] : memref<128xf32, #tpu.memory_space<smem>>
    %361 = vector.broadcast %360 : f32 to vector<8x8xf32>
    %362 = arith.mulf %243, %361 : vector<8x8xf32>
    %363 = arith.addf %359, %362 : vector<8x8xf32>
    %c5_163 = arith.constant 5 : index
    %364 = memref.load %arg4[%c5_163] : memref<32xf32, #tpu.memory_space<smem>>
    %365 = vector.broadcast %364 : f32 to vector<8x8xf32>
    %366 = arith.addf %363, %365 : vector<8x8xf32>
    %c5_164 = arith.constant 5 : index
    %c0_165 = arith.constant 0 : index
    %c0_166 = arith.constant 0 : index
    %367 = vector.load %arg5[%c5_164, %c0_165, %c0_166] : memref<64x8x8xf32, #tpu.memory_space<vmem>>, vector<1x8x8xf32>
    %368 = vector.shape_cast %367 : vector<1x8x8xf32> to vector<8x8xf32>
    %369 = vector.shape_cast %366 : vector<8x8xf32> to vector<1x8x8xf32>
    tpu.vector_store %arg5[%c5_164, %c0_165, %c0_166], %369 {strides = array<i32>} : memref<64x8x8xf32, #tpu.memory_space<vmem>>, vector<1x8x8xf32>,
    %c24_167 = arith.constant 24 : index
    %370 = memref.load %arg3[%c24_167] : memref<128xf32, #tpu.memory_space<smem>>
    %371 = vector.broadcast %370 : f32 to vector<8x8xf32>
    %372 = arith.mulf %60, %371 : vector<8x8xf32>
    %c25_168 = arith.constant 25 : index
    %373 = memref.load %arg3[%c25_168] : memref<128xf32, #tpu.memory_space<smem>>
    %374 = vector.broadcast %373 : f32 to vector<8x8xf32>
    %375 = arith.mulf %121, %374 : vector<8x8xf32>
    %376 = arith.addf %372, %375 : vector<8x8xf32>
    %c26_169 = arith.constant 26 : index
    %377 = memref.load %arg3[%c26_169] : memref<128xf32, #tpu.memory_space<smem>>
    %378 = vector.broadcast %377 : f32 to vector<8x8xf32>
    %379 = arith.mulf %182, %378 : vector<8x8xf32>
    %380 = arith.addf %376, %379 : vector<8x8xf32>
    %c27_170 = arith.constant 27 : index
    %381 = memref.load %arg3[%c27_170] : memref<128xf32, #tpu.memory_space<smem>>
    %382 = vector.broadcast %381 : f32 to vector<8x8xf32>
    %383 = arith.mulf %243, %382 : vector<8x8xf32>
    %384 = arith.addf %380, %383 : vector<8x8xf32>
    %c6_171 = arith.constant 6 : index
    %385 = memref.load %arg4[%c6_171] : memref<32xf32, #tpu.memory_space<smem>>
    %386 = vector.broadcast %385 : f32 to vector<8x8xf32>
    %387 = arith.addf %384, %386 : vector<8x8xf32>
    %c6_172 = arith.constant 6 : index
    %c0_173 = arith.constant 0 : index
    %c0_174 = arith.constant 0 : index
    %388 = vector.load %arg5[%c6_172, %c0_173, %c0_174] : memref<64x8x8xf32, #tpu.memory_space<vmem>>, vector<1x8x8xf32>
    %389 = vector.shape_cast %388 : vector<1x8x8xf32> to vector<8x8xf32>
    %390 = vector.shape_cast %387 : vector<8x8xf32> to vector<1x8x8xf32>
    tpu.vector_store %arg5[%c6_172, %c0_173, %c0_174], %390 {strides = array<i32>} : memref<64x8x8xf32, #tpu.memory_space<vmem>>, vector<1x8x8xf32>,
    %c28_175 = arith.constant 28 : index
    %391 = memref.load %arg3[%c28_175] : memref<128xf32, #tpu.memory_space<smem>>
    %392 = vector.broadcast %391 : f32 to vector<8x8xf32>
    %393 = arith.mulf %60, %392 : vector<8x8xf32>
    %c29_176 = arith.constant 29 : index
    %394 = memref.load %arg3[%c29_176] : memref<128xf32, #tpu.memory_space<smem>>
    %395 = vector.broadcast %394 : f32 to vector<8x8xf32>
    %396 = arith.mulf %121, %395 : vector<8x8xf32>
    %397 = arith.addf %393, %396 : vector<8x8xf32>
    %c30_177 = arith.constant 30 : index
    %398 = memref.load %arg3[%c30_177] : memref<128xf32, #tpu.memory_space<smem>>
    %399 = vector.broadcast %398 : f32 to vector<8x8xf32>
    %400 = arith.mulf %182, %399 : vector<8x8xf32>
    %401 = arith.addf %397, %400 : vector<8x8xf32>
    %c31_178 = arith.constant 31 : index
    %402 = memref.load %arg3[%c31_178] : memref<128xf32, #tpu.memory_space<smem>>
    %403 = vector.broadcast %402 : f32 to vector<8x8xf32>
    %404 = arith.mulf %243, %403 : vector<8x8xf32>
    %405 = arith.addf %401, %404 : vector<8x8xf32>
    %c7_179 = arith.constant 7 : index
    %406 = memref.load %arg4[%c7_179] : memref<32xf32, #tpu.memory_space<smem>>
    %407 = vector.broadcast %406 : f32 to vector<8x8xf32>
    %408 = arith.addf %405, %407 : vector<8x8xf32>
    %c7_180 = arith.constant 7 : index
    %c0_181 = arith.constant 0 : index
    %c0_182 = arith.constant 0 : index
    %409 = vector.load %arg5[%c7_180, %c0_181, %c0_182] : memref<64x8x8xf32, #tpu.memory_space<vmem>>, vector<1x8x8xf32>
    %410 = vector.shape_cast %409 : vector<1x8x8xf32> to vector<8x8xf32>
    %411 = vector.shape_cast %408 : vector<8x8xf32> to vector<1x8x8xf32>
    tpu.vector_store %arg5[%c7_180, %c0_181, %c0_182], %411 {strides = array<i32>} : memref<64x8x8xf32, #tpu.memory_space<vmem>>, vector<1x8x8xf32>,
    %c32_183 = arith.constant 32 : index
    %412 = memref.load %arg3[%c32_183] : memref<128xf32, #tpu.memory_space<smem>>
    %413 = vector.broadcast %412 : f32 to vector<8x8xf32>
    %414 = arith.mulf %60, %413 : vector<8x8xf32>
    %c33_184 = arith.constant 33 : index
    %415 = memref.load %arg3[%c33_184] : memref<128xf32, #tpu.memory_space<smem>>
    %416 = vector.broadcast %415 : f32 to vector<8x8xf32>
    %417 = arith.mulf %121, %416 : vector<8x8xf32>
    %418 = arith.addf %414, %417 : vector<8x8xf32>
    %c34_185 = arith.constant 34 : index
    %419 = memref.load %arg3[%c34_185] : memref<128xf32, #tpu.memory_space<smem>>
    %420 = vector.broadcast %419 : f32 to vector<8x8xf32>
    %421 = arith.mulf %182, %420 : vector<8x8xf32>
    %422 = arith.addf %418, %421 : vector<8x8xf32>
    %c35_186 = arith.constant 35 : index
    %423 = memref.load %arg3[%c35_186] : memref<128xf32, #tpu.memory_space<smem>>
    %424 = vector.broadcast %423 : f32 to vector<8x8xf32>
    %425 = arith.mulf %243, %424 : vector<8x8xf32>
    %426 = arith.addf %422, %425 : vector<8x8xf32>
    %c8_187 = arith.constant 8 : index
    %427 = memref.load %arg4[%c8_187] : memref<32xf32, #tpu.memory_space<smem>>
    %428 = vector.broadcast %427 : f32 to vector<8x8xf32>
    %429 = arith.addf %426, %428 : vector<8x8xf32>
    %c8_188 = arith.constant 8 : index
    %c0_189 = arith.constant 0 : index
    %c0_190 = arith.constant 0 : index
    %430 = vector.load %arg5[%c8_188, %c0_189, %c0_190] : memref<64x8x8xf32, #tpu.memory_space<vmem>>, vector<1x8x8xf32>
    %431 = vector.shape_cast %430 : vector<1x8x8xf32> to vector<8x8xf32>
    %432 = vector.shape_cast %429 : vector<8x8xf32> to vector<1x8x8xf32>
    tpu.vector_store %arg5[%c8_188, %c0_189, %c0_190], %432 {strides = array<i32>} : memref<64x8x8xf32, #tpu.memory_space<vmem>>, vector<1x8x8xf32>,
    %c36 = arith.constant 36 : index
    %433 = memref.load %arg3[%c36] : memref<128xf32, #tpu.memory_space<smem>>
    %434 = vector.broadcast %433 : f32 to vector<8x8xf32>
    %435 = arith.mulf %60, %434 : vector<8x8xf32>
    %c37 = arith.constant 37 : index
    %436 = memref.load %arg3[%c37] : memref<128xf32, #tpu.memory_space<smem>>
    %437 = vector.broadcast %436 : f32 to vector<8x8xf32>
    %438 = arith.mulf %121, %437 : vector<8x8xf32>
    %439 = arith.addf %435, %438 : vector<8x8xf32>
    %c38 = arith.constant 38 : index
    %440 = memref.load %arg3[%c38] : memref<128xf32, #tpu.memory_space<smem>>
    %441 = vector.broadcast %440 : f32 to vector<8x8xf32>
    %442 = arith.mulf %182, %441 : vector<8x8xf32>
    %443 = arith.addf %439, %442 : vector<8x8xf32>
    %c39 = arith.constant 39 : index
    %444 = memref.load %arg3[%c39] : memref<128xf32, #tpu.memory_space<smem>>
    %445 = vector.broadcast %444 : f32 to vector<8x8xf32>
    %446 = arith.mulf %243, %445 : vector<8x8xf32>
    %447 = arith.addf %443, %446 : vector<8x8xf32>
    %c9_191 = arith.constant 9 : index
    %448 = memref.load %arg4[%c9_191] : memref<32xf32, #tpu.memory_space<smem>>
    %449 = vector.broadcast %448 : f32 to vector<8x8xf32>
    %450 = arith.addf %447, %449 : vector<8x8xf32>
    %c9_192 = arith.constant 9 : index
    %c0_193 = arith.constant 0 : index
    %c0_194 = arith.constant 0 : index
    %451 = vector.load %arg5[%c9_192, %c0_193, %c0_194] : memref<64x8x8xf32, #tpu.memory_space<vmem>>, vector<1x8x8xf32>
    %452 = vector.shape_cast %451 : vector<1x8x8xf32> to vector<8x8xf32>
    %453 = vector.shape_cast %450 : vector<8x8xf32> to vector<1x8x8xf32>
    tpu.vector_store %arg5[%c9_192, %c0_193, %c0_194], %453 {strides = array<i32>} : memref<64x8x8xf32, #tpu.memory_space<vmem>>, vector<1x8x8xf32>,
    %c40 = arith.constant 40 : index
    %454 = memref.load %arg3[%c40] : memref<128xf32, #tpu.memory_space<smem>>
    %455 = vector.broadcast %454 : f32 to vector<8x8xf32>
    %456 = arith.mulf %60, %455 : vector<8x8xf32>
    %c41 = arith.constant 41 : index
    %457 = memref.load %arg3[%c41] : memref<128xf32, #tpu.memory_space<smem>>
    %458 = vector.broadcast %457 : f32 to vector<8x8xf32>
    %459 = arith.mulf %121, %458 : vector<8x8xf32>
    %460 = arith.addf %456, %459 : vector<8x8xf32>
    %c42 = arith.constant 42 : index
    %461 = memref.load %arg3[%c42] : memref<128xf32, #tpu.memory_space<smem>>
    %462 = vector.broadcast %461 : f32 to vector<8x8xf32>
    %463 = arith.mulf %182, %462 : vector<8x8xf32>
    %464 = arith.addf %460, %463 : vector<8x8xf32>
    %c43 = arith.constant 43 : index
    %465 = memref.load %arg3[%c43] : memref<128xf32, #tpu.memory_space<smem>>
    %466 = vector.broadcast %465 : f32 to vector<8x8xf32>
    %467 = arith.mulf %243, %466 : vector<8x8xf32>
    %468 = arith.addf %464, %467 : vector<8x8xf32>
    %c10_195 = arith.constant 10 : index
    %469 = memref.load %arg4[%c10_195] : memref<32xf32, #tpu.memory_space<smem>>
    %470 = vector.broadcast %469 : f32 to vector<8x8xf32>
    %471 = arith.addf %468, %470 : vector<8x8xf32>
    %c10_196 = arith.constant 10 : index
    %c0_197 = arith.constant 0 : index
    %c0_198 = arith.constant 0 : index
    %472 = vector.load %arg5[%c10_196, %c0_197, %c0_198] : memref<64x8x8xf32, #tpu.memory_space<vmem>>, vector<1x8x8xf32>
    %473 = vector.shape_cast %472 : vector<1x8x8xf32> to vector<8x8xf32>
    %474 = vector.shape_cast %471 : vector<8x8xf32> to vector<1x8x8xf32>
    tpu.vector_store %arg5[%c10_196, %c0_197, %c0_198], %474 {strides = array<i32>} : memref<64x8x8xf32, #tpu.memory_space<vmem>>, vector<1x8x8xf32>,
    %c44 = arith.constant 44 : index
    %475 = memref.load %arg3[%c44] : memref<128xf32, #tpu.memory_space<smem>>
    %476 = vector.broadcast %475 : f32 to vector<8x8xf32>
    %477 = arith.mulf %60, %476 : vector<8x8xf32>
    %c45 = arith.constant 45 : index
    %478 = memref.load %arg3[%c45] : memref<128xf32, #tpu.memory_space<smem>>
    %479 = vector.broadcast %478 : f32 to vector<8x8xf32>
    %480 = arith.mulf %121, %479 : vector<8x8xf32>
    %481 = arith.addf %477, %480 : vector<8x8xf32>
    %c46 = arith.constant 46 : index
    %482 = memref.load %arg3[%c46] : memref<128xf32, #tpu.memory_space<smem>>
    %483 = vector.broadcast %482 : f32 to vector<8x8xf32>
    %484 = arith.mulf %182, %483 : vector<8x8xf32>
    %485 = arith.addf %481, %484 : vector<8x8xf32>
    %c47 = arith.constant 47 : index
    %486 = memref.load %arg3[%c47] : memref<128xf32, #tpu.memory_space<smem>>
    %487 = vector.broadcast %486 : f32 to vector<8x8xf32>
    %488 = arith.mulf %243, %487 : vector<8x8xf32>
    %489 = arith.addf %485, %488 : vector<8x8xf32>
    %c11_199 = arith.constant 11 : index
    %490 = memref.load %arg4[%c11_199] : memref<32xf32, #tpu.memory_space<smem>>
    %491 = vector.broadcast %490 : f32 to vector<8x8xf32>
    %492 = arith.addf %489, %491 : vector<8x8xf32>
    %c11_200 = arith.constant 11 : index
    %c0_201 = arith.constant 0 : index
    %c0_202 = arith.constant 0 : index
    %493 = vector.load %arg5[%c11_200, %c0_201, %c0_202] : memref<64x8x8xf32, #tpu.memory_space<vmem>>, vector<1x8x8xf32>
    %494 = vector.shape_cast %493 : vector<1x8x8xf32> to vector<8x8xf32>
    %495 = vector.shape_cast %492 : vector<8x8xf32> to vector<1x8x8xf32>
    tpu.vector_store %arg5[%c11_200, %c0_201, %c0_202], %495 {strides = array<i32>} : memref<64x8x8xf32, #tpu.memory_space<vmem>>, vector<1x8x8xf32>,
    %c48 = arith.constant 48 : index
    %496 = memref.load %arg3[%c48] : memref<128xf32, #tpu.memory_space<smem>>
    %497 = vector.broadcast %496 : f32 to vector<8x8xf32>
    %498 = arith.mulf %60, %497 : vector<8x8xf32>
    %c49 = arith.constant 49 : index
    %499 = memref.load %arg3[%c49] : memref<128xf32, #tpu.memory_space<smem>>
    %500 = vector.broadcast %499 : f32 to vector<8x8xf32>
    %501 = arith.mulf %121, %500 : vector<8x8xf32>
    %502 = arith.addf %498, %501 : vector<8x8xf32>
    %c50 = arith.constant 50 : index
    %503 = memref.load %arg3[%c50] : memref<128xf32, #tpu.memory_space<smem>>
    %504 = vector.broadcast %503 : f32 to vector<8x8xf32>
    %505 = arith.mulf %182, %504 : vector<8x8xf32>
    %506 = arith.addf %502, %505 : vector<8x8xf32>
    %c51 = arith.constant 51 : index
    %507 = memref.load %arg3[%c51] : memref<128xf32, #tpu.memory_space<smem>>
    %508 = vector.broadcast %507 : f32 to vector<8x8xf32>
    %509 = arith.mulf %243, %508 : vector<8x8xf32>
    %510 = arith.addf %506, %509 : vector<8x8xf32>
    %c12_203 = arith.constant 12 : index
    %511 = memref.load %arg4[%c12_203] : memref<32xf32, #tpu.memory_space<smem>>
    %512 = vector.broadcast %511 : f32 to vector<8x8xf32>
    %513 = arith.addf %510, %512 : vector<8x8xf32>
    %c12_204 = arith.constant 12 : index
    %c0_205 = arith.constant 0 : index
    %c0_206 = arith.constant 0 : index
    %514 = vector.load %arg5[%c12_204, %c0_205, %c0_206] : memref<64x8x8xf32, #tpu.memory_space<vmem>>, vector<1x8x8xf32>
    %515 = vector.shape_cast %514 : vector<1x8x8xf32> to vector<8x8xf32>
    %516 = vector.shape_cast %513 : vector<8x8xf32> to vector<1x8x8xf32>
    tpu.vector_store %arg5[%c12_204, %c0_205, %c0_206], %516 {strides = array<i32>} : memref<64x8x8xf32, #tpu.memory_space<vmem>>, vector<1x8x8xf32>,
    %c52 = arith.constant 52 : index
    %517 = memref.load %arg3[%c52] : memref<128xf32, #tpu.memory_space<smem>>
    %518 = vector.broadcast %517 : f32 to vector<8x8xf32>
    %519 = arith.mulf %60, %518 : vector<8x8xf32>
    %c53 = arith.constant 53 : index
    %520 = memref.load %arg3[%c53] : memref<128xf32, #tpu.memory_space<smem>>
    %521 = vector.broadcast %520 : f32 to vector<8x8xf32>
    %522 = arith.mulf %121, %521 : vector<8x8xf32>
    %523 = arith.addf %519, %522 : vector<8x8xf32>
    %c54 = arith.constant 54 : index
    %524 = memref.load %arg3[%c54] : memref<128xf32, #tpu.memory_space<smem>>
    %525 = vector.broadcast %524 : f32 to vector<8x8xf32>
    %526 = arith.mulf %182, %525 : vector<8x8xf32>
    %527 = arith.addf %523, %526 : vector<8x8xf32>
    %c55 = arith.constant 55 : index
    %528 = memref.load %arg3[%c55] : memref<128xf32, #tpu.memory_space<smem>>
    %529 = vector.broadcast %528 : f32 to vector<8x8xf32>
    %530 = arith.mulf %243, %529 : vector<8x8xf32>
    %531 = arith.addf %527, %530 : vector<8x8xf32>
    %c13_207 = arith.constant 13 : index
    %532 = memref.load %arg4[%c13_207] : memref<32xf32, #tpu.memory_space<smem>>
    %533 = vector.broadcast %532 : f32 to vector<8x8xf32>
    %534 = arith.addf %531, %533 : vector<8x8xf32>
    %c13_208 = arith.constant 13 : index
    %c0_209 = arith.constant 0 : index
    %c0_210 = arith.constant 0 : index
    %535 = vector.load %arg5[%c13_208, %c0_209, %c0_210] : memref<64x8x8xf32, #tpu.memory_space<vmem>>, vector<1x8x8xf32>
    %536 = vector.shape_cast %535 : vector<1x8x8xf32> to vector<8x8xf32>
    %537 = vector.shape_cast %534 : vector<8x8xf32> to vector<1x8x8xf32>
    tpu.vector_store %arg5[%c13_208, %c0_209, %c0_210], %537 {strides = array<i32>} : memref<64x8x8xf32, #tpu.memory_space<vmem>>, vector<1x8x8xf32>,
    %c56 = arith.constant 56 : index
    %538 = memref.load %arg3[%c56] : memref<128xf32, #tpu.memory_space<smem>>
    %539 = vector.broadcast %538 : f32 to vector<8x8xf32>
    %540 = arith.mulf %60, %539 : vector<8x8xf32>
    %c57 = arith.constant 57 : index
    %541 = memref.load %arg3[%c57] : memref<128xf32, #tpu.memory_space<smem>>
    %542 = vector.broadcast %541 : f32 to vector<8x8xf32>
    %543 = arith.mulf %121, %542 : vector<8x8xf32>
    %544 = arith.addf %540, %543 : vector<8x8xf32>
    %c58 = arith.constant 58 : index
    %545 = memref.load %arg3[%c58] : memref<128xf32, #tpu.memory_space<smem>>
    %546 = vector.broadcast %545 : f32 to vector<8x8xf32>
    %547 = arith.mulf %182, %546 : vector<8x8xf32>
    %548 = arith.addf %544, %547 : vector<8x8xf32>
    %c59 = arith.constant 59 : index
    %549 = memref.load %arg3[%c59] : memref<128xf32, #tpu.memory_space<smem>>
    %550 = vector.broadcast %549 : f32 to vector<8x8xf32>
    %551 = arith.mulf %243, %550 : vector<8x8xf32>
    %552 = arith.addf %548, %551 : vector<8x8xf32>
    %c14_211 = arith.constant 14 : index
    %553 = memref.load %arg4[%c14_211] : memref<32xf32, #tpu.memory_space<smem>>
    %554 = vector.broadcast %553 : f32 to vector<8x8xf32>
    %555 = arith.addf %552, %554 : vector<8x8xf32>
    %c14_212 = arith.constant 14 : index
    %c0_213 = arith.constant 0 : index
    %c0_214 = arith.constant 0 : index
    %556 = vector.load %arg5[%c14_212, %c0_213, %c0_214] : memref<64x8x8xf32, #tpu.memory_space<vmem>>, vector<1x8x8xf32>
    %557 = vector.shape_cast %556 : vector<1x8x8xf32> to vector<8x8xf32>
    %558 = vector.shape_cast %555 : vector<8x8xf32> to vector<1x8x8xf32>
    tpu.vector_store %arg5[%c14_212, %c0_213, %c0_214], %558 {strides = array<i32>} : memref<64x8x8xf32, #tpu.memory_space<vmem>>, vector<1x8x8xf32>,
    %c60 = arith.constant 60 : index
    %559 = memref.load %arg3[%c60] : memref<128xf32, #tpu.memory_space<smem>>
    %560 = vector.broadcast %559 : f32 to vector<8x8xf32>
    %561 = arith.mulf %60, %560 : vector<8x8xf32>
    %c61 = arith.constant 61 : index
    %562 = memref.load %arg3[%c61] : memref<128xf32, #tpu.memory_space<smem>>
    %563 = vector.broadcast %562 : f32 to vector<8x8xf32>
    %564 = arith.mulf %121, %563 : vector<8x8xf32>
    %565 = arith.addf %561, %564 : vector<8x8xf32>
    %c62 = arith.constant 62 : index
    %566 = memref.load %arg3[%c62] : memref<128xf32, #tpu.memory_space<smem>>
    %567 = vector.broadcast %566 : f32 to vector<8x8xf32>
    %568 = arith.mulf %182, %567 : vector<8x8xf32>
    %569 = arith.addf %565, %568 : vector<8x8xf32>
    %c63 = arith.constant 63 : index
    %570 = memref.load %arg3[%c63] : memref<128xf32, #tpu.memory_space<smem>>
    %571 = vector.broadcast %570 : f32 to vector<8x8xf32>
    %572 = arith.mulf %243, %571 : vector<8x8xf32>
    %573 = arith.addf %569, %572 : vector<8x8xf32>
    %c15_215 = arith.constant 15 : index
    %574 = memref.load %arg4[%c15_215] : memref<32xf32, #tpu.memory_space<smem>>
    %575 = vector.broadcast %574 : f32 to vector<8x8xf32>
    %576 = arith.addf %573, %575 : vector<8x8xf32>
    %c15_216 = arith.constant 15 : index
    %c0_217 = arith.constant 0 : index
    %c0_218 = arith.constant 0 : index
    %577 = vector.load %arg5[%c15_216, %c0_217, %c0_218] : memref<64x8x8xf32, #tpu.memory_space<vmem>>, vector<1x8x8xf32>
    %578 = vector.shape_cast %577 : vector<1x8x8xf32> to vector<8x8xf32>
    %579 = vector.shape_cast %576 : vector<8x8xf32> to vector<1x8x8xf32>
    tpu.vector_store %arg5[%c15_216, %c0_217, %c0_218], %579 {strides = array<i32>} : memref<64x8x8xf32, #tpu.memory_space<vmem>>, vector<1x8x8xf32>,
    %c64 = arith.constant 64 : index
    %580 = memref.load %arg3[%c64] : memref<128xf32, #tpu.memory_space<smem>>
    %581 = vector.broadcast %580 : f32 to vector<8x8xf32>
    %582 = arith.mulf %60, %581 : vector<8x8xf32>
    %c65 = arith.constant 65 : index
    %583 = memref.load %arg3[%c65] : memref<128xf32, #tpu.memory_space<smem>>
    %584 = vector.broadcast %583 : f32 to vector<8x8xf32>
    %585 = arith.mulf %121, %584 : vector<8x8xf32>
    %586 = arith.addf %582, %585 : vector<8x8xf32>
    %c66 = arith.constant 66 : index
    %587 = memref.load %arg3[%c66] : memref<128xf32, #tpu.memory_space<smem>>
    %588 = vector.broadcast %587 : f32 to vector<8x8xf32>
    %589 = arith.mulf %182, %588 : vector<8x8xf32>
    %590 = arith.addf %586, %589 : vector<8x8xf32>
    %c67 = arith.constant 67 : index
    %591 = memref.load %arg3[%c67] : memref<128xf32, #tpu.memory_space<smem>>
    %592 = vector.broadcast %591 : f32 to vector<8x8xf32>
    %593 = arith.mulf %243, %592 : vector<8x8xf32>
    %594 = arith.addf %590, %593 : vector<8x8xf32>
    %c16_219 = arith.constant 16 : index
    %595 = memref.load %arg4[%c16_219] : memref<32xf32, #tpu.memory_space<smem>>
    %596 = vector.broadcast %595 : f32 to vector<8x8xf32>
    %597 = arith.addf %594, %596 : vector<8x8xf32>
    %c16_220 = arith.constant 16 : index
    %c0_221 = arith.constant 0 : index
    %c0_222 = arith.constant 0 : index
    %598 = vector.load %arg5[%c16_220, %c0_221, %c0_222] : memref<64x8x8xf32, #tpu.memory_space<vmem>>, vector<1x8x8xf32>
    %599 = vector.shape_cast %598 : vector<1x8x8xf32> to vector<8x8xf32>
    %600 = vector.shape_cast %597 : vector<8x8xf32> to vector<1x8x8xf32>
    tpu.vector_store %arg5[%c16_220, %c0_221, %c0_222], %600 {strides = array<i32>} : memref<64x8x8xf32, #tpu.memory_space<vmem>>, vector<1x8x8xf32>,
    %c68 = arith.constant 68 : index
    %601 = memref.load %arg3[%c68] : memref<128xf32, #tpu.memory_space<smem>>
    %602 = vector.broadcast %601 : f32 to vector<8x8xf32>
    %603 = arith.mulf %60, %602 : vector<8x8xf32>
    %c69 = arith.constant 69 : index
    %604 = memref.load %arg3[%c69] : memref<128xf32, #tpu.memory_space<smem>>
    %605 = vector.broadcast %604 : f32 to vector<8x8xf32>
    %606 = arith.mulf %121, %605 : vector<8x8xf32>
    %607 = arith.addf %603, %606 : vector<8x8xf32>
    %c70 = arith.constant 70 : index
    %608 = memref.load %arg3[%c70] : memref<128xf32, #tpu.memory_space<smem>>
    %609 = vector.broadcast %608 : f32 to vector<8x8xf32>
    %610 = arith.mulf %182, %609 : vector<8x8xf32>
    %611 = arith.addf %607, %610 : vector<8x8xf32>
    %c71 = arith.constant 71 : index
    %612 = memref.load %arg3[%c71] : memref<128xf32, #tpu.memory_space<smem>>
    %613 = vector.broadcast %612 : f32 to vector<8x8xf32>
    %614 = arith.mulf %243, %613 : vector<8x8xf32>
    %615 = arith.addf %611, %614 : vector<8x8xf32>
    %c17_223 = arith.constant 17 : index
    %616 = memref.load %arg4[%c17_223] : memref<32xf32, #tpu.memory_space<smem>>
    %617 = vector.broadcast %616 : f32 to vector<8x8xf32>
    %618 = arith.addf %615, %617 : vector<8x8xf32>
    %c17_224 = arith.constant 17 : index
    %c0_225 = arith.constant 0 : index
    %c0_226 = arith.constant 0 : index
    %619 = vector.load %arg5[%c17_224, %c0_225, %c0_226] : memref<64x8x8xf32, #tpu.memory_space<vmem>>, vector<1x8x8xf32>
    %620 = vector.shape_cast %619 : vector<1x8x8xf32> to vector<8x8xf32>
    %621 = vector.shape_cast %618 : vector<8x8xf32> to vector<1x8x8xf32>
    tpu.vector_store %arg5[%c17_224, %c0_225, %c0_226], %621 {strides = array<i32>} : memref<64x8x8xf32, #tpu.memory_space<vmem>>, vector<1x8x8xf32>,
    %c72 = arith.constant 72 : index
    %622 = memref.load %arg3[%c72] : memref<128xf32, #tpu.memory_space<smem>>
    %623 = vector.broadcast %622 : f32 to vector<8x8xf32>
    %624 = arith.mulf %60, %623 : vector<8x8xf32>
    %c73 = arith.constant 73 : index
    %625 = memref.load %arg3[%c73] : memref<128xf32, #tpu.memory_space<smem>>
    %626 = vector.broadcast %625 : f32 to vector<8x8xf32>
    %627 = arith.mulf %121, %626 : vector<8x8xf32>
    %628 = arith.addf %624, %627 : vector<8x8xf32>
    %c74 = arith.constant 74 : index
    %629 = memref.load %arg3[%c74] : memref<128xf32, #tpu.memory_space<smem>>
    %630 = vector.broadcast %629 : f32 to vector<8x8xf32>
    %631 = arith.mulf %182, %630 : vector<8x8xf32>
    %632 = arith.addf %628, %631 : vector<8x8xf32>
    %c75 = arith.constant 75 : index
    %633 = memref.load %arg3[%c75] : memref<128xf32, #tpu.memory_space<smem>>
    %634 = vector.broadcast %633 : f32 to vector<8x8xf32>
    %635 = arith.mulf %243, %634 : vector<8x8xf32>
    %636 = arith.addf %632, %635 : vector<8x8xf32>
    %c18_227 = arith.constant 18 : index
    %637 = memref.load %arg4[%c18_227] : memref<32xf32, #tpu.memory_space<smem>>
    %638 = vector.broadcast %637 : f32 to vector<8x8xf32>
    %639 = arith.addf %636, %638 : vector<8x8xf32>
    %c18_228 = arith.constant 18 : index
    %c0_229 = arith.constant 0 : index
    %c0_230 = arith.constant 0 : index
    %640 = vector.load %arg5[%c18_228, %c0_229, %c0_230] : memref<64x8x8xf32, #tpu.memory_space<vmem>>, vector<1x8x8xf32>
    %641 = vector.shape_cast %640 : vector<1x8x8xf32> to vector<8x8xf32>
    %642 = vector.shape_cast %639 : vector<8x8xf32> to vector<1x8x8xf32>
    tpu.vector_store %arg5[%c18_228, %c0_229, %c0_230], %642 {strides = array<i32>} : memref<64x8x8xf32, #tpu.memory_space<vmem>>, vector<1x8x8xf32>,
    %c76 = arith.constant 76 : index
    %643 = memref.load %arg3[%c76] : memref<128xf32, #tpu.memory_space<smem>>
    %644 = vector.broadcast %643 : f32 to vector<8x8xf32>
    %645 = arith.mulf %60, %644 : vector<8x8xf32>
    %c77 = arith.constant 77 : index
    %646 = memref.load %arg3[%c77] : memref<128xf32, #tpu.memory_space<smem>>
    %647 = vector.broadcast %646 : f32 to vector<8x8xf32>
    %648 = arith.mulf %121, %647 : vector<8x8xf32>
    %649 = arith.addf %645, %648 : vector<8x8xf32>
    %c78 = arith.constant 78 : index
    %650 = memref.load %arg3[%c78] : memref<128xf32, #tpu.memory_space<smem>>
    %651 = vector.broadcast %650 : f32 to vector<8x8xf32>
    %652 = arith.mulf %182, %651 : vector<8x8xf32>
    %653 = arith.addf %649, %652 : vector<8x8xf32>
    %c79 = arith.constant 79 : index
    %654 = memref.load %arg3[%c79] : memref<128xf32, #tpu.memory_space<smem>>
    %655 = vector.broadcast %654 : f32 to vector<8x8xf32>
    %656 = arith.mulf %243, %655 : vector<8x8xf32>
    %657 = arith.addf %653, %656 : vector<8x8xf32>
    %c19_231 = arith.constant 19 : index
    %658 = memref.load %arg4[%c19_231] : memref<32xf32, #tpu.memory_space<smem>>
    %659 = vector.broadcast %658 : f32 to vector<8x8xf32>
    %660 = arith.addf %657, %659 : vector<8x8xf32>
    %c19_232 = arith.constant 19 : index
    %c0_233 = arith.constant 0 : index
    %c0_234 = arith.constant 0 : index
    %661 = vector.load %arg5[%c19_232, %c0_233, %c0_234] : memref<64x8x8xf32, #tpu.memory_space<vmem>>, vector<1x8x8xf32>
    %662 = vector.shape_cast %661 : vector<1x8x8xf32> to vector<8x8xf32>
    %663 = vector.shape_cast %660 : vector<8x8xf32> to vector<1x8x8xf32>
    tpu.vector_store %arg5[%c19_232, %c0_233, %c0_234], %663 {strides = array<i32>} : memref<64x8x8xf32, #tpu.memory_space<vmem>>, vector<1x8x8xf32>,
    %c80 = arith.constant 80 : index
    %664 = memref.load %arg3[%c80] : memref<128xf32, #tpu.memory_space<smem>>
    %665 = vector.broadcast %664 : f32 to vector<8x8xf32>
    %666 = arith.mulf %60, %665 : vector<8x8xf32>
    %c81 = arith.constant 81 : index
    %667 = memref.load %arg3[%c81] : memref<128xf32, #tpu.memory_space<smem>>
    %668 = vector.broadcast %667 : f32 to vector<8x8xf32>
    %669 = arith.mulf %121, %668 : vector<8x8xf32>
    %670 = arith.addf %666, %669 : vector<8x8xf32>
    %c82 = arith.constant 82 : index
    %671 = memref.load %arg3[%c82] : memref<128xf32, #tpu.memory_space<smem>>
    %672 = vector.broadcast %671 : f32 to vector<8x8xf32>
    %673 = arith.mulf %182, %672 : vector<8x8xf32>
    %674 = arith.addf %670, %673 : vector<8x8xf32>
    %c83 = arith.constant 83 : index
    %675 = memref.load %arg3[%c83] : memref<128xf32, #tpu.memory_space<smem>>
    %676 = vector.broadcast %675 : f32 to vector<8x8xf32>
    %677 = arith.mulf %243, %676 : vector<8x8xf32>
    %678 = arith.addf %674, %677 : vector<8x8xf32>
    %c20_235 = arith.constant 20 : index
    %679 = memref.load %arg4[%c20_235] : memref<32xf32, #tpu.memory_space<smem>>
    %680 = vector.broadcast %679 : f32 to vector<8x8xf32>
    %681 = arith.addf %678, %680 : vector<8x8xf32>
    %c20_236 = arith.constant 20 : index
    %c0_237 = arith.constant 0 : index
    %c0_238 = arith.constant 0 : index
    %682 = vector.load %arg5[%c20_236, %c0_237, %c0_238] : memref<64x8x8xf32, #tpu.memory_space<vmem>>, vector<1x8x8xf32>
    %683 = vector.shape_cast %682 : vector<1x8x8xf32> to vector<8x8xf32>
    %684 = vector.shape_cast %681 : vector<8x8xf32> to vector<1x8x8xf32>
    tpu.vector_store %arg5[%c20_236, %c0_237, %c0_238], %684 {strides = array<i32>} : memref<64x8x8xf32, #tpu.memory_space<vmem>>, vector<1x8x8xf32>,
    %c84 = arith.constant 84 : index
    %685 = memref.load %arg3[%c84] : memref<128xf32, #tpu.memory_space<smem>>
    %686 = vector.broadcast %685 : f32 to vector<8x8xf32>
    %687 = arith.mulf %60, %686 : vector<8x8xf32>
    %c85 = arith.constant 85 : index
    %688 = memref.load %arg3[%c85] : memref<128xf32, #tpu.memory_space<smem>>
    %689 = vector.broadcast %688 : f32 to vector<8x8xf32>
    %690 = arith.mulf %121, %689 : vector<8x8xf32>
    %691 = arith.addf %687, %690 : vector<8x8xf32>
    %c86 = arith.constant 86 : index
    %692 = memref.load %arg3[%c86] : memref<128xf32, #tpu.memory_space<smem>>
    %693 = vector.broadcast %692 : f32 to vector<8x8xf32>
    %694 = arith.mulf %182, %693 : vector<8x8xf32>
    %695 = arith.addf %691, %694 : vector<8x8xf32>
    %c87 = arith.constant 87 : index
    %696 = memref.load %arg3[%c87] : memref<128xf32, #tpu.memory_space<smem>>
    %697 = vector.broadcast %696 : f32 to vector<8x8xf32>
    %698 = arith.mulf %243, %697 : vector<8x8xf32>
    %699 = arith.addf %695, %698 : vector<8x8xf32>
    %c21_239 = arith.constant 21 : index
    %700 = memref.load %arg4[%c21_239] : memref<32xf32, #tpu.memory_space<smem>>
    %701 = vector.broadcast %700 : f32 to vector<8x8xf32>
    %702 = arith.addf %699, %701 : vector<8x8xf32>
    %c21_240 = arith.constant 21 : index
    %c0_241 = arith.constant 0 : index
    %c0_242 = arith.constant 0 : index
    %703 = vector.load %arg5[%c21_240, %c0_241, %c0_242] : memref<64x8x8xf32, #tpu.memory_space<vmem>>, vector<1x8x8xf32>
    %704 = vector.shape_cast %703 : vector<1x8x8xf32> to vector<8x8xf32>
    %705 = vector.shape_cast %702 : vector<8x8xf32> to vector<1x8x8xf32>
    tpu.vector_store %arg5[%c21_240, %c0_241, %c0_242], %705 {strides = array<i32>} : memref<64x8x8xf32, #tpu.memory_space<vmem>>, vector<1x8x8xf32>,
    %c88 = arith.constant 88 : index
    %706 = memref.load %arg3[%c88] : memref<128xf32, #tpu.memory_space<smem>>
    %707 = vector.broadcast %706 : f32 to vector<8x8xf32>
    %708 = arith.mulf %60, %707 : vector<8x8xf32>
    %c89 = arith.constant 89 : index
    %709 = memref.load %arg3[%c89] : memref<128xf32, #tpu.memory_space<smem>>
    %710 = vector.broadcast %709 : f32 to vector<8x8xf32>
    %711 = arith.mulf %121, %710 : vector<8x8xf32>
    %712 = arith.addf %708, %711 : vector<8x8xf32>
    %c90 = arith.constant 90 : index
    %713 = memref.load %arg3[%c90] : memref<128xf32, #tpu.memory_space<smem>>
    %714 = vector.broadcast %713 : f32 to vector<8x8xf32>
    %715 = arith.mulf %182, %714 : vector<8x8xf32>
    %716 = arith.addf %712, %715 : vector<8x8xf32>
    %c91 = arith.constant 91 : index
    %717 = memref.load %arg3[%c91] : memref<128xf32, #tpu.memory_space<smem>>
    %718 = vector.broadcast %717 : f32 to vector<8x8xf32>
    %719 = arith.mulf %243, %718 : vector<8x8xf32>
    %720 = arith.addf %716, %719 : vector<8x8xf32>
    %c22_243 = arith.constant 22 : index
    %721 = memref.load %arg4[%c22_243] : memref<32xf32, #tpu.memory_space<smem>>
    %722 = vector.broadcast %721 : f32 to vector<8x8xf32>
    %723 = arith.addf %720, %722 : vector<8x8xf32>
    %c22_244 = arith.constant 22 : index
    %c0_245 = arith.constant 0 : index
    %c0_246 = arith.constant 0 : index
    %724 = vector.load %arg5[%c22_244, %c0_245, %c0_246] : memref<64x8x8xf32, #tpu.memory_space<vmem>>, vector<1x8x8xf32>
    %725 = vector.shape_cast %724 : vector<1x8x8xf32> to vector<8x8xf32>
    %726 = vector.shape_cast %723 : vector<8x8xf32> to vector<1x8x8xf32>
    tpu.vector_store %arg5[%c22_244, %c0_245, %c0_246], %726 {strides = array<i32>} : memref<64x8x8xf32, #tpu.memory_space<vmem>>, vector<1x8x8xf32>,
    %c92 = arith.constant 92 : index
    %727 = memref.load %arg3[%c92] : memref<128xf32, #tpu.memory_space<smem>>
    %728 = vector.broadcast %727 : f32 to vector<8x8xf32>
    %729 = arith.mulf %60, %728 : vector<8x8xf32>
    %c93 = arith.constant 93 : index
    %730 = memref.load %arg3[%c93] : memref<128xf32, #tpu.memory_space<smem>>
    %731 = vector.broadcast %730 : f32 to vector<8x8xf32>
    %732 = arith.mulf %121, %731 : vector<8x8xf32>
    %733 = arith.addf %729, %732 : vector<8x8xf32>
    %c94 = arith.constant 94 : index
    %734 = memref.load %arg3[%c94] : memref<128xf32, #tpu.memory_space<smem>>
    %735 = vector.broadcast %734 : f32 to vector<8x8xf32>
    %736 = arith.mulf %182, %735 : vector<8x8xf32>
    %737 = arith.addf %733, %736 : vector<8x8xf32>
    %c95 = arith.constant 95 : index
    %738 = memref.load %arg3[%c95] : memref<128xf32, #tpu.memory_space<smem>>
    %739 = vector.broadcast %738 : f32 to vector<8x8xf32>
    %740 = arith.mulf %243, %739 : vector<8x8xf32>
    %741 = arith.addf %737, %740 : vector<8x8xf32>
    %c23_247 = arith.constant 23 : index
    %742 = memref.load %arg4[%c23_247] : memref<32xf32, #tpu.memory_space<smem>>
    %743 = vector.broadcast %742 : f32 to vector<8x8xf32>
    %744 = arith.addf %741, %743 : vector<8x8xf32>
    %c23_248 = arith.constant 23 : index
    %c0_249 = arith.constant 0 : index
    %c0_250 = arith.constant 0 : index
    %745 = vector.load %arg5[%c23_248, %c0_249, %c0_250] : memref<64x8x8xf32, #tpu.memory_space<vmem>>, vector<1x8x8xf32>
    %746 = vector.shape_cast %745 : vector<1x8x8xf32> to vector<8x8xf32>
    %747 = vector.shape_cast %744 : vector<8x8xf32> to vector<1x8x8xf32>
    tpu.vector_store %arg5[%c23_248, %c0_249, %c0_250], %747 {strides = array<i32>} : memref<64x8x8xf32, #tpu.memory_space<vmem>>, vector<1x8x8xf32>,
    %c96 = arith.constant 96 : index
    %748 = memref.load %arg3[%c96] : memref<128xf32, #tpu.memory_space<smem>>
    %749 = vector.broadcast %748 : f32 to vector<8x8xf32>
    %750 = arith.mulf %60, %749 : vector<8x8xf32>
    %c97 = arith.constant 97 : index
    %751 = memref.load %arg3[%c97] : memref<128xf32, #tpu.memory_space<smem>>
    %752 = vector.broadcast %751 : f32 to vector<8x8xf32>
    %753 = arith.mulf %121, %752 : vector<8x8xf32>
    %754 = arith.addf %750, %753 : vector<8x8xf32>
    %c98 = arith.constant 98 : index
    %755 = memref.load %arg3[%c98] : memref<128xf32, #tpu.memory_space<smem>>
    %756 = vector.broadcast %755 : f32 to vector<8x8xf32>
    %757 = arith.mulf %182, %756 : vector<8x8xf32>
    %758 = arith.addf %754, %757 : vector<8x8xf32>
    %c99 = arith.constant 99 : index
    %759 = memref.load %arg3[%c99] : memref<128xf32, #tpu.memory_space<smem>>
    %760 = vector.broadcast %759 : f32 to vector<8x8xf32>
    %761 = arith.mulf %243, %760 : vector<8x8xf32>
    %762 = arith.addf %758, %761 : vector<8x8xf32>
    %c24_251 = arith.constant 24 : index
    %763 = memref.load %arg4[%c24_251] : memref<32xf32, #tpu.memory_space<smem>>
    %764 = vector.broadcast %763 : f32 to vector<8x8xf32>
    %765 = arith.addf %762, %764 : vector<8x8xf32>
    %c24_252 = arith.constant 24 : index
    %c0_253 = arith.constant 0 : index
    %c0_254 = arith.constant 0 : index
    %766 = vector.load %arg5[%c24_252, %c0_253, %c0_254] : memref<64x8x8xf32, #tpu.memory_space<vmem>>, vector<1x8x8xf32>
    %767 = vector.shape_cast %766 : vector<1x8x8xf32> to vector<8x8xf32>
    %768 = vector.shape_cast %765 : vector<8x8xf32> to vector<1x8x8xf32>
    tpu.vector_store %arg5[%c24_252, %c0_253, %c0_254], %768 {strides = array<i32>} : memref<64x8x8xf32, #tpu.memory_space<vmem>>, vector<1x8x8xf32>,
    %c100 = arith.constant 100 : index
    %769 = memref.load %arg3[%c100] : memref<128xf32, #tpu.memory_space<smem>>
    %770 = vector.broadcast %769 : f32 to vector<8x8xf32>
    %771 = arith.mulf %60, %770 : vector<8x8xf32>
    %c101 = arith.constant 101 : index
    %772 = memref.load %arg3[%c101] : memref<128xf32, #tpu.memory_space<smem>>
    %773 = vector.broadcast %772 : f32 to vector<8x8xf32>
    %774 = arith.mulf %121, %773 : vector<8x8xf32>
    %775 = arith.addf %771, %774 : vector<8x8xf32>
    %c102 = arith.constant 102 : index
    %776 = memref.load %arg3[%c102] : memref<128xf32, #tpu.memory_space<smem>>
    %777 = vector.broadcast %776 : f32 to vector<8x8xf32>
    %778 = arith.mulf %182, %777 : vector<8x8xf32>
    %779 = arith.addf %775, %778 : vector<8x8xf32>
    %c103 = arith.constant 103 : index
    %780 = memref.load %arg3[%c103] : memref<128xf32, #tpu.memory_space<smem>>
    %781 = vector.broadcast %780 : f32 to vector<8x8xf32>
    %782 = arith.mulf %243, %781 : vector<8x8xf32>
    %783 = arith.addf %779, %782 : vector<8x8xf32>
    %c25_255 = arith.constant 25 : index
    %784 = memref.load %arg4[%c25_255] : memref<32xf32, #tpu.memory_space<smem>>
    %785 = vector.broadcast %784 : f32 to vector<8x8xf32>
    %786 = arith.addf %783, %785 : vector<8x8xf32>
    %c25_256 = arith.constant 25 : index
    %c0_257 = arith.constant 0 : index
    %c0_258 = arith.constant 0 : index
    %787 = vector.load %arg5[%c25_256, %c0_257, %c0_258] : memref<64x8x8xf32, #tpu.memory_space<vmem>>, vector<1x8x8xf32>
    %788 = vector.shape_cast %787 : vector<1x8x8xf32> to vector<8x8xf32>
    %789 = vector.shape_cast %786 : vector<8x8xf32> to vector<1x8x8xf32>
    tpu.vector_store %arg5[%c25_256, %c0_257, %c0_258], %789 {strides = array<i32>} : memref<64x8x8xf32, #tpu.memory_space<vmem>>, vector<1x8x8xf32>,
    %c104 = arith.constant 104 : index
    %790 = memref.load %arg3[%c104] : memref<128xf32, #tpu.memory_space<smem>>
    %791 = vector.broadcast %790 : f32 to vector<8x8xf32>
    %792 = arith.mulf %60, %791 : vector<8x8xf32>
    %c105 = arith.constant 105 : index
    %793 = memref.load %arg3[%c105] : memref<128xf32, #tpu.memory_space<smem>>
    %794 = vector.broadcast %793 : f32 to vector<8x8xf32>
    %795 = arith.mulf %121, %794 : vector<8x8xf32>
    %796 = arith.addf %792, %795 : vector<8x8xf32>
    %c106 = arith.constant 106 : index
    %797 = memref.load %arg3[%c106] : memref<128xf32, #tpu.memory_space<smem>>
    %798 = vector.broadcast %797 : f32 to vector<8x8xf32>
    %799 = arith.mulf %182, %798 : vector<8x8xf32>
    %800 = arith.addf %796, %799 : vector<8x8xf32>
    %c107 = arith.constant 107 : index
    %801 = memref.load %arg3[%c107] : memref<128xf32, #tpu.memory_space<smem>>
    %802 = vector.broadcast %801 : f32 to vector<8x8xf32>
    %803 = arith.mulf %243, %802 : vector<8x8xf32>
    %804 = arith.addf %800, %803 : vector<8x8xf32>
    %c26_259 = arith.constant 26 : index
    %805 = memref.load %arg4[%c26_259] : memref<32xf32, #tpu.memory_space<smem>>
    %806 = vector.broadcast %805 : f32 to vector<8x8xf32>
    %807 = arith.addf %804, %806 : vector<8x8xf32>
    %c26_260 = arith.constant 26 : index
    %c0_261 = arith.constant 0 : index
    %c0_262 = arith.constant 0 : index
    %808 = vector.load %arg5[%c26_260, %c0_261, %c0_262] : memref<64x8x8xf32, #tpu.memory_space<vmem>>, vector<1x8x8xf32>
    %809 = vector.shape_cast %808 : vector<1x8x8xf32> to vector<8x8xf32>
    %810 = vector.shape_cast %807 : vector<8x8xf32> to vector<1x8x8xf32>
    tpu.vector_store %arg5[%c26_260, %c0_261, %c0_262], %810 {strides = array<i32>} : memref<64x8x8xf32, #tpu.memory_space<vmem>>, vector<1x8x8xf32>,
    %c108 = arith.constant 108 : index
    %811 = memref.load %arg3[%c108] : memref<128xf32, #tpu.memory_space<smem>>
    %812 = vector.broadcast %811 : f32 to vector<8x8xf32>
    %813 = arith.mulf %60, %812 : vector<8x8xf32>
    %c109 = arith.constant 109 : index
    %814 = memref.load %arg3[%c109] : memref<128xf32, #tpu.memory_space<smem>>
    %815 = vector.broadcast %814 : f32 to vector<8x8xf32>
    %816 = arith.mulf %121, %815 : vector<8x8xf32>
    %817 = arith.addf %813, %816 : vector<8x8xf32>
    %c110 = arith.constant 110 : index
    %818 = memref.load %arg3[%c110] : memref<128xf32, #tpu.memory_space<smem>>
    %819 = vector.broadcast %818 : f32 to vector<8x8xf32>
    %820 = arith.mulf %182, %819 : vector<8x8xf32>
    %821 = arith.addf %817, %820 : vector<8x8xf32>
    %c111 = arith.constant 111 : index
    %822 = memref.load %arg3[%c111] : memref<128xf32, #tpu.memory_space<smem>>
    %823 = vector.broadcast %822 : f32 to vector<8x8xf32>
    %824 = arith.mulf %243, %823 : vector<8x8xf32>
    %825 = arith.addf %821, %824 : vector<8x8xf32>
    %c27_263 = arith.constant 27 : index
    %826 = memref.load %arg4[%c27_263] : memref<32xf32, #tpu.memory_space<smem>>
    %827 = vector.broadcast %826 : f32 to vector<8x8xf32>
    %828 = arith.addf %825, %827 : vector<8x8xf32>
    %c27_264 = arith.constant 27 : index
    %c0_265 = arith.constant 0 : index
    %c0_266 = arith.constant 0 : index
    %829 = vector.load %arg5[%c27_264, %c0_265, %c0_266] : memref<64x8x8xf32, #tpu.memory_space<vmem>>, vector<1x8x8xf32>
    %830 = vector.shape_cast %829 : vector<1x8x8xf32> to vector<8x8xf32>
    %831 = vector.shape_cast %828 : vector<8x8xf32> to vector<1x8x8xf32>
    tpu.vector_store %arg5[%c27_264, %c0_265, %c0_266], %831 {strides = array<i32>} : memref<64x8x8xf32, #tpu.memory_space<vmem>>, vector<1x8x8xf32>,
    %c112 = arith.constant 112 : index
    %832 = memref.load %arg3[%c112] : memref<128xf32, #tpu.memory_space<smem>>
    %833 = vector.broadcast %832 : f32 to vector<8x8xf32>
    %834 = arith.mulf %60, %833 : vector<8x8xf32>
    %c113 = arith.constant 113 : index
    %835 = memref.load %arg3[%c113] : memref<128xf32, #tpu.memory_space<smem>>
    %836 = vector.broadcast %835 : f32 to vector<8x8xf32>
    %837 = arith.mulf %121, %836 : vector<8x8xf32>
    %838 = arith.addf %834, %837 : vector<8x8xf32>
    %c114 = arith.constant 114 : index
    %839 = memref.load %arg3[%c114] : memref<128xf32, #tpu.memory_space<smem>>
    %840 = vector.broadcast %839 : f32 to vector<8x8xf32>
    %841 = arith.mulf %182, %840 : vector<8x8xf32>
    %842 = arith.addf %838, %841 : vector<8x8xf32>
    %c115 = arith.constant 115 : index
    %843 = memref.load %arg3[%c115] : memref<128xf32, #tpu.memory_space<smem>>
    %844 = vector.broadcast %843 : f32 to vector<8x8xf32>
    %845 = arith.mulf %243, %844 : vector<8x8xf32>
    %846 = arith.addf %842, %845 : vector<8x8xf32>
    %c28_267 = arith.constant 28 : index
    %847 = memref.load %arg4[%c28_267] : memref<32xf32, #tpu.memory_space<smem>>
    %848 = vector.broadcast %847 : f32 to vector<8x8xf32>
    %849 = arith.addf %846, %848 : vector<8x8xf32>
    %c28_268 = arith.constant 28 : index
    %c0_269 = arith.constant 0 : index
    %c0_270 = arith.constant 0 : index
    %850 = vector.load %arg5[%c28_268, %c0_269, %c0_270] : memref<64x8x8xf32, #tpu.memory_space<vmem>>, vector<1x8x8xf32>
    %851 = vector.shape_cast %850 : vector<1x8x8xf32> to vector<8x8xf32>
    %852 = vector.shape_cast %849 : vector<8x8xf32> to vector<1x8x8xf32>
    tpu.vector_store %arg5[%c28_268, %c0_269, %c0_270], %852 {strides = array<i32>} : memref<64x8x8xf32, #tpu.memory_space<vmem>>, vector<1x8x8xf32>,
    %c116 = arith.constant 116 : index
    %853 = memref.load %arg3[%c116] : memref<128xf32, #tpu.memory_space<smem>>
    %854 = vector.broadcast %853 : f32 to vector<8x8xf32>
    %855 = arith.mulf %60, %854 : vector<8x8xf32>
    %c117 = arith.constant 117 : index
    %856 = memref.load %arg3[%c117] : memref<128xf32, #tpu.memory_space<smem>>
    %857 = vector.broadcast %856 : f32 to vector<8x8xf32>
    %858 = arith.mulf %121, %857 : vector<8x8xf32>
    %859 = arith.addf %855, %858 : vector<8x8xf32>
    %c118 = arith.constant 118 : index
    %860 = memref.load %arg3[%c118] : memref<128xf32, #tpu.memory_space<smem>>
    %861 = vector.broadcast %860 : f32 to vector<8x8xf32>
    %862 = arith.mulf %182, %861 : vector<8x8xf32>
    %863 = arith.addf %859, %862 : vector<8x8xf32>
    %c119 = arith.constant 119 : index
    %864 = memref.load %arg3[%c119] : memref<128xf32, #tpu.memory_space<smem>>
    %865 = vector.broadcast %864 : f32 to vector<8x8xf32>
    %866 = arith.mulf %243, %865 : vector<8x8xf32>
    %867 = arith.addf %863, %866 : vector<8x8xf32>
    %c29_271 = arith.constant 29 : index
    %868 = memref.load %arg4[%c29_271] : memref<32xf32, #tpu.memory_space<smem>>
    %869 = vector.broadcast %868 : f32 to vector<8x8xf32>
    %870 = arith.addf %867, %869 : vector<8x8xf32>
    %c29_272 = arith.constant 29 : index
    %c0_273 = arith.constant 0 : index
    %c0_274 = arith.constant 0 : index
    %871 = vector.load %arg5[%c29_272, %c0_273, %c0_274] : memref<64x8x8xf32, #tpu.memory_space<vmem>>, vector<1x8x8xf32>
    %872 = vector.shape_cast %871 : vector<1x8x8xf32> to vector<8x8xf32>
    %873 = vector.shape_cast %870 : vector<8x8xf32> to vector<1x8x8xf32>
    tpu.vector_store %arg5[%c29_272, %c0_273, %c0_274], %873 {strides = array<i32>} : memref<64x8x8xf32, #tpu.memory_space<vmem>>, vector<1x8x8xf32>,
    %c120 = arith.constant 120 : index
    %874 = memref.load %arg3[%c120] : memref<128xf32, #tpu.memory_space<smem>>
    %875 = vector.broadcast %874 : f32 to vector<8x8xf32>
    %876 = arith.mulf %60, %875 : vector<8x8xf32>
    %c121 = arith.constant 121 : index
    %877 = memref.load %arg3[%c121] : memref<128xf32, #tpu.memory_space<smem>>
    %878 = vector.broadcast %877 : f32 to vector<8x8xf32>
    %879 = arith.mulf %121, %878 : vector<8x8xf32>
    %880 = arith.addf %876, %879 : vector<8x8xf32>
    %c122 = arith.constant 122 : index
    %881 = memref.load %arg3[%c122] : memref<128xf32, #tpu.memory_space<smem>>
    %882 = vector.broadcast %881 : f32 to vector<8x8xf32>
    %883 = arith.mulf %182, %882 : vector<8x8xf32>
    %884 = arith.addf %880, %883 : vector<8x8xf32>
    %c123 = arith.constant 123 : index
    %885 = memref.load %arg3[%c123] : memref<128xf32, #tpu.memory_space<smem>>
    %886 = vector.broadcast %885 : f32 to vector<8x8xf32>
    %887 = arith.mulf %243, %886 : vector<8x8xf32>
    %888 = arith.addf %884, %887 : vector<8x8xf32>
    %c30_275 = arith.constant 30 : index
    %889 = memref.load %arg4[%c30_275] : memref<32xf32, #tpu.memory_space<smem>>
    %890 = vector.broadcast %889 : f32 to vector<8x8xf32>
    %891 = arith.addf %888, %890 : vector<8x8xf32>
    %c30_276 = arith.constant 30 : index
    %c0_277 = arith.constant 0 : index
    %c0_278 = arith.constant 0 : index
    %892 = vector.load %arg5[%c30_276, %c0_277, %c0_278] : memref<64x8x8xf32, #tpu.memory_space<vmem>>, vector<1x8x8xf32>
    %893 = vector.shape_cast %892 : vector<1x8x8xf32> to vector<8x8xf32>
    %894 = vector.shape_cast %891 : vector<8x8xf32> to vector<1x8x8xf32>
    tpu.vector_store %arg5[%c30_276, %c0_277, %c0_278], %894 {strides = array<i32>} : memref<64x8x8xf32, #tpu.memory_space<vmem>>, vector<1x8x8xf32>,
    %c124 = arith.constant 124 : index
    %895 = memref.load %arg3[%c124] : memref<128xf32, #tpu.memory_space<smem>>
    %896 = vector.broadcast %895 : f32 to vector<8x8xf32>
    %897 = arith.mulf %60, %896 : vector<8x8xf32>
    %c125 = arith.constant 125 : index
    %898 = memref.load %arg3[%c125] : memref<128xf32, #tpu.memory_space<smem>>
    %899 = vector.broadcast %898 : f32 to vector<8x8xf32>
    %900 = arith.mulf %121, %899 : vector<8x8xf32>
    %901 = arith.addf %897, %900 : vector<8x8xf32>
    %c126 = arith.constant 126 : index
    %902 = memref.load %arg3[%c126] : memref<128xf32, #tpu.memory_space<smem>>
    %903 = vector.broadcast %902 : f32 to vector<8x8xf32>
    %904 = arith.mulf %182, %903 : vector<8x8xf32>
    %905 = arith.addf %901, %904 : vector<8x8xf32>
    %c127 = arith.constant 127 : index
    %906 = memref.load %arg3[%c127] : memref<128xf32, #tpu.memory_space<smem>>
    %907 = vector.broadcast %906 : f32 to vector<8x8xf32>
    %908 = arith.mulf %243, %907 : vector<8x8xf32>
    %909 = arith.addf %905, %908 : vector<8x8xf32>
    %c31_279 = arith.constant 31 : index
    %910 = memref.load %arg4[%c31_279] : memref<32xf32, #tpu.memory_space<smem>>
    %911 = vector.broadcast %910 : f32 to vector<8x8xf32>
    %912 = arith.addf %909, %911 : vector<8x8xf32>
    %c31_280 = arith.constant 31 : index
    %c0_281 = arith.constant 0 : index
    %c0_282 = arith.constant 0 : index
    %913 = vector.load %arg5[%c31_280, %c0_281, %c0_282] : memref<64x8x8xf32, #tpu.memory_space<vmem>>, vector<1x8x8xf32>
    %914 = vector.shape_cast %913 : vector<1x8x8xf32> to vector<8x8xf32>
    %915 = vector.shape_cast %912 : vector<8x8xf32> to vector<1x8x8xf32>
    tpu.vector_store %arg5[%c31_280, %c0_281, %c0_282], %915 {strides = array<i32>} : memref<64x8x8xf32, #tpu.memory_space<vmem>>, vector<1x8x8xf32>,
    %c16_283 = arith.constant 16 : index
    %c0_284 = arith.constant 0 : index
    %c0_285 = arith.constant 0 : index
    %916 = vector.load %arg0[%c16_283, %c0_284, %c0_285] : memref<32x9x9xf32, #tpu.memory_space<vmem>>, vector<1x8x8xf32>
    %917 = vector.shape_cast %916 : vector<1x8x8xf32> to vector<8x8xf32>
    %c0_286 = arith.constant 0 : index
    %918 = memref.load %arg1[%c0_286] : memref<36xf32, #tpu.memory_space<smem>>
    %919 = vector.broadcast %918 : f32 to vector<8x8xf32>
    %920 = arith.mulf %917, %919 : vector<8x8xf32>
    %c17_287 = arith.constant 17 : index
    %c0_288 = arith.constant 0 : index
    %c0_289 = arith.constant 0 : index
    %921 = vector.load %arg0[%c17_287, %c0_288, %c0_289] : memref<32x9x9xf32, #tpu.memory_space<vmem>>, vector<1x8x8xf32>
    %922 = vector.shape_cast %921 : vector<1x8x8xf32> to vector<8x8xf32>
    %c4_290 = arith.constant 4 : index
    %923 = memref.load %arg1[%c4_290] : memref<36xf32, #tpu.memory_space<smem>>
    %924 = vector.broadcast %923 : f32 to vector<8x8xf32>
    %925 = arith.mulf %922, %924 : vector<8x8xf32>
    %c16_291 = arith.constant 16 : index
    %c0_292 = arith.constant 0 : index
    %c1_293 = arith.constant 1 : index
    %926 = vector.load %arg0[%c16_291, %c0_292, %c1_293] : memref<32x9x9xf32, #tpu.memory_space<vmem>>, vector<1x8x8xf32>
    %927 = vector.shape_cast %926 : vector<1x8x8xf32> to vector<8x8xf32>
    %c8_294 = arith.constant 8 : index
    %928 = memref.load %arg1[%c8_294] : memref<36xf32, #tpu.memory_space<smem>>
    %929 = vector.broadcast %928 : f32 to vector<8x8xf32>
    %930 = arith.mulf %927, %929 : vector<8x8xf32>
    %c18_295 = arith.constant 18 : index
    %c0_296 = arith.constant 0 : index
    %c0_297 = arith.constant 0 : index
    %931 = vector.load %arg0[%c18_295, %c0_296, %c0_297] : memref<32x9x9xf32, #tpu.memory_space<vmem>>, vector<1x8x8xf32>
    %932 = vector.shape_cast %931 : vector<1x8x8xf32> to vector<8x8xf32>
    %c12_298 = arith.constant 12 : index
    %933 = memref.load %arg1[%c12_298] : memref<36xf32, #tpu.memory_space<smem>>
    %934 = vector.broadcast %933 : f32 to vector<8x8xf32>
    %935 = arith.mulf %932, %934 : vector<8x8xf32>
    %c19_299 = arith.constant 19 : index
    %c0_300 = arith.constant 0 : index
    %c0_301 = arith.constant 0 : index
    %936 = vector.load %arg0[%c19_299, %c0_300, %c0_301] : memref<32x9x9xf32, #tpu.memory_space<vmem>>, vector<1x8x8xf32>
    %937 = vector.shape_cast %936 : vector<1x8x8xf32> to vector<8x8xf32>
    %c16_302 = arith.constant 16 : index
    %938 = memref.load %arg1[%c16_302] : memref<36xf32, #tpu.memory_space<smem>>
    %939 = vector.broadcast %938 : f32 to vector<8x8xf32>
    %940 = arith.mulf %937, %939 : vector<8x8xf32>
    %c18_303 = arith.constant 18 : index
    %c0_304 = arith.constant 0 : index
    %c1_305 = arith.constant 1 : index
    %941 = vector.load %arg0[%c18_303, %c0_304, %c1_305] : memref<32x9x9xf32, #tpu.memory_space<vmem>>, vector<1x8x8xf32>
    %942 = vector.shape_cast %941 : vector<1x8x8xf32> to vector<8x8xf32>
    %c20_306 = arith.constant 20 : index
    %943 = memref.load %arg1[%c20_306] : memref<36xf32, #tpu.memory_space<smem>>
    %944 = vector.broadcast %943 : f32 to vector<8x8xf32>
    %945 = arith.mulf %942, %944 : vector<8x8xf32>
    %c16_307 = arith.constant 16 : index
    %c1_308 = arith.constant 1 : index
    %c0_309 = arith.constant 0 : index
    %946 = vector.load %arg0[%c16_307, %c1_308, %c0_309] : memref<32x9x9xf32, #tpu.memory_space<vmem>>, vector<1x8x8xf32>
    %947 = vector.shape_cast %946 : vector<1x8x8xf32> to vector<8x8xf32>
    %c24_310 = arith.constant 24 : index
    %948 = memref.load %arg1[%c24_310] : memref<36xf32, #tpu.memory_space<smem>>
    %949 = vector.broadcast %948 : f32 to vector<8x8xf32>
    %950 = arith.mulf %947, %949 : vector<8x8xf32>
    %c17_311 = arith.constant 17 : index
    %c1_312 = arith.constant 1 : index
    %c0_313 = arith.constant 0 : index
    %951 = vector.load %arg0[%c17_311, %c1_312, %c0_313] : memref<32x9x9xf32, #tpu.memory_space<vmem>>, vector<1x8x8xf32>
    %952 = vector.shape_cast %951 : vector<1x8x8xf32> to vector<8x8xf32>
    %c28_314 = arith.constant 28 : index
    %953 = memref.load %arg1[%c28_314] : memref<36xf32, #tpu.memory_space<smem>>
    %954 = vector.broadcast %953 : f32 to vector<8x8xf32>
    %955 = arith.mulf %952, %954 : vector<8x8xf32>
    %c16_315 = arith.constant 16 : index
    %c1_316 = arith.constant 1 : index
    %c1_317 = arith.constant 1 : index
    %956 = vector.load %arg0[%c16_315, %c1_316, %c1_317] : memref<32x9x9xf32, #tpu.memory_space<vmem>>, vector<1x8x8xf32>
    %957 = vector.shape_cast %956 : vector<1x8x8xf32> to vector<8x8xf32>
    %c32_318 = arith.constant 32 : index
    %958 = memref.load %arg1[%c32_318] : memref<36xf32, #tpu.memory_space<smem>>
    %959 = vector.broadcast %958 : f32 to vector<8x8xf32>
    %960 = arith.mulf %957, %959 : vector<8x8xf32>
    %961 = arith.addf %920, %925 : vector<8x8xf32>
    %962 = arith.addf %930, %935 : vector<8x8xf32>
    %963 = arith.addf %940, %945 : vector<8x8xf32>
    %964 = arith.addf %950, %955 : vector<8x8xf32>
    %965 = arith.addf %961, %962 : vector<8x8xf32>
    %966 = arith.addf %963, %964 : vector<8x8xf32>
    %967 = arith.addf %965, %966 : vector<8x8xf32>
    %968 = arith.addf %967, %960 : vector<8x8xf32>
    %c0_319 = arith.constant 0 : index
    %969 = memref.load %arg2[%c0_319] : memref<4xf32, #tpu.memory_space<smem>>
    %970 = vector.broadcast %969 : f32 to vector<8x8xf32>
    %971 = arith.addf %968, %970 : vector<8x8xf32>
    %cst_320 = arith.constant 0.000000e+00 : f32
    %972 = vector.broadcast %cst_320 : f32 to vector<8x8xf32>
    %973 = arith.cmpf oge, %971, %972 : vector<8x8xf32>
    %cst_321 = arith.constant 0.00999999977 : f32
    %974 = vector.broadcast %cst_321 : f32 to vector<8x8xf32>
    %975 = arith.mulf %974, %971 : vector<8x8xf32>
    %976 = arith.select %973, %971, %975 : vector<8x8xi1>, vector<8x8xf32>
    %c20_322 = arith.constant 20 : index
    %c0_323 = arith.constant 0 : index
    %c0_324 = arith.constant 0 : index
    %977 = vector.load %arg0[%c20_322, %c0_323, %c0_324] : memref<32x9x9xf32, #tpu.memory_space<vmem>>, vector<1x8x8xf32>
    %978 = vector.shape_cast %977 : vector<1x8x8xf32> to vector<8x8xf32>
    %c1_325 = arith.constant 1 : index
    %979 = memref.load %arg1[%c1_325] : memref<36xf32, #tpu.memory_space<smem>>
    %980 = vector.broadcast %979 : f32 to vector<8x8xf32>
    %981 = arith.mulf %978, %980 : vector<8x8xf32>
    %c21_326 = arith.constant 21 : index
    %c0_327 = arith.constant 0 : index
    %c0_328 = arith.constant 0 : index
    %982 = vector.load %arg0[%c21_326, %c0_327, %c0_328] : memref<32x9x9xf32, #tpu.memory_space<vmem>>, vector<1x8x8xf32>
    %983 = vector.shape_cast %982 : vector<1x8x8xf32> to vector<8x8xf32>
    %c5_329 = arith.constant 5 : index
    %984 = memref.load %arg1[%c5_329] : memref<36xf32, #tpu.memory_space<smem>>
    %985 = vector.broadcast %984 : f32 to vector<8x8xf32>
    %986 = arith.mulf %983, %985 : vector<8x8xf32>
    %c20_330 = arith.constant 20 : index
    %c0_331 = arith.constant 0 : index
    %c1_332 = arith.constant 1 : index
    %987 = vector.load %arg0[%c20_330, %c0_331, %c1_332] : memref<32x9x9xf32, #tpu.memory_space<vmem>>, vector<1x8x8xf32>
    %988 = vector.shape_cast %987 : vector<1x8x8xf32> to vector<8x8xf32>
    %c9_333 = arith.constant 9 : index
    %989 = memref.load %arg1[%c9_333] : memref<36xf32, #tpu.memory_space<smem>>
    %990 = vector.broadcast %989 : f32 to vector<8x8xf32>
    %991 = arith.mulf %988, %990 : vector<8x8xf32>
    %c22_334 = arith.constant 22 : index
    %c0_335 = arith.constant 0 : index
    %c0_336 = arith.constant 0 : index
    %992 = vector.load %arg0[%c22_334, %c0_335, %c0_336] : memref<32x9x9xf32, #tpu.memory_space<vmem>>, vector<1x8x8xf32>
    %993 = vector.shape_cast %992 : vector<1x8x8xf32> to vector<8x8xf32>
    %c13_337 = arith.constant 13 : index
    %994 = memref.load %arg1[%c13_337] : memref<36xf32, #tpu.memory_space<smem>>
    %995 = vector.broadcast %994 : f32 to vector<8x8xf32>
    %996 = arith.mulf %993, %995 : vector<8x8xf32>
    %c23_338 = arith.constant 23 : index
    %c0_339 = arith.constant 0 : index
    %c0_340 = arith.constant 0 : index
    %997 = vector.load %arg0[%c23_338, %c0_339, %c0_340] : memref<32x9x9xf32, #tpu.memory_space<vmem>>, vector<1x8x8xf32>
    %998 = vector.shape_cast %997 : vector<1x8x8xf32> to vector<8x8xf32>
    %c17_341 = arith.constant 17 : index
    %999 = memref.load %arg1[%c17_341] : memref<36xf32, #tpu.memory_space<smem>>
    %1000 = vector.broadcast %999 : f32 to vector<8x8xf32>
    %1001 = arith.mulf %998, %1000 : vector<8x8xf32>
    %c22_342 = arith.constant 22 : index
    %c0_343 = arith.constant 0 : index
    %c1_344 = arith.constant 1 : index
    %1002 = vector.load %arg0[%c22_342, %c0_343, %c1_344] : memref<32x9x9xf32, #tpu.memory_space<vmem>>, vector<1x8x8xf32>
    %1003 = vector.shape_cast %1002 : vector<1x8x8xf32> to vector<8x8xf32>
    %c21_345 = arith.constant 21 : index
    %1004 = memref.load %arg1[%c21_345] : memref<36xf32, #tpu.memory_space<smem>>
    %1005 = vector.broadcast %1004 : f32 to vector<8x8xf32>
    %1006 = arith.mulf %1003, %1005 : vector<8x8xf32>
    %c20_346 = arith.constant 20 : index
    %c1_347 = arith.constant 1 : index
    %c0_348 = arith.constant 0 : index
    %1007 = vector.load %arg0[%c20_346, %c1_347, %c0_348] : memref<32x9x9xf32, #tpu.memory_space<vmem>>, vector<1x8x8xf32>
    %1008 = vector.shape_cast %1007 : vector<1x8x8xf32> to vector<8x8xf32>
    %c25_349 = arith.constant 25 : index
    %1009 = memref.load %arg1[%c25_349] : memref<36xf32, #tpu.memory_space<smem>>
    %1010 = vector.broadcast %1009 : f32 to vector<8x8xf32>
    %1011 = arith.mulf %1008, %1010 : vector<8x8xf32>
    %c21_350 = arith.constant 21 : index
    %c1_351 = arith.constant 1 : index
    %c0_352 = arith.constant 0 : index
    %1012 = vector.load %arg0[%c21_350, %c1_351, %c0_352] : memref<32x9x9xf32, #tpu.memory_space<vmem>>, vector<1x8x8xf32>
    %1013 = vector.shape_cast %1012 : vector<1x8x8xf32> to vector<8x8xf32>
    %c29_353 = arith.constant 29 : index
    %1014 = memref.load %arg1[%c29_353] : memref<36xf32, #tpu.memory_space<smem>>
    %1015 = vector.broadcast %1014 : f32 to vector<8x8xf32>
    %1016 = arith.mulf %1013, %1015 : vector<8x8xf32>
    %c20_354 = arith.constant 20 : index
    %c1_355 = arith.constant 1 : index
    %c1_356 = arith.constant 1 : index
    %1017 = vector.load %arg0[%c20_354, %c1_355, %c1_356] : memref<32x9x9xf32, #tpu.memory_space<vmem>>, vector<1x8x8xf32>
    %1018 = vector.shape_cast %1017 : vector<1x8x8xf32> to vector<8x8xf32>
    %c33_357 = arith.constant 33 : index
    %1019 = memref.load %arg1[%c33_357] : memref<36xf32, #tpu.memory_space<smem>>
    %1020 = vector.broadcast %1019 : f32 to vector<8x8xf32>
    %1021 = arith.mulf %1018, %1020 : vector<8x8xf32>
    %1022 = arith.addf %981, %986 : vector<8x8xf32>
    %1023 = arith.addf %991, %996 : vector<8x8xf32>
    %1024 = arith.addf %1001, %1006 : vector<8x8xf32>
    %1025 = arith.addf %1011, %1016 : vector<8x8xf32>
    %1026 = arith.addf %1022, %1023 : vector<8x8xf32>
    %1027 = arith.addf %1024, %1025 : vector<8x8xf32>
    %1028 = arith.addf %1026, %1027 : vector<8x8xf32>
    %1029 = arith.addf %1028, %1021 : vector<8x8xf32>
    %c1_358 = arith.constant 1 : index
    %1030 = memref.load %arg2[%c1_358] : memref<4xf32, #tpu.memory_space<smem>>
    %1031 = vector.broadcast %1030 : f32 to vector<8x8xf32>
    %1032 = arith.addf %1029, %1031 : vector<8x8xf32>
    %cst_359 = arith.constant 0.000000e+00 : f32
    %1033 = vector.broadcast %cst_359 : f32 to vector<8x8xf32>
    %1034 = arith.cmpf oge, %1032, %1033 : vector<8x8xf32>
    %cst_360 = arith.constant 0.00999999977 : f32
    %1035 = vector.broadcast %cst_360 : f32 to vector<8x8xf32>
    %1036 = arith.mulf %1035, %1032 : vector<8x8xf32>
    %1037 = arith.select %1034, %1032, %1036 : vector<8x8xi1>, vector<8x8xf32>
    %c24_361 = arith.constant 24 : index
    %c0_362 = arith.constant 0 : index
    %c0_363 = arith.constant 0 : index
    %1038 = vector.load %arg0[%c24_361, %c0_362, %c0_363] : memref<32x9x9xf32, #tpu.memory_space<vmem>>, vector<1x8x8xf32>
    %1039 = vector.shape_cast %1038 : vector<1x8x8xf32> to vector<8x8xf32>
    %c2_364 = arith.constant 2 : index
    %1040 = memref.load %arg1[%c2_364] : memref<36xf32, #tpu.memory_space<smem>>
    %1041 = vector.broadcast %1040 : f32 to vector<8x8xf32>
    %1042 = arith.mulf %1039, %1041 : vector<8x8xf32>
    %c25_365 = arith.constant 25 : index
    %c0_366 = arith.constant 0 : index
    %c0_367 = arith.constant 0 : index
    %1043 = vector.load %arg0[%c25_365, %c0_366, %c0_367] : memref<32x9x9xf32, #tpu.memory_space<vmem>>, vector<1x8x8xf32>
    %1044 = vector.shape_cast %1043 : vector<1x8x8xf32> to vector<8x8xf32>
    %c6_368 = arith.constant 6 : index
    %1045 = memref.load %arg1[%c6_368] : memref<36xf32, #tpu.memory_space<smem>>
    %1046 = vector.broadcast %1045 : f32 to vector<8x8xf32>
    %1047 = arith.mulf %1044, %1046 : vector<8x8xf32>
    %c24_369 = arith.constant 24 : index
    %c0_370 = arith.constant 0 : index
    %c1_371 = arith.constant 1 : index
    %1048 = vector.load %arg0[%c24_369, %c0_370, %c1_371] : memref<32x9x9xf32, #tpu.memory_space<vmem>>, vector<1x8x8xf32>
    %1049 = vector.shape_cast %1048 : vector<1x8x8xf32> to vector<8x8xf32>
    %c10_372 = arith.constant 10 : index
    %1050 = memref.load %arg1[%c10_372] : memref<36xf32, #tpu.memory_space<smem>>
    %1051 = vector.broadcast %1050 : f32 to vector<8x8xf32>
    %1052 = arith.mulf %1049, %1051 : vector<8x8xf32>
    %c26_373 = arith.constant 26 : index
    %c0_374 = arith.constant 0 : index
    %c0_375 = arith.constant 0 : index
    %1053 = vector.load %arg0[%c26_373, %c0_374, %c0_375] : memref<32x9x9xf32, #tpu.memory_space<vmem>>, vector<1x8x8xf32>
    %1054 = vector.shape_cast %1053 : vector<1x8x8xf32> to vector<8x8xf32>
    %c14_376 = arith.constant 14 : index
    %1055 = memref.load %arg1[%c14_376] : memref<36xf32, #tpu.memory_space<smem>>
    %1056 = vector.broadcast %1055 : f32 to vector<8x8xf32>
    %1057 = arith.mulf %1054, %1056 : vector<8x8xf32>
    %c27_377 = arith.constant 27 : index
    %c0_378 = arith.constant 0 : index
    %c0_379 = arith.constant 0 : index
    %1058 = vector.load %arg0[%c27_377, %c0_378, %c0_379] : memref<32x9x9xf32, #tpu.memory_space<vmem>>, vector<1x8x8xf32>
    %1059 = vector.shape_cast %1058 : vector<1x8x8xf32> to vector<8x8xf32>
    %c18_380 = arith.constant 18 : index
    %1060 = memref.load %arg1[%c18_380] : memref<36xf32, #tpu.memory_space<smem>>
    %1061 = vector.broadcast %1060 : f32 to vector<8x8xf32>
    %1062 = arith.mulf %1059, %1061 : vector<8x8xf32>
    %c26_381 = arith.constant 26 : index
    %c0_382 = arith.constant 0 : index
    %c1_383 = arith.constant 1 : index
    %1063 = vector.load %arg0[%c26_381, %c0_382, %c1_383] : memref<32x9x9xf32, #tpu.memory_space<vmem>>, vector<1x8x8xf32>
    %1064 = vector.shape_cast %1063 : vector<1x8x8xf32> to vector<8x8xf32>
    %c22_384 = arith.constant 22 : index
    %1065 = memref.load %arg1[%c22_384] : memref<36xf32, #tpu.memory_space<smem>>
    %1066 = vector.broadcast %1065 : f32 to vector<8x8xf32>
    %1067 = arith.mulf %1064, %1066 : vector<8x8xf32>
    %c24_385 = arith.constant 24 : index
    %c1_386 = arith.constant 1 : index
    %c0_387 = arith.constant 0 : index
    %1068 = vector.load %arg0[%c24_385, %c1_386, %c0_387] : memref<32x9x9xf32, #tpu.memory_space<vmem>>, vector<1x8x8xf32>
    %1069 = vector.shape_cast %1068 : vector<1x8x8xf32> to vector<8x8xf32>
    %c26_388 = arith.constant 26 : index
    %1070 = memref.load %arg1[%c26_388] : memref<36xf32, #tpu.memory_space<smem>>
    %1071 = vector.broadcast %1070 : f32 to vector<8x8xf32>
    %1072 = arith.mulf %1069, %1071 : vector<8x8xf32>
    %c25_389 = arith.constant 25 : index
    %c1_390 = arith.constant 1 : index
    %c0_391 = arith.constant 0 : index
    %1073 = vector.load %arg0[%c25_389, %c1_390, %c0_391] : memref<32x9x9xf32, #tpu.memory_space<vmem>>, vector<1x8x8xf32>
    %1074 = vector.shape_cast %1073 : vector<1x8x8xf32> to vector<8x8xf32>
    %c30_392 = arith.constant 30 : index
    %1075 = memref.load %arg1[%c30_392] : memref<36xf32, #tpu.memory_space<smem>>
    %1076 = vector.broadcast %1075 : f32 to vector<8x8xf32>
    %1077 = arith.mulf %1074, %1076 : vector<8x8xf32>
    %c24_393 = arith.constant 24 : index
    %c1_394 = arith.constant 1 : index
    %c1_395 = arith.constant 1 : index
    %1078 = vector.load %arg0[%c24_393, %c1_394, %c1_395] : memref<32x9x9xf32, #tpu.memory_space<vmem>>, vector<1x8x8xf32>
    %1079 = vector.shape_cast %1078 : vector<1x8x8xf32> to vector<8x8xf32>
    %c34_396 = arith.constant 34 : index
    %1080 = memref.load %arg1[%c34_396] : memref<36xf32, #tpu.memory_space<smem>>
    %1081 = vector.broadcast %1080 : f32 to vector<8x8xf32>
    %1082 = arith.mulf %1079, %1081 : vector<8x8xf32>
    %1083 = arith.addf %1042, %1047 : vector<8x8xf32>
    %1084 = arith.addf %1052, %1057 : vector<8x8xf32>
    %1085 = arith.addf %1062, %1067 : vector<8x8xf32>
    %1086 = arith.addf %1072, %1077 : vector<8x8xf32>
    %1087 = arith.addf %1083, %1084 : vector<8x8xf32>
    %1088 = arith.addf %1085, %1086 : vector<8x8xf32>
    %1089 = arith.addf %1087, %1088 : vector<8x8xf32>
    %1090 = arith.addf %1089, %1082 : vector<8x8xf32>
    %c2_397 = arith.constant 2 : index
    %1091 = memref.load %arg2[%c2_397] : memref<4xf32, #tpu.memory_space<smem>>
    %1092 = vector.broadcast %1091 : f32 to vector<8x8xf32>
    %1093 = arith.addf %1090, %1092 : vector<8x8xf32>
    %cst_398 = arith.constant 0.000000e+00 : f32
    %1094 = vector.broadcast %cst_398 : f32 to vector<8x8xf32>
    %1095 = arith.cmpf oge, %1093, %1094 : vector<8x8xf32>
    %cst_399 = arith.constant 0.00999999977 : f32
    %1096 = vector.broadcast %cst_399 : f32 to vector<8x8xf32>
    %1097 = arith.mulf %1096, %1093 : vector<8x8xf32>
    %1098 = arith.select %1095, %1093, %1097 : vector<8x8xi1>, vector<8x8xf32>
    %c28_400 = arith.constant 28 : index
    %c0_401 = arith.constant 0 : index
    %c0_402 = arith.constant 0 : index
    %1099 = vector.load %arg0[%c28_400, %c0_401, %c0_402] : memref<32x9x9xf32, #tpu.memory_space<vmem>>, vector<1x8x8xf32>
    %1100 = vector.shape_cast %1099 : vector<1x8x8xf32> to vector<8x8xf32>
    %c3_403 = arith.constant 3 : index
    %1101 = memref.load %arg1[%c3_403] : memref<36xf32, #tpu.memory_space<smem>>
    %1102 = vector.broadcast %1101 : f32 to vector<8x8xf32>
    %1103 = arith.mulf %1100, %1102 : vector<8x8xf32>
    %c29_404 = arith.constant 29 : index
    %c0_405 = arith.constant 0 : index
    %c0_406 = arith.constant 0 : index
    %1104 = vector.load %arg0[%c29_404, %c0_405, %c0_406] : memref<32x9x9xf32, #tpu.memory_space<vmem>>, vector<1x8x8xf32>
    %1105 = vector.shape_cast %1104 : vector<1x8x8xf32> to vector<8x8xf32>
    %c7_407 = arith.constant 7 : index
    %1106 = memref.load %arg1[%c7_407] : memref<36xf32, #tpu.memory_space<smem>>
    %1107 = vector.broadcast %1106 : f32 to vector<8x8xf32>
    %1108 = arith.mulf %1105, %1107 : vector<8x8xf32>
    %c28_408 = arith.constant 28 : index
    %c0_409 = arith.constant 0 : index
    %c1_410 = arith.constant 1 : index
    %1109 = vector.load %arg0[%c28_408, %c0_409, %c1_410] : memref<32x9x9xf32, #tpu.memory_space<vmem>>, vector<1x8x8xf32>
    %1110 = vector.shape_cast %1109 : vector<1x8x8xf32> to vector<8x8xf32>
    %c11_411 = arith.constant 11 : index
    %1111 = memref.load %arg1[%c11_411] : memref<36xf32, #tpu.memory_space<smem>>
    %1112 = vector.broadcast %1111 : f32 to vector<8x8xf32>
    %1113 = arith.mulf %1110, %1112 : vector<8x8xf32>
    %c30_412 = arith.constant 30 : index
    %c0_413 = arith.constant 0 : index
    %c0_414 = arith.constant 0 : index
    %1114 = vector.load %arg0[%c30_412, %c0_413, %c0_414] : memref<32x9x9xf32, #tpu.memory_space<vmem>>, vector<1x8x8xf32>
    %1115 = vector.shape_cast %1114 : vector<1x8x8xf32> to vector<8x8xf32>
    %c15_415 = arith.constant 15 : index
    %1116 = memref.load %arg1[%c15_415] : memref<36xf32, #tpu.memory_space<smem>>
    %1117 = vector.broadcast %1116 : f32 to vector<8x8xf32>
    %1118 = arith.mulf %1115, %1117 : vector<8x8xf32>
    %c31_416 = arith.constant 31 : index
    %c0_417 = arith.constant 0 : index
    %c0_418 = arith.constant 0 : index
    %1119 = vector.load %arg0[%c31_416, %c0_417, %c0_418] : memref<32x9x9xf32, #tpu.memory_space<vmem>>, vector<1x8x8xf32>
    %1120 = vector.shape_cast %1119 : vector<1x8x8xf32> to vector<8x8xf32>
    %c19_419 = arith.constant 19 : index
    %1121 = memref.load %arg1[%c19_419] : memref<36xf32, #tpu.memory_space<smem>>
    %1122 = vector.broadcast %1121 : f32 to vector<8x8xf32>
    %1123 = arith.mulf %1120, %1122 : vector<8x8xf32>
    %c30_420 = arith.constant 30 : index
    %c0_421 = arith.constant 0 : index
    %c1_422 = arith.constant 1 : index
    %1124 = vector.load %arg0[%c30_420, %c0_421, %c1_422] : memref<32x9x9xf32, #tpu.memory_space<vmem>>, vector<1x8x8xf32>
    %1125 = vector.shape_cast %1124 : vector<1x8x8xf32> to vector<8x8xf32>
    %c23_423 = arith.constant 23 : index
    %1126 = memref.load %arg1[%c23_423] : memref<36xf32, #tpu.memory_space<smem>>
    %1127 = vector.broadcast %1126 : f32 to vector<8x8xf32>
    %1128 = arith.mulf %1125, %1127 : vector<8x8xf32>
    %c28_424 = arith.constant 28 : index
    %c1_425 = arith.constant 1 : index
    %c0_426 = arith.constant 0 : index
    %1129 = vector.load %arg0[%c28_424, %c1_425, %c0_426] : memref<32x9x9xf32, #tpu.memory_space<vmem>>, vector<1x8x8xf32>
    %1130 = vector.shape_cast %1129 : vector<1x8x8xf32> to vector<8x8xf32>
    %c27_427 = arith.constant 27 : index
    %1131 = memref.load %arg1[%c27_427] : memref<36xf32, #tpu.memory_space<smem>>
    %1132 = vector.broadcast %1131 : f32 to vector<8x8xf32>
    %1133 = arith.mulf %1130, %1132 : vector<8x8xf32>
    %c29_428 = arith.constant 29 : index
    %c1_429 = arith.constant 1 : index
    %c0_430 = arith.constant 0 : index
    %1134 = vector.load %arg0[%c29_428, %c1_429, %c0_430] : memref<32x9x9xf32, #tpu.memory_space<vmem>>, vector<1x8x8xf32>
    %1135 = vector.shape_cast %1134 : vector<1x8x8xf32> to vector<8x8xf32>
    %c31_431 = arith.constant 31 : index
    %1136 = memref.load %arg1[%c31_431] : memref<36xf32, #tpu.memory_space<smem>>
    %1137 = vector.broadcast %1136 : f32 to vector<8x8xf32>
    %1138 = arith.mulf %1135, %1137 : vector<8x8xf32>
    %c28_432 = arith.constant 28 : index
    %c1_433 = arith.constant 1 : index
    %c1_434 = arith.constant 1 : index
    %1139 = vector.load %arg0[%c28_432, %c1_433, %c1_434] : memref<32x9x9xf32, #tpu.memory_space<vmem>>, vector<1x8x8xf32>
    %1140 = vector.shape_cast %1139 : vector<1x8x8xf32> to vector<8x8xf32>
    %c35_435 = arith.constant 35 : index
    %1141 = memref.load %arg1[%c35_435] : memref<36xf32, #tpu.memory_space<smem>>
    %1142 = vector.broadcast %1141 : f32 to vector<8x8xf32>
    %1143 = arith.mulf %1140, %1142 : vector<8x8xf32>
    %1144 = arith.addf %1103, %1108 : vector<8x8xf32>
    %1145 = arith.addf %1113, %1118 : vector<8x8xf32>
    %1146 = arith.addf %1123, %1128 : vector<8x8xf32>
    %1147 = arith.addf %1133, %1138 : vector<8x8xf32>
    %1148 = arith.addf %1144, %1145 : vector<8x8xf32>
    %1149 = arith.addf %1146, %1147 : vector<8x8xf32>
    %1150 = arith.addf %1148, %1149 : vector<8x8xf32>
    %1151 = arith.addf %1150, %1143 : vector<8x8xf32>
    %c3_436 = arith.constant 3 : index
    %1152 = memref.load %arg2[%c3_436] : memref<4xf32, #tpu.memory_space<smem>>
    %1153 = vector.broadcast %1152 : f32 to vector<8x8xf32>
    %1154 = arith.addf %1151, %1153 : vector<8x8xf32>
    %cst_437 = arith.constant 0.000000e+00 : f32
    %1155 = vector.broadcast %cst_437 : f32 to vector<8x8xf32>
    %1156 = arith.cmpf oge, %1154, %1155 : vector<8x8xf32>
    %cst_438 = arith.constant 0.00999999977 : f32
    %1157 = vector.broadcast %cst_438 : f32 to vector<8x8xf32>
    %1158 = arith.mulf %1157, %1154 : vector<8x8xf32>
    %1159 = arith.select %1156, %1154, %1158 : vector<8x8xi1>, vector<8x8xf32>
    %c0_439 = arith.constant 0 : index
    %1160 = memref.load %arg3[%c0_439] : memref<128xf32, #tpu.memory_space<smem>>
    %1161 = vector.broadcast %1160 : f32 to vector<8x8xf32>
    %1162 = arith.mulf %976, %1161 : vector<8x8xf32>
    %c1_440 = arith.constant 1 : index
    %1163 = memref.load %arg3[%c1_440] : memref<128xf32, #tpu.memory_space<smem>>
    %1164 = vector.broadcast %1163 : f32 to vector<8x8xf32>
    %1165 = arith.mulf %1037, %1164 : vector<8x8xf32>
    %1166 = arith.addf %1162, %1165 : vector<8x8xf32>
    %c2_441 = arith.constant 2 : index
    %1167 = memref.load %arg3[%c2_441] : memref<128xf32, #tpu.memory_space<smem>>
    %1168 = vector.broadcast %1167 : f32 to vector<8x8xf32>
    %1169 = arith.mulf %1098, %1168 : vector<8x8xf32>
    %1170 = arith.addf %1166, %1169 : vector<8x8xf32>
    %c3_442 = arith.constant 3 : index
    %1171 = memref.load %arg3[%c3_442] : memref<128xf32, #tpu.memory_space<smem>>
    %1172 = vector.broadcast %1171 : f32 to vector<8x8xf32>
    %1173 = arith.mulf %1159, %1172 : vector<8x8xf32>
    %1174 = arith.addf %1170, %1173 : vector<8x8xf32>
    %c0_443 = arith.constant 0 : index
    %1175 = memref.load %arg4[%c0_443] : memref<32xf32, #tpu.memory_space<smem>>
    %1176 = vector.broadcast %1175 : f32 to vector<8x8xf32>
    %1177 = arith.addf %1174, %1176 : vector<8x8xf32>
    %c32_444 = arith.constant 32 : index
    %c0_445 = arith.constant 0 : index
    %c0_446 = arith.constant 0 : index
    %1178 = vector.load %arg5[%c32_444, %c0_445, %c0_446] : memref<64x8x8xf32, #tpu.memory_space<vmem>>, vector<1x8x8xf32>
    %1179 = vector.shape_cast %1178 : vector<1x8x8xf32> to vector<8x8xf32>
    %1180 = vector.shape_cast %1177 : vector<8x8xf32> to vector<1x8x8xf32>
    tpu.vector_store %arg5[%c32_444, %c0_445, %c0_446], %1180 {strides = array<i32>} : memref<64x8x8xf32, #tpu.memory_space<vmem>>, vector<1x8x8xf32>,
    %c4_447 = arith.constant 4 : index
    %1181 = memref.load %arg3[%c4_447] : memref<128xf32, #tpu.memory_space<smem>>
    %1182 = vector.broadcast %1181 : f32 to vector<8x8xf32>
    %1183 = arith.mulf %976, %1182 : vector<8x8xf32>
    %c5_448 = arith.constant 5 : index
    %1184 = memref.load %arg3[%c5_448] : memref<128xf32, #tpu.memory_space<smem>>
    %1185 = vector.broadcast %1184 : f32 to vector<8x8xf32>
    %1186 = arith.mulf %1037, %1185 : vector<8x8xf32>
    %1187 = arith.addf %1183, %1186 : vector<8x8xf32>
    %c6_449 = arith.constant 6 : index
    %1188 = memref.load %arg3[%c6_449] : memref<128xf32, #tpu.memory_space<smem>>
    %1189 = vector.broadcast %1188 : f32 to vector<8x8xf32>
    %1190 = arith.mulf %1098, %1189 : vector<8x8xf32>
    %1191 = arith.addf %1187, %1190 : vector<8x8xf32>
    %c7_450 = arith.constant 7 : index
    %1192 = memref.load %arg3[%c7_450] : memref<128xf32, #tpu.memory_space<smem>>
    %1193 = vector.broadcast %1192 : f32 to vector<8x8xf32>
    %1194 = arith.mulf %1159, %1193 : vector<8x8xf32>
    %1195 = arith.addf %1191, %1194 : vector<8x8xf32>
    %c1_451 = arith.constant 1 : index
    %1196 = memref.load %arg4[%c1_451] : memref<32xf32, #tpu.memory_space<smem>>
    %1197 = vector.broadcast %1196 : f32 to vector<8x8xf32>
    %1198 = arith.addf %1195, %1197 : vector<8x8xf32>
    %c33_452 = arith.constant 33 : index
    %c0_453 = arith.constant 0 : index
    %c0_454 = arith.constant 0 : index
    %1199 = vector.load %arg5[%c33_452, %c0_453, %c0_454] : memref<64x8x8xf32, #tpu.memory_space<vmem>>, vector<1x8x8xf32>
    %1200 = vector.shape_cast %1199 : vector<1x8x8xf32> to vector<8x8xf32>
    %1201 = vector.shape_cast %1198 : vector<8x8xf32> to vector<1x8x8xf32>
    tpu.vector_store %arg5[%c33_452, %c0_453, %c0_454], %1201 {strides = array<i32>} : memref<64x8x8xf32, #tpu.memory_space<vmem>>, vector<1x8x8xf32>,
    %c8_455 = arith.constant 8 : index
    %1202 = memref.load %arg3[%c8_455] : memref<128xf32, #tpu.memory_space<smem>>
    %1203 = vector.broadcast %1202 : f32 to vector<8x8xf32>
    %1204 = arith.mulf %976, %1203 : vector<8x8xf32>
    %c9_456 = arith.constant 9 : index
    %1205 = memref.load %arg3[%c9_456] : memref<128xf32, #tpu.memory_space<smem>>
    %1206 = vector.broadcast %1205 : f32 to vector<8x8xf32>
    %1207 = arith.mulf %1037, %1206 : vector<8x8xf32>
    %1208 = arith.addf %1204, %1207 : vector<8x8xf32>
    %c10_457 = arith.constant 10 : index
    %1209 = memref.load %arg3[%c10_457] : memref<128xf32, #tpu.memory_space<smem>>
    %1210 = vector.broadcast %1209 : f32 to vector<8x8xf32>
    %1211 = arith.mulf %1098, %1210 : vector<8x8xf32>
    %1212 = arith.addf %1208, %1211 : vector<8x8xf32>
    %c11_458 = arith.constant 11 : index
    %1213 = memref.load %arg3[%c11_458] : memref<128xf32, #tpu.memory_space<smem>>
    %1214 = vector.broadcast %1213 : f32 to vector<8x8xf32>
    %1215 = arith.mulf %1159, %1214 : vector<8x8xf32>
    %1216 = arith.addf %1212, %1215 : vector<8x8xf32>
    %c2_459 = arith.constant 2 : index
    %1217 = memref.load %arg4[%c2_459] : memref<32xf32, #tpu.memory_space<smem>>
    %1218 = vector.broadcast %1217 : f32 to vector<8x8xf32>
    %1219 = arith.addf %1216, %1218 : vector<8x8xf32>
    %c34_460 = arith.constant 34 : index
    %c0_461 = arith.constant 0 : index
    %c0_462 = arith.constant 0 : index
    %1220 = vector.load %arg5[%c34_460, %c0_461, %c0_462] : memref<64x8x8xf32, #tpu.memory_space<vmem>>, vector<1x8x8xf32>
    %1221 = vector.shape_cast %1220 : vector<1x8x8xf32> to vector<8x8xf32>
    %1222 = vector.shape_cast %1219 : vector<8x8xf32> to vector<1x8x8xf32>
    tpu.vector_store %arg5[%c34_460, %c0_461, %c0_462], %1222 {strides = array<i32>} : memref<64x8x8xf32, #tpu.memory_space<vmem>>, vector<1x8x8xf32>,
    %c12_463 = arith.constant 12 : index
    %1223 = memref.load %arg3[%c12_463] : memref<128xf32, #tpu.memory_space<smem>>
    %1224 = vector.broadcast %1223 : f32 to vector<8x8xf32>
    %1225 = arith.mulf %976, %1224 : vector<8x8xf32>
    %c13_464 = arith.constant 13 : index
    %1226 = memref.load %arg3[%c13_464] : memref<128xf32, #tpu.memory_space<smem>>
    %1227 = vector.broadcast %1226 : f32 to vector<8x8xf32>
    %1228 = arith.mulf %1037, %1227 : vector<8x8xf32>
    %1229 = arith.addf %1225, %1228 : vector<8x8xf32>
    %c14_465 = arith.constant 14 : index
    %1230 = memref.load %arg3[%c14_465] : memref<128xf32, #tpu.memory_space<smem>>
    %1231 = vector.broadcast %1230 : f32 to vector<8x8xf32>
    %1232 = arith.mulf %1098, %1231 : vector<8x8xf32>
    %1233 = arith.addf %1229, %1232 : vector<8x8xf32>
    %c15_466 = arith.constant 15 : index
    %1234 = memref.load %arg3[%c15_466] : memref<128xf32, #tpu.memory_space<smem>>
    %1235 = vector.broadcast %1234 : f32 to vector<8x8xf32>
    %1236 = arith.mulf %1159, %1235 : vector<8x8xf32>
    %1237 = arith.addf %1233, %1236 : vector<8x8xf32>
    %c3_467 = arith.constant 3 : index
    %1238 = memref.load %arg4[%c3_467] : memref<32xf32, #tpu.memory_space<smem>>
    %1239 = vector.broadcast %1238 : f32 to vector<8x8xf32>
    %1240 = arith.addf %1237, %1239 : vector<8x8xf32>
    %c35_468 = arith.constant 35 : index
    %c0_469 = arith.constant 0 : index
    %c0_470 = arith.constant 0 : index
    %1241 = vector.load %arg5[%c35_468, %c0_469, %c0_470] : memref<64x8x8xf32, #tpu.memory_space<vmem>>, vector<1x8x8xf32>
    %1242 = vector.shape_cast %1241 : vector<1x8x8xf32> to vector<8x8xf32>
    %1243 = vector.shape_cast %1240 : vector<8x8xf32> to vector<1x8x8xf32>
    tpu.vector_store %arg5[%c35_468, %c0_469, %c0_470], %1243 {strides = array<i32>} : memref<64x8x8xf32, #tpu.memory_space<vmem>>, vector<1x8x8xf32>,
    %c16_471 = arith.constant 16 : index
    %1244 = memref.load %arg3[%c16_471] : memref<128xf32, #tpu.memory_space<smem>>
    %1245 = vector.broadcast %1244 : f32 to vector<8x8xf32>
    %1246 = arith.mulf %976, %1245 : vector<8x8xf32>
    %c17_472 = arith.constant 17 : index
    %1247 = memref.load %arg3[%c17_472] : memref<128xf32, #tpu.memory_space<smem>>
    %1248 = vector.broadcast %1247 : f32 to vector<8x8xf32>
    %1249 = arith.mulf %1037, %1248 : vector<8x8xf32>
    %1250 = arith.addf %1246, %1249 : vector<8x8xf32>
    %c18_473 = arith.constant 18 : index
    %1251 = memref.load %arg3[%c18_473] : memref<128xf32, #tpu.memory_space<smem>>
    %1252 = vector.broadcast %1251 : f32 to vector<8x8xf32>
    %1253 = arith.mulf %1098, %1252 : vector<8x8xf32>
    %1254 = arith.addf %1250, %1253 : vector<8x8xf32>
    %c19_474 = arith.constant 19 : index
    %1255 = memref.load %arg3[%c19_474] : memref<128xf32, #tpu.memory_space<smem>>
    %1256 = vector.broadcast %1255 : f32 to vector<8x8xf32>
    %1257 = arith.mulf %1159, %1256 : vector<8x8xf32>
    %1258 = arith.addf %1254, %1257 : vector<8x8xf32>
    %c4_475 = arith.constant 4 : index
    %1259 = memref.load %arg4[%c4_475] : memref<32xf32, #tpu.memory_space<smem>>
    %1260 = vector.broadcast %1259 : f32 to vector<8x8xf32>
    %1261 = arith.addf %1258, %1260 : vector<8x8xf32>
    %c36_476 = arith.constant 36 : index
    %c0_477 = arith.constant 0 : index
    %c0_478 = arith.constant 0 : index
    %1262 = vector.load %arg5[%c36_476, %c0_477, %c0_478] : memref<64x8x8xf32, #tpu.memory_space<vmem>>, vector<1x8x8xf32>
    %1263 = vector.shape_cast %1262 : vector<1x8x8xf32> to vector<8x8xf32>
    %1264 = vector.shape_cast %1261 : vector<8x8xf32> to vector<1x8x8xf32>
    tpu.vector_store %arg5[%c36_476, %c0_477, %c0_478], %1264 {strides = array<i32>} : memref<64x8x8xf32, #tpu.memory_space<vmem>>, vector<1x8x8xf32>,
    %c20_479 = arith.constant 20 : index
    %1265 = memref.load %arg3[%c20_479] : memref<128xf32, #tpu.memory_space<smem>>
    %1266 = vector.broadcast %1265 : f32 to vector<8x8xf32>
    %1267 = arith.mulf %976, %1266 : vector<8x8xf32>
    %c21_480 = arith.constant 21 : index
    %1268 = memref.load %arg3[%c21_480] : memref<128xf32, #tpu.memory_space<smem>>
    %1269 = vector.broadcast %1268 : f32 to vector<8x8xf32>
    %1270 = arith.mulf %1037, %1269 : vector<8x8xf32>
    %1271 = arith.addf %1267, %1270 : vector<8x8xf32>
    %c22_481 = arith.constant 22 : index
    %1272 = memref.load %arg3[%c22_481] : memref<128xf32, #tpu.memory_space<smem>>
    %1273 = vector.broadcast %1272 : f32 to vector<8x8xf32>
    %1274 = arith.mulf %1098, %1273 : vector<8x8xf32>
    %1275 = arith.addf %1271, %1274 : vector<8x8xf32>
    %c23_482 = arith.constant 23 : index
    %1276 = memref.load %arg3[%c23_482] : memref<128xf32, #tpu.memory_space<smem>>
    %1277 = vector.broadcast %1276 : f32 to vector<8x8xf32>
    %1278 = arith.mulf %1159, %1277 : vector<8x8xf32>
    %1279 = arith.addf %1275, %1278 : vector<8x8xf32>
    %c5_483 = arith.constant 5 : index
    %1280 = memref.load %arg4[%c5_483] : memref<32xf32, #tpu.memory_space<smem>>
    %1281 = vector.broadcast %1280 : f32 to vector<8x8xf32>
    %1282 = arith.addf %1279, %1281 : vector<8x8xf32>
    %c37_484 = arith.constant 37 : index
    %c0_485 = arith.constant 0 : index
    %c0_486 = arith.constant 0 : index
    %1283 = vector.load %arg5[%c37_484, %c0_485, %c0_486] : memref<64x8x8xf32, #tpu.memory_space<vmem>>, vector<1x8x8xf32>
    %1284 = vector.shape_cast %1283 : vector<1x8x8xf32> to vector<8x8xf32>
    %1285 = vector.shape_cast %1282 : vector<8x8xf32> to vector<1x8x8xf32>
    tpu.vector_store %arg5[%c37_484, %c0_485, %c0_486], %1285 {strides = array<i32>} : memref<64x8x8xf32, #tpu.memory_space<vmem>>, vector<1x8x8xf32>,
    %c24_487 = arith.constant 24 : index
    %1286 = memref.load %arg3[%c24_487] : memref<128xf32, #tpu.memory_space<smem>>
    %1287 = vector.broadcast %1286 : f32 to vector<8x8xf32>
    %1288 = arith.mulf %976, %1287 : vector<8x8xf32>
    %c25_488 = arith.constant 25 : index
    %1289 = memref.load %arg3[%c25_488] : memref<128xf32, #tpu.memory_space<smem>>
    %1290 = vector.broadcast %1289 : f32 to vector<8x8xf32>
    %1291 = arith.mulf %1037, %1290 : vector<8x8xf32>
    %1292 = arith.addf %1288, %1291 : vector<8x8xf32>
    %c26_489 = arith.constant 26 : index
    %1293 = memref.load %arg3[%c26_489] : memref<128xf32, #tpu.memory_space<smem>>
    %1294 = vector.broadcast %1293 : f32 to vector<8x8xf32>
    %1295 = arith.mulf %1098, %1294 : vector<8x8xf32>
    %1296 = arith.addf %1292, %1295 : vector<8x8xf32>
    %c27_490 = arith.constant 27 : index
    %1297 = memref.load %arg3[%c27_490] : memref<128xf32, #tpu.memory_space<smem>>
    %1298 = vector.broadcast %1297 : f32 to vector<8x8xf32>
    %1299 = arith.mulf %1159, %1298 : vector<8x8xf32>
    %1300 = arith.addf %1296, %1299 : vector<8x8xf32>
    %c6_491 = arith.constant 6 : index
    %1301 = memref.load %arg4[%c6_491] : memref<32xf32, #tpu.memory_space<smem>>
    %1302 = vector.broadcast %1301 : f32 to vector<8x8xf32>
    %1303 = arith.addf %1300, %1302 : vector<8x8xf32>
    %c38_492 = arith.constant 38 : index
    %c0_493 = arith.constant 0 : index
    %c0_494 = arith.constant 0 : index
    %1304 = vector.load %arg5[%c38_492, %c0_493, %c0_494] : memref<64x8x8xf32, #tpu.memory_space<vmem>>, vector<1x8x8xf32>
    %1305 = vector.shape_cast %1304 : vector<1x8x8xf32> to vector<8x8xf32>
    %1306 = vector.shape_cast %1303 : vector<8x8xf32> to vector<1x8x8xf32>
    tpu.vector_store %arg5[%c38_492, %c0_493, %c0_494], %1306 {strides = array<i32>} : memref<64x8x8xf32, #tpu.memory_space<vmem>>, vector<1x8x8xf32>,
    %c28_495 = arith.constant 28 : index
    %1307 = memref.load %arg3[%c28_495] : memref<128xf32, #tpu.memory_space<smem>>
    %1308 = vector.broadcast %1307 : f32 to vector<8x8xf32>
    %1309 = arith.mulf %976, %1308 : vector<8x8xf32>
    %c29_496 = arith.constant 29 : index
    %1310 = memref.load %arg3[%c29_496] : memref<128xf32, #tpu.memory_space<smem>>
    %1311 = vector.broadcast %1310 : f32 to vector<8x8xf32>
    %1312 = arith.mulf %1037, %1311 : vector<8x8xf32>
    %1313 = arith.addf %1309, %1312 : vector<8x8xf32>
    %c30_497 = arith.constant 30 : index
    %1314 = memref.load %arg3[%c30_497] : memref<128xf32, #tpu.memory_space<smem>>
    %1315 = vector.broadcast %1314 : f32 to vector<8x8xf32>
    %1316 = arith.mulf %1098, %1315 : vector<8x8xf32>
    %1317 = arith.addf %1313, %1316 : vector<8x8xf32>
    %c31_498 = arith.constant 31 : index
    %1318 = memref.load %arg3[%c31_498] : memref<128xf32, #tpu.memory_space<smem>>
    %1319 = vector.broadcast %1318 : f32 to vector<8x8xf32>
    %1320 = arith.mulf %1159, %1319 : vector<8x8xf32>
    %1321 = arith.addf %1317, %1320 : vector<8x8xf32>
    %c7_499 = arith.constant 7 : index
    %1322 = memref.load %arg4[%c7_499] : memref<32xf32, #tpu.memory_space<smem>>
    %1323 = vector.broadcast %1322 : f32 to vector<8x8xf32>
    %1324 = arith.addf %1321, %1323 : vector<8x8xf32>
    %c39_500 = arith.constant 39 : index
    %c0_501 = arith.constant 0 : index
    %c0_502 = arith.constant 0 : index
    %1325 = vector.load %arg5[%c39_500, %c0_501, %c0_502] : memref<64x8x8xf32, #tpu.memory_space<vmem>>, vector<1x8x8xf32>
    %1326 = vector.shape_cast %1325 : vector<1x8x8xf32> to vector<8x8xf32>
    %1327 = vector.shape_cast %1324 : vector<8x8xf32> to vector<1x8x8xf32>
    tpu.vector_store %arg5[%c39_500, %c0_501, %c0_502], %1327 {strides = array<i32>} : memref<64x8x8xf32, #tpu.memory_space<vmem>>, vector<1x8x8xf32>,
    %c32_503 = arith.constant 32 : index
    %1328 = memref.load %arg3[%c32_503] : memref<128xf32, #tpu.memory_space<smem>>
    %1329 = vector.broadcast %1328 : f32 to vector<8x8xf32>
    %1330 = arith.mulf %976, %1329 : vector<8x8xf32>
    %c33_504 = arith.constant 33 : index
    %1331 = memref.load %arg3[%c33_504] : memref<128xf32, #tpu.memory_space<smem>>
    %1332 = vector.broadcast %1331 : f32 to vector<8x8xf32>
    %1333 = arith.mulf %1037, %1332 : vector<8x8xf32>
    %1334 = arith.addf %1330, %1333 : vector<8x8xf32>
    %c34_505 = arith.constant 34 : index
    %1335 = memref.load %arg3[%c34_505] : memref<128xf32, #tpu.memory_space<smem>>
    %1336 = vector.broadcast %1335 : f32 to vector<8x8xf32>
    %1337 = arith.mulf %1098, %1336 : vector<8x8xf32>
    %1338 = arith.addf %1334, %1337 : vector<8x8xf32>
    %c35_506 = arith.constant 35 : index
    %1339 = memref.load %arg3[%c35_506] : memref<128xf32, #tpu.memory_space<smem>>
    %1340 = vector.broadcast %1339 : f32 to vector<8x8xf32>
    %1341 = arith.mulf %1159, %1340 : vector<8x8xf32>
    %1342 = arith.addf %1338, %1341 : vector<8x8xf32>
    %c8_507 = arith.constant 8 : index
    %1343 = memref.load %arg4[%c8_507] : memref<32xf32, #tpu.memory_space<smem>>
    %1344 = vector.broadcast %1343 : f32 to vector<8x8xf32>
    %1345 = arith.addf %1342, %1344 : vector<8x8xf32>
    %c40_508 = arith.constant 40 : index
    %c0_509 = arith.constant 0 : index
    %c0_510 = arith.constant 0 : index
    %1346 = vector.load %arg5[%c40_508, %c0_509, %c0_510] : memref<64x8x8xf32, #tpu.memory_space<vmem>>, vector<1x8x8xf32>
    %1347 = vector.shape_cast %1346 : vector<1x8x8xf32> to vector<8x8xf32>
    %1348 = vector.shape_cast %1345 : vector<8x8xf32> to vector<1x8x8xf32>
    tpu.vector_store %arg5[%c40_508, %c0_509, %c0_510], %1348 {strides = array<i32>} : memref<64x8x8xf32, #tpu.memory_space<vmem>>, vector<1x8x8xf32>,
    %c36_511 = arith.constant 36 : index
    %1349 = memref.load %arg3[%c36_511] : memref<128xf32, #tpu.memory_space<smem>>
    %1350 = vector.broadcast %1349 : f32 to vector<8x8xf32>
    %1351 = arith.mulf %976, %1350 : vector<8x8xf32>
    %c37_512 = arith.constant 37 : index
    %1352 = memref.load %arg3[%c37_512] : memref<128xf32, #tpu.memory_space<smem>>
    %1353 = vector.broadcast %1352 : f32 to vector<8x8xf32>
    %1354 = arith.mulf %1037, %1353 : vector<8x8xf32>
    %1355 = arith.addf %1351, %1354 : vector<8x8xf32>
    %c38_513 = arith.constant 38 : index
    %1356 = memref.load %arg3[%c38_513] : memref<128xf32, #tpu.memory_space<smem>>
    %1357 = vector.broadcast %1356 : f32 to vector<8x8xf32>
    %1358 = arith.mulf %1098, %1357 : vector<8x8xf32>
    %1359 = arith.addf %1355, %1358 : vector<8x8xf32>
    %c39_514 = arith.constant 39 : index
    %1360 = memref.load %arg3[%c39_514] : memref<128xf32, #tpu.memory_space<smem>>
    %1361 = vector.broadcast %1360 : f32 to vector<8x8xf32>
    %1362 = arith.mulf %1159, %1361 : vector<8x8xf32>
    %1363 = arith.addf %1359, %1362 : vector<8x8xf32>
    %c9_515 = arith.constant 9 : index
    %1364 = memref.load %arg4[%c9_515] : memref<32xf32, #tpu.memory_space<smem>>
    %1365 = vector.broadcast %1364 : f32 to vector<8x8xf32>
    %1366 = arith.addf %1363, %1365 : vector<8x8xf32>
    %c41_516 = arith.constant 41 : index
    %c0_517 = arith.constant 0 : index
    %c0_518 = arith.constant 0 : index
    %1367 = vector.load %arg5[%c41_516, %c0_517, %c0_518] : memref<64x8x8xf32, #tpu.memory_space<vmem>>, vector<1x8x8xf32>
    %1368 = vector.shape_cast %1367 : vector<1x8x8xf32> to vector<8x8xf32>
    %1369 = vector.shape_cast %1366 : vector<8x8xf32> to vector<1x8x8xf32>
    tpu.vector_store %arg5[%c41_516, %c0_517, %c0_518], %1369 {strides = array<i32>} : memref<64x8x8xf32, #tpu.memory_space<vmem>>, vector<1x8x8xf32>,
    %c40_519 = arith.constant 40 : index
    %1370 = memref.load %arg3[%c40_519] : memref<128xf32, #tpu.memory_space<smem>>
    %1371 = vector.broadcast %1370 : f32 to vector<8x8xf32>
    %1372 = arith.mulf %976, %1371 : vector<8x8xf32>
    %c41_520 = arith.constant 41 : index
    %1373 = memref.load %arg3[%c41_520] : memref<128xf32, #tpu.memory_space<smem>>
    %1374 = vector.broadcast %1373 : f32 to vector<8x8xf32>
    %1375 = arith.mulf %1037, %1374 : vector<8x8xf32>
    %1376 = arith.addf %1372, %1375 : vector<8x8xf32>
    %c42_521 = arith.constant 42 : index
    %1377 = memref.load %arg3[%c42_521] : memref<128xf32, #tpu.memory_space<smem>>
    %1378 = vector.broadcast %1377 : f32 to vector<8x8xf32>
    %1379 = arith.mulf %1098, %1378 : vector<8x8xf32>
    %1380 = arith.addf %1376, %1379 : vector<8x8xf32>
    %c43_522 = arith.constant 43 : index
    %1381 = memref.load %arg3[%c43_522] : memref<128xf32, #tpu.memory_space<smem>>
    %1382 = vector.broadcast %1381 : f32 to vector<8x8xf32>
    %1383 = arith.mulf %1159, %1382 : vector<8x8xf32>
    %1384 = arith.addf %1380, %1383 : vector<8x8xf32>
    %c10_523 = arith.constant 10 : index
    %1385 = memref.load %arg4[%c10_523] : memref<32xf32, #tpu.memory_space<smem>>
    %1386 = vector.broadcast %1385 : f32 to vector<8x8xf32>
    %1387 = arith.addf %1384, %1386 : vector<8x8xf32>
    %c42_524 = arith.constant 42 : index
    %c0_525 = arith.constant 0 : index
    %c0_526 = arith.constant 0 : index
    %1388 = vector.load %arg5[%c42_524, %c0_525, %c0_526] : memref<64x8x8xf32, #tpu.memory_space<vmem>>, vector<1x8x8xf32>
    %1389 = vector.shape_cast %1388 : vector<1x8x8xf32> to vector<8x8xf32>
    %1390 = vector.shape_cast %1387 : vector<8x8xf32> to vector<1x8x8xf32>
    tpu.vector_store %arg5[%c42_524, %c0_525, %c0_526], %1390 {strides = array<i32>} : memref<64x8x8xf32, #tpu.memory_space<vmem>>, vector<1x8x8xf32>,
    %c44_527 = arith.constant 44 : index
    %1391 = memref.load %arg3[%c44_527] : memref<128xf32, #tpu.memory_space<smem>>
    %1392 = vector.broadcast %1391 : f32 to vector<8x8xf32>
    %1393 = arith.mulf %976, %1392 : vector<8x8xf32>
    %c45_528 = arith.constant 45 : index
    %1394 = memref.load %arg3[%c45_528] : memref<128xf32, #tpu.memory_space<smem>>
    %1395 = vector.broadcast %1394 : f32 to vector<8x8xf32>
    %1396 = arith.mulf %1037, %1395 : vector<8x8xf32>
    %1397 = arith.addf %1393, %1396 : vector<8x8xf32>
    %c46_529 = arith.constant 46 : index
    %1398 = memref.load %arg3[%c46_529] : memref<128xf32, #tpu.memory_space<smem>>
    %1399 = vector.broadcast %1398 : f32 to vector<8x8xf32>
    %1400 = arith.mulf %1098, %1399 : vector<8x8xf32>
    %1401 = arith.addf %1397, %1400 : vector<8x8xf32>
    %c47_530 = arith.constant 47 : index
    %1402 = memref.load %arg3[%c47_530] : memref<128xf32, #tpu.memory_space<smem>>
    %1403 = vector.broadcast %1402 : f32 to vector<8x8xf32>
    %1404 = arith.mulf %1159, %1403 : vector<8x8xf32>
    %1405 = arith.addf %1401, %1404 : vector<8x8xf32>
    %c11_531 = arith.constant 11 : index
    %1406 = memref.load %arg4[%c11_531] : memref<32xf32, #tpu.memory_space<smem>>
    %1407 = vector.broadcast %1406 : f32 to vector<8x8xf32>
    %1408 = arith.addf %1405, %1407 : vector<8x8xf32>
    %c43_532 = arith.constant 43 : index
    %c0_533 = arith.constant 0 : index
    %c0_534 = arith.constant 0 : index
    %1409 = vector.load %arg5[%c43_532, %c0_533, %c0_534] : memref<64x8x8xf32, #tpu.memory_space<vmem>>, vector<1x8x8xf32>
    %1410 = vector.shape_cast %1409 : vector<1x8x8xf32> to vector<8x8xf32>
    %1411 = vector.shape_cast %1408 : vector<8x8xf32> to vector<1x8x8xf32>
    tpu.vector_store %arg5[%c43_532, %c0_533, %c0_534], %1411 {strides = array<i32>} : memref<64x8x8xf32, #tpu.memory_space<vmem>>, vector<1x8x8xf32>,
    %c48_535 = arith.constant 48 : index
    %1412 = memref.load %arg3[%c48_535] : memref<128xf32, #tpu.memory_space<smem>>
    %1413 = vector.broadcast %1412 : f32 to vector<8x8xf32>
    %1414 = arith.mulf %976, %1413 : vector<8x8xf32>
    %c49_536 = arith.constant 49 : index
    %1415 = memref.load %arg3[%c49_536] : memref<128xf32, #tpu.memory_space<smem>>
    %1416 = vector.broadcast %1415 : f32 to vector<8x8xf32>
    %1417 = arith.mulf %1037, %1416 : vector<8x8xf32>
    %1418 = arith.addf %1414, %1417 : vector<8x8xf32>
    %c50_537 = arith.constant 50 : index
    %1419 = memref.load %arg3[%c50_537] : memref<128xf32, #tpu.memory_space<smem>>
    %1420 = vector.broadcast %1419 : f32 to vector<8x8xf32>
    %1421 = arith.mulf %1098, %1420 : vector<8x8xf32>
    %1422 = arith.addf %1418, %1421 : vector<8x8xf32>
    %c51_538 = arith.constant 51 : index
    %1423 = memref.load %arg3[%c51_538] : memref<128xf32, #tpu.memory_space<smem>>
    %1424 = vector.broadcast %1423 : f32 to vector<8x8xf32>
    %1425 = arith.mulf %1159, %1424 : vector<8x8xf32>
    %1426 = arith.addf %1422, %1425 : vector<8x8xf32>
    %c12_539 = arith.constant 12 : index
    %1427 = memref.load %arg4[%c12_539] : memref<32xf32, #tpu.memory_space<smem>>
    %1428 = vector.broadcast %1427 : f32 to vector<8x8xf32>
    %1429 = arith.addf %1426, %1428 : vector<8x8xf32>
    %c44_540 = arith.constant 44 : index
    %c0_541 = arith.constant 0 : index
    %c0_542 = arith.constant 0 : index
    %1430 = vector.load %arg5[%c44_540, %c0_541, %c0_542] : memref<64x8x8xf32, #tpu.memory_space<vmem>>, vector<1x8x8xf32>
    %1431 = vector.shape_cast %1430 : vector<1x8x8xf32> to vector<8x8xf32>
    %1432 = vector.shape_cast %1429 : vector<8x8xf32> to vector<1x8x8xf32>
    tpu.vector_store %arg5[%c44_540, %c0_541, %c0_542], %1432 {strides = array<i32>} : memref<64x8x8xf32, #tpu.memory_space<vmem>>, vector<1x8x8xf32>,
    %c52_543 = arith.constant 52 : index
    %1433 = memref.load %arg3[%c52_543] : memref<128xf32, #tpu.memory_space<smem>>
    %1434 = vector.broadcast %1433 : f32 to vector<8x8xf32>
    %1435 = arith.mulf %976, %1434 : vector<8x8xf32>
    %c53_544 = arith.constant 53 : index
    %1436 = memref.load %arg3[%c53_544] : memref<128xf32, #tpu.memory_space<smem>>
    %1437 = vector.broadcast %1436 : f32 to vector<8x8xf32>
    %1438 = arith.mulf %1037, %1437 : vector<8x8xf32>
    %1439 = arith.addf %1435, %1438 : vector<8x8xf32>
    %c54_545 = arith.constant 54 : index
    %1440 = memref.load %arg3[%c54_545] : memref<128xf32, #tpu.memory_space<smem>>
    %1441 = vector.broadcast %1440 : f32 to vector<8x8xf32>
    %1442 = arith.mulf %1098, %1441 : vector<8x8xf32>
    %1443 = arith.addf %1439, %1442 : vector<8x8xf32>
    %c55_546 = arith.constant 55 : index
    %1444 = memref.load %arg3[%c55_546] : memref<128xf32, #tpu.memory_space<smem>>
    %1445 = vector.broadcast %1444 : f32 to vector<8x8xf32>
    %1446 = arith.mulf %1159, %1445 : vector<8x8xf32>
    %1447 = arith.addf %1443, %1446 : vector<8x8xf32>
    %c13_547 = arith.constant 13 : index
    %1448 = memref.load %arg4[%c13_547] : memref<32xf32, #tpu.memory_space<smem>>
    %1449 = vector.broadcast %1448 : f32 to vector<8x8xf32>
    %1450 = arith.addf %1447, %1449 : vector<8x8xf32>
    %c45_548 = arith.constant 45 : index
    %c0_549 = arith.constant 0 : index
    %c0_550 = arith.constant 0 : index
    %1451 = vector.load %arg5[%c45_548, %c0_549, %c0_550] : memref<64x8x8xf32, #tpu.memory_space<vmem>>, vector<1x8x8xf32>
    %1452 = vector.shape_cast %1451 : vector<1x8x8xf32> to vector<8x8xf32>
    %1453 = vector.shape_cast %1450 : vector<8x8xf32> to vector<1x8x8xf32>
    tpu.vector_store %arg5[%c45_548, %c0_549, %c0_550], %1453 {strides = array<i32>} : memref<64x8x8xf32, #tpu.memory_space<vmem>>, vector<1x8x8xf32>,
    %c56_551 = arith.constant 56 : index
    %1454 = memref.load %arg3[%c56_551] : memref<128xf32, #tpu.memory_space<smem>>
    %1455 = vector.broadcast %1454 : f32 to vector<8x8xf32>
    %1456 = arith.mulf %976, %1455 : vector<8x8xf32>
    %c57_552 = arith.constant 57 : index
    %1457 = memref.load %arg3[%c57_552] : memref<128xf32, #tpu.memory_space<smem>>
    %1458 = vector.broadcast %1457 : f32 to vector<8x8xf32>
    %1459 = arith.mulf %1037, %1458 : vector<8x8xf32>
    %1460 = arith.addf %1456, %1459 : vector<8x8xf32>
    %c58_553 = arith.constant 58 : index
    %1461 = memref.load %arg3[%c58_553] : memref<128xf32, #tpu.memory_space<smem>>
    %1462 = vector.broadcast %1461 : f32 to vector<8x8xf32>
    %1463 = arith.mulf %1098, %1462 : vector<8x8xf32>
    %1464 = arith.addf %1460, %1463 : vector<8x8xf32>
    %c59_554 = arith.constant 59 : index
    %1465 = memref.load %arg3[%c59_554] : memref<128xf32, #tpu.memory_space<smem>>
    %1466 = vector.broadcast %1465 : f32 to vector<8x8xf32>
    %1467 = arith.mulf %1159, %1466 : vector<8x8xf32>
    %1468 = arith.addf %1464, %1467 : vector<8x8xf32>
    %c14_555 = arith.constant 14 : index
    %1469 = memref.load %arg4[%c14_555] : memref<32xf32, #tpu.memory_space<smem>>
    %1470 = vector.broadcast %1469 : f32 to vector<8x8xf32>
    %1471 = arith.addf %1468, %1470 : vector<8x8xf32>
    %c46_556 = arith.constant 46 : index
    %c0_557 = arith.constant 0 : index
    %c0_558 = arith.constant 0 : index
    %1472 = vector.load %arg5[%c46_556, %c0_557, %c0_558] : memref<64x8x8xf32, #tpu.memory_space<vmem>>, vector<1x8x8xf32>
    %1473 = vector.shape_cast %1472 : vector<1x8x8xf32> to vector<8x8xf32>
    %1474 = vector.shape_cast %1471 : vector<8x8xf32> to vector<1x8x8xf32>
    tpu.vector_store %arg5[%c46_556, %c0_557, %c0_558], %1474 {strides = array<i32>} : memref<64x8x8xf32, #tpu.memory_space<vmem>>, vector<1x8x8xf32>,
    %c60_559 = arith.constant 60 : index
    %1475 = memref.load %arg3[%c60_559] : memref<128xf32, #tpu.memory_space<smem>>
    %1476 = vector.broadcast %1475 : f32 to vector<8x8xf32>
    %1477 = arith.mulf %976, %1476 : vector<8x8xf32>
    %c61_560 = arith.constant 61 : index
    %1478 = memref.load %arg3[%c61_560] : memref<128xf32, #tpu.memory_space<smem>>
    %1479 = vector.broadcast %1478 : f32 to vector<8x8xf32>
    %1480 = arith.mulf %1037, %1479 : vector<8x8xf32>
    %1481 = arith.addf %1477, %1480 : vector<8x8xf32>
    %c62_561 = arith.constant 62 : index
    %1482 = memref.load %arg3[%c62_561] : memref<128xf32, #tpu.memory_space<smem>>
    %1483 = vector.broadcast %1482 : f32 to vector<8x8xf32>
    %1484 = arith.mulf %1098, %1483 : vector<8x8xf32>
    %1485 = arith.addf %1481, %1484 : vector<8x8xf32>
    %c63_562 = arith.constant 63 : index
    %1486 = memref.load %arg3[%c63_562] : memref<128xf32, #tpu.memory_space<smem>>
    %1487 = vector.broadcast %1486 : f32 to vector<8x8xf32>
    %1488 = arith.mulf %1159, %1487 : vector<8x8xf32>
    %1489 = arith.addf %1485, %1488 : vector<8x8xf32>
    %c15_563 = arith.constant 15 : index
    %1490 = memref.load %arg4[%c15_563] : memref<32xf32, #tpu.memory_space<smem>>
    %1491 = vector.broadcast %1490 : f32 to vector<8x8xf32>
    %1492 = arith.addf %1489, %1491 : vector<8x8xf32>
    %c47_564 = arith.constant 47 : index
    %c0_565 = arith.constant 0 : index
    %c0_566 = arith.constant 0 : index
    %1493 = vector.load %arg5[%c47_564, %c0_565, %c0_566] : memref<64x8x8xf32, #tpu.memory_space<vmem>>, vector<1x8x8xf32>
    %1494 = vector.shape_cast %1493 : vector<1x8x8xf32> to vector<8x8xf32>
    %1495 = vector.shape_cast %1492 : vector<8x8xf32> to vector<1x8x8xf32>
    tpu.vector_store %arg5[%c47_564, %c0_565, %c0_566], %1495 {strides = array<i32>} : memref<64x8x8xf32, #tpu.memory_space<vmem>>, vector<1x8x8xf32>,
    %c64_567 = arith.constant 64 : index
    %1496 = memref.load %arg3[%c64_567] : memref<128xf32, #tpu.memory_space<smem>>
    %1497 = vector.broadcast %1496 : f32 to vector<8x8xf32>
    %1498 = arith.mulf %976, %1497 : vector<8x8xf32>
    %c65_568 = arith.constant 65 : index
    %1499 = memref.load %arg3[%c65_568] : memref<128xf32, #tpu.memory_space<smem>>
    %1500 = vector.broadcast %1499 : f32 to vector<8x8xf32>
    %1501 = arith.mulf %1037, %1500 : vector<8x8xf32>
    %1502 = arith.addf %1498, %1501 : vector<8x8xf32>
    %c66_569 = arith.constant 66 : index
    %1503 = memref.load %arg3[%c66_569] : memref<128xf32, #tpu.memory_space<smem>>
    %1504 = vector.broadcast %1503 : f32 to vector<8x8xf32>
    %1505 = arith.mulf %1098, %1504 : vector<8x8xf32>
    %1506 = arith.addf %1502, %1505 : vector<8x8xf32>
    %c67_570 = arith.constant 67 : index
    %1507 = memref.load %arg3[%c67_570] : memref<128xf32, #tpu.memory_space<smem>>
    %1508 = vector.broadcast %1507 : f32 to vector<8x8xf32>
    %1509 = arith.mulf %1159, %1508 : vector<8x8xf32>
    %1510 = arith.addf %1506, %1509 : vector<8x8xf32>
    %c16_571 = arith.constant 16 : index
    %1511 = memref.load %arg4[%c16_571] : memref<32xf32, #tpu.memory_space<smem>>
    %1512 = vector.broadcast %1511 : f32 to vector<8x8xf32>
    %1513 = arith.addf %1510, %1512 : vector<8x8xf32>
    %c48_572 = arith.constant 48 : index
    %c0_573 = arith.constant 0 : index
    %c0_574 = arith.constant 0 : index
    %1514 = vector.load %arg5[%c48_572, %c0_573, %c0_574] : memref<64x8x8xf32, #tpu.memory_space<vmem>>, vector<1x8x8xf32>
    %1515 = vector.shape_cast %1514 : vector<1x8x8xf32> to vector<8x8xf32>
    %1516 = vector.shape_cast %1513 : vector<8x8xf32> to vector<1x8x8xf32>
    tpu.vector_store %arg5[%c48_572, %c0_573, %c0_574], %1516 {strides = array<i32>} : memref<64x8x8xf32, #tpu.memory_space<vmem>>, vector<1x8x8xf32>,
    %c68_575 = arith.constant 68 : index
    %1517 = memref.load %arg3[%c68_575] : memref<128xf32, #tpu.memory_space<smem>>
    %1518 = vector.broadcast %1517 : f32 to vector<8x8xf32>
    %1519 = arith.mulf %976, %1518 : vector<8x8xf32>
    %c69_576 = arith.constant 69 : index
    %1520 = memref.load %arg3[%c69_576] : memref<128xf32, #tpu.memory_space<smem>>
    %1521 = vector.broadcast %1520 : f32 to vector<8x8xf32>
    %1522 = arith.mulf %1037, %1521 : vector<8x8xf32>
    %1523 = arith.addf %1519, %1522 : vector<8x8xf32>
    %c70_577 = arith.constant 70 : index
    %1524 = memref.load %arg3[%c70_577] : memref<128xf32, #tpu.memory_space<smem>>
    %1525 = vector.broadcast %1524 : f32 to vector<8x8xf32>
    %1526 = arith.mulf %1098, %1525 : vector<8x8xf32>
    %1527 = arith.addf %1523, %1526 : vector<8x8xf32>
    %c71_578 = arith.constant 71 : index
    %1528 = memref.load %arg3[%c71_578] : memref<128xf32, #tpu.memory_space<smem>>
    %1529 = vector.broadcast %1528 : f32 to vector<8x8xf32>
    %1530 = arith.mulf %1159, %1529 : vector<8x8xf32>
    %1531 = arith.addf %1527, %1530 : vector<8x8xf32>
    %c17_579 = arith.constant 17 : index
    %1532 = memref.load %arg4[%c17_579] : memref<32xf32, #tpu.memory_space<smem>>
    %1533 = vector.broadcast %1532 : f32 to vector<8x8xf32>
    %1534 = arith.addf %1531, %1533 : vector<8x8xf32>
    %c49_580 = arith.constant 49 : index
    %c0_581 = arith.constant 0 : index
    %c0_582 = arith.constant 0 : index
    %1535 = vector.load %arg5[%c49_580, %c0_581, %c0_582] : memref<64x8x8xf32, #tpu.memory_space<vmem>>, vector<1x8x8xf32>
    %1536 = vector.shape_cast %1535 : vector<1x8x8xf32> to vector<8x8xf32>
    %1537 = vector.shape_cast %1534 : vector<8x8xf32> to vector<1x8x8xf32>
    tpu.vector_store %arg5[%c49_580, %c0_581, %c0_582], %1537 {strides = array<i32>} : memref<64x8x8xf32, #tpu.memory_space<vmem>>, vector<1x8x8xf32>,
    %c72_583 = arith.constant 72 : index
    %1538 = memref.load %arg3[%c72_583] : memref<128xf32, #tpu.memory_space<smem>>
    %1539 = vector.broadcast %1538 : f32 to vector<8x8xf32>
    %1540 = arith.mulf %976, %1539 : vector<8x8xf32>
    %c73_584 = arith.constant 73 : index
    %1541 = memref.load %arg3[%c73_584] : memref<128xf32, #tpu.memory_space<smem>>
    %1542 = vector.broadcast %1541 : f32 to vector<8x8xf32>
    %1543 = arith.mulf %1037, %1542 : vector<8x8xf32>
    %1544 = arith.addf %1540, %1543 : vector<8x8xf32>
    %c74_585 = arith.constant 74 : index
    %1545 = memref.load %arg3[%c74_585] : memref<128xf32, #tpu.memory_space<smem>>
    %1546 = vector.broadcast %1545 : f32 to vector<8x8xf32>
    %1547 = arith.mulf %1098, %1546 : vector<8x8xf32>
    %1548 = arith.addf %1544, %1547 : vector<8x8xf32>
    %c75_586 = arith.constant 75 : index
    %1549 = memref.load %arg3[%c75_586] : memref<128xf32, #tpu.memory_space<smem>>
    %1550 = vector.broadcast %1549 : f32 to vector<8x8xf32>
    %1551 = arith.mulf %1159, %1550 : vector<8x8xf32>
    %1552 = arith.addf %1548, %1551 : vector<8x8xf32>
    %c18_587 = arith.constant 18 : index
    %1553 = memref.load %arg4[%c18_587] : memref<32xf32, #tpu.memory_space<smem>>
    %1554 = vector.broadcast %1553 : f32 to vector<8x8xf32>
    %1555 = arith.addf %1552, %1554 : vector<8x8xf32>
    %c50_588 = arith.constant 50 : index
    %c0_589 = arith.constant 0 : index
    %c0_590 = arith.constant 0 : index
    %1556 = vector.load %arg5[%c50_588, %c0_589, %c0_590] : memref<64x8x8xf32, #tpu.memory_space<vmem>>, vector<1x8x8xf32>
    %1557 = vector.shape_cast %1556 : vector<1x8x8xf32> to vector<8x8xf32>
    %1558 = vector.shape_cast %1555 : vector<8x8xf32> to vector<1x8x8xf32>
    tpu.vector_store %arg5[%c50_588, %c0_589, %c0_590], %1558 {strides = array<i32>} : memref<64x8x8xf32, #tpu.memory_space<vmem>>, vector<1x8x8xf32>,
    %c76_591 = arith.constant 76 : index
    %1559 = memref.load %arg3[%c76_591] : memref<128xf32, #tpu.memory_space<smem>>
    %1560 = vector.broadcast %1559 : f32 to vector<8x8xf32>
    %1561 = arith.mulf %976, %1560 : vector<8x8xf32>
    %c77_592 = arith.constant 77 : index
    %1562 = memref.load %arg3[%c77_592] : memref<128xf32, #tpu.memory_space<smem>>
    %1563 = vector.broadcast %1562 : f32 to vector<8x8xf32>
    %1564 = arith.mulf %1037, %1563 : vector<8x8xf32>
    %1565 = arith.addf %1561, %1564 : vector<8x8xf32>
    %c78_593 = arith.constant 78 : index
    %1566 = memref.load %arg3[%c78_593] : memref<128xf32, #tpu.memory_space<smem>>
    %1567 = vector.broadcast %1566 : f32 to vector<8x8xf32>
    %1568 = arith.mulf %1098, %1567 : vector<8x8xf32>
    %1569 = arith.addf %1565, %1568 : vector<8x8xf32>
    %c79_594 = arith.constant 79 : index
    %1570 = memref.load %arg3[%c79_594] : memref<128xf32, #tpu.memory_space<smem>>
    %1571 = vector.broadcast %1570 : f32 to vector<8x8xf32>
    %1572 = arith.mulf %1159, %1571 : vector<8x8xf32>
    %1573 = arith.addf %1569, %1572 : vector<8x8xf32>
    %c19_595 = arith.constant 19 : index
    %1574 = memref.load %arg4[%c19_595] : memref<32xf32, #tpu.memory_space<smem>>
    %1575 = vector.broadcast %1574 : f32 to vector<8x8xf32>
    %1576 = arith.addf %1573, %1575 : vector<8x8xf32>
    %c51_596 = arith.constant 51 : index
    %c0_597 = arith.constant 0 : index
    %c0_598 = arith.constant 0 : index
    %1577 = vector.load %arg5[%c51_596, %c0_597, %c0_598] : memref<64x8x8xf32, #tpu.memory_space<vmem>>, vector<1x8x8xf32>
    %1578 = vector.shape_cast %1577 : vector<1x8x8xf32> to vector<8x8xf32>
    %1579 = vector.shape_cast %1576 : vector<8x8xf32> to vector<1x8x8xf32>
    tpu.vector_store %arg5[%c51_596, %c0_597, %c0_598], %1579 {strides = array<i32>} : memref<64x8x8xf32, #tpu.memory_space<vmem>>, vector<1x8x8xf32>,
    %c80_599 = arith.constant 80 : index
    %1580 = memref.load %arg3[%c80_599] : memref<128xf32, #tpu.memory_space<smem>>
    %1581 = vector.broadcast %1580 : f32 to vector<8x8xf32>
    %1582 = arith.mulf %976, %1581 : vector<8x8xf32>
    %c81_600 = arith.constant 81 : index
    %1583 = memref.load %arg3[%c81_600] : memref<128xf32, #tpu.memory_space<smem>>
    %1584 = vector.broadcast %1583 : f32 to vector<8x8xf32>
    %1585 = arith.mulf %1037, %1584 : vector<8x8xf32>
    %1586 = arith.addf %1582, %1585 : vector<8x8xf32>
    %c82_601 = arith.constant 82 : index
    %1587 = memref.load %arg3[%c82_601] : memref<128xf32, #tpu.memory_space<smem>>
    %1588 = vector.broadcast %1587 : f32 to vector<8x8xf32>
    %1589 = arith.mulf %1098, %1588 : vector<8x8xf32>
    %1590 = arith.addf %1586, %1589 : vector<8x8xf32>
    %c83_602 = arith.constant 83 : index
    %1591 = memref.load %arg3[%c83_602] : memref<128xf32, #tpu.memory_space<smem>>
    %1592 = vector.broadcast %1591 : f32 to vector<8x8xf32>
    %1593 = arith.mulf %1159, %1592 : vector<8x8xf32>
    %1594 = arith.addf %1590, %1593 : vector<8x8xf32>
    %c20_603 = arith.constant 20 : index
    %1595 = memref.load %arg4[%c20_603] : memref<32xf32, #tpu.memory_space<smem>>
    %1596 = vector.broadcast %1595 : f32 to vector<8x8xf32>
    %1597 = arith.addf %1594, %1596 : vector<8x8xf32>
    %c52_604 = arith.constant 52 : index
    %c0_605 = arith.constant 0 : index
    %c0_606 = arith.constant 0 : index
    %1598 = vector.load %arg5[%c52_604, %c0_605, %c0_606] : memref<64x8x8xf32, #tpu.memory_space<vmem>>, vector<1x8x8xf32>
    %1599 = vector.shape_cast %1598 : vector<1x8x8xf32> to vector<8x8xf32>
    %1600 = vector.shape_cast %1597 : vector<8x8xf32> to vector<1x8x8xf32>
    tpu.vector_store %arg5[%c52_604, %c0_605, %c0_606], %1600 {strides = array<i32>} : memref<64x8x8xf32, #tpu.memory_space<vmem>>, vector<1x8x8xf32>,
    %c84_607 = arith.constant 84 : index
    %1601 = memref.load %arg3[%c84_607] : memref<128xf32, #tpu.memory_space<smem>>
    %1602 = vector.broadcast %1601 : f32 to vector<8x8xf32>
    %1603 = arith.mulf %976, %1602 : vector<8x8xf32>
    %c85_608 = arith.constant 85 : index
    %1604 = memref.load %arg3[%c85_608] : memref<128xf32, #tpu.memory_space<smem>>
    %1605 = vector.broadcast %1604 : f32 to vector<8x8xf32>
    %1606 = arith.mulf %1037, %1605 : vector<8x8xf32>
    %1607 = arith.addf %1603, %1606 : vector<8x8xf32>
    %c86_609 = arith.constant 86 : index
    %1608 = memref.load %arg3[%c86_609] : memref<128xf32, #tpu.memory_space<smem>>
    %1609 = vector.broadcast %1608 : f32 to vector<8x8xf32>
    %1610 = arith.mulf %1098, %1609 : vector<8x8xf32>
    %1611 = arith.addf %1607, %1610 : vector<8x8xf32>
    %c87_610 = arith.constant 87 : index
    %1612 = memref.load %arg3[%c87_610] : memref<128xf32, #tpu.memory_space<smem>>
    %1613 = vector.broadcast %1612 : f32 to vector<8x8xf32>
    %1614 = arith.mulf %1159, %1613 : vector<8x8xf32>
    %1615 = arith.addf %1611, %1614 : vector<8x8xf32>
    %c21_611 = arith.constant 21 : index
    %1616 = memref.load %arg4[%c21_611] : memref<32xf32, #tpu.memory_space<smem>>
    %1617 = vector.broadcast %1616 : f32 to vector<8x8xf32>
    %1618 = arith.addf %1615, %1617 : vector<8x8xf32>
    %c53_612 = arith.constant 53 : index
    %c0_613 = arith.constant 0 : index
    %c0_614 = arith.constant 0 : index
    %1619 = vector.load %arg5[%c53_612, %c0_613, %c0_614] : memref<64x8x8xf32, #tpu.memory_space<vmem>>, vector<1x8x8xf32>
    %1620 = vector.shape_cast %1619 : vector<1x8x8xf32> to vector<8x8xf32>
    %1621 = vector.shape_cast %1618 : vector<8x8xf32> to vector<1x8x8xf32>
    tpu.vector_store %arg5[%c53_612, %c0_613, %c0_614], %1621 {strides = array<i32>} : memref<64x8x8xf32, #tpu.memory_space<vmem>>, vector<1x8x8xf32>,
    %c88_615 = arith.constant 88 : index
    %1622 = memref.load %arg3[%c88_615] : memref<128xf32, #tpu.memory_space<smem>>
    %1623 = vector.broadcast %1622 : f32 to vector<8x8xf32>
    %1624 = arith.mulf %976, %1623 : vector<8x8xf32>
    %c89_616 = arith.constant 89 : index
    %1625 = memref.load %arg3[%c89_616] : memref<128xf32, #tpu.memory_space<smem>>
    %1626 = vector.broadcast %1625 : f32 to vector<8x8xf32>
    %1627 = arith.mulf %1037, %1626 : vector<8x8xf32>
    %1628 = arith.addf %1624, %1627 : vector<8x8xf32>
    %c90_617 = arith.constant 90 : index
    %1629 = memref.load %arg3[%c90_617] : memref<128xf32, #tpu.memory_space<smem>>
    %1630 = vector.broadcast %1629 : f32 to vector<8x8xf32>
    %1631 = arith.mulf %1098, %1630 : vector<8x8xf32>
    %1632 = arith.addf %1628, %1631 : vector<8x8xf32>
    %c91_618 = arith.constant 91 : index
    %1633 = memref.load %arg3[%c91_618] : memref<128xf32, #tpu.memory_space<smem>>
    %1634 = vector.broadcast %1633 : f32 to vector<8x8xf32>
    %1635 = arith.mulf %1159, %1634 : vector<8x8xf32>
    %1636 = arith.addf %1632, %1635 : vector<8x8xf32>
    %c22_619 = arith.constant 22 : index
    %1637 = memref.load %arg4[%c22_619] : memref<32xf32, #tpu.memory_space<smem>>
    %1638 = vector.broadcast %1637 : f32 to vector<8x8xf32>
    %1639 = arith.addf %1636, %1638 : vector<8x8xf32>
    %c54_620 = arith.constant 54 : index
    %c0_621 = arith.constant 0 : index
    %c0_622 = arith.constant 0 : index
    %1640 = vector.load %arg5[%c54_620, %c0_621, %c0_622] : memref<64x8x8xf32, #tpu.memory_space<vmem>>, vector<1x8x8xf32>
    %1641 = vector.shape_cast %1640 : vector<1x8x8xf32> to vector<8x8xf32>
    %1642 = vector.shape_cast %1639 : vector<8x8xf32> to vector<1x8x8xf32>
    tpu.vector_store %arg5[%c54_620, %c0_621, %c0_622], %1642 {strides = array<i32>} : memref<64x8x8xf32, #tpu.memory_space<vmem>>, vector<1x8x8xf32>,
    %c92_623 = arith.constant 92 : index
    %1643 = memref.load %arg3[%c92_623] : memref<128xf32, #tpu.memory_space<smem>>
    %1644 = vector.broadcast %1643 : f32 to vector<8x8xf32>
    %1645 = arith.mulf %976, %1644 : vector<8x8xf32>
    %c93_624 = arith.constant 93 : index
    %1646 = memref.load %arg3[%c93_624] : memref<128xf32, #tpu.memory_space<smem>>
    %1647 = vector.broadcast %1646 : f32 to vector<8x8xf32>
    %1648 = arith.mulf %1037, %1647 : vector<8x8xf32>
    %1649 = arith.addf %1645, %1648 : vector<8x8xf32>
    %c94_625 = arith.constant 94 : index
    %1650 = memref.load %arg3[%c94_625] : memref<128xf32, #tpu.memory_space<smem>>
    %1651 = vector.broadcast %1650 : f32 to vector<8x8xf32>
    %1652 = arith.mulf %1098, %1651 : vector<8x8xf32>
    %1653 = arith.addf %1649, %1652 : vector<8x8xf32>
    %c95_626 = arith.constant 95 : index
    %1654 = memref.load %arg3[%c95_626] : memref<128xf32, #tpu.memory_space<smem>>
    %1655 = vector.broadcast %1654 : f32 to vector<8x8xf32>
    %1656 = arith.mulf %1159, %1655 : vector<8x8xf32>
    %1657 = arith.addf %1653, %1656 : vector<8x8xf32>
    %c23_627 = arith.constant 23 : index
    %1658 = memref.load %arg4[%c23_627] : memref<32xf32, #tpu.memory_space<smem>>
    %1659 = vector.broadcast %1658 : f32 to vector<8x8xf32>
    %1660 = arith.addf %1657, %1659 : vector<8x8xf32>
    %c55_628 = arith.constant 55 : index
    %c0_629 = arith.constant 0 : index
    %c0_630 = arith.constant 0 : index
    %1661 = vector.load %arg5[%c55_628, %c0_629, %c0_630] : memref<64x8x8xf32, #tpu.memory_space<vmem>>, vector<1x8x8xf32>
    %1662 = vector.shape_cast %1661 : vector<1x8x8xf32> to vector<8x8xf32>
    %1663 = vector.shape_cast %1660 : vector<8x8xf32> to vector<1x8x8xf32>
    tpu.vector_store %arg5[%c55_628, %c0_629, %c0_630], %1663 {strides = array<i32>} : memref<64x8x8xf32, #tpu.memory_space<vmem>>, vector<1x8x8xf32>,
    %c96_631 = arith.constant 96 : index
    %1664 = memref.load %arg3[%c96_631] : memref<128xf32, #tpu.memory_space<smem>>
    %1665 = vector.broadcast %1664 : f32 to vector<8x8xf32>
    %1666 = arith.mulf %976, %1665 : vector<8x8xf32>
    %c97_632 = arith.constant 97 : index
    %1667 = memref.load %arg3[%c97_632] : memref<128xf32, #tpu.memory_space<smem>>
    %1668 = vector.broadcast %1667 : f32 to vector<8x8xf32>
    %1669 = arith.mulf %1037, %1668 : vector<8x8xf32>
    %1670 = arith.addf %1666, %1669 : vector<8x8xf32>
    %c98_633 = arith.constant 98 : index
    %1671 = memref.load %arg3[%c98_633] : memref<128xf32, #tpu.memory_space<smem>>
    %1672 = vector.broadcast %1671 : f32 to vector<8x8xf32>
    %1673 = arith.mulf %1098, %1672 : vector<8x8xf32>
    %1674 = arith.addf %1670, %1673 : vector<8x8xf32>
    %c99_634 = arith.constant 99 : index
    %1675 = memref.load %arg3[%c99_634] : memref<128xf32, #tpu.memory_space<smem>>
    %1676 = vector.broadcast %1675 : f32 to vector<8x8xf32>
    %1677 = arith.mulf %1159, %1676 : vector<8x8xf32>
    %1678 = arith.addf %1674, %1677 : vector<8x8xf32>
    %c24_635 = arith.constant 24 : index
    %1679 = memref.load %arg4[%c24_635] : memref<32xf32, #tpu.memory_space<smem>>
    %1680 = vector.broadcast %1679 : f32 to vector<8x8xf32>
    %1681 = arith.addf %1678, %1680 : vector<8x8xf32>
    %c56_636 = arith.constant 56 : index
    %c0_637 = arith.constant 0 : index
    %c0_638 = arith.constant 0 : index
    %1682 = vector.load %arg5[%c56_636, %c0_637, %c0_638] : memref<64x8x8xf32, #tpu.memory_space<vmem>>, vector<1x8x8xf32>
    %1683 = vector.shape_cast %1682 : vector<1x8x8xf32> to vector<8x8xf32>
    %1684 = vector.shape_cast %1681 : vector<8x8xf32> to vector<1x8x8xf32>
    tpu.vector_store %arg5[%c56_636, %c0_637, %c0_638], %1684 {strides = array<i32>} : memref<64x8x8xf32, #tpu.memory_space<vmem>>, vector<1x8x8xf32>,
    %c100_639 = arith.constant 100 : index
    %1685 = memref.load %arg3[%c100_639] : memref<128xf32, #tpu.memory_space<smem>>
    %1686 = vector.broadcast %1685 : f32 to vector<8x8xf32>
    %1687 = arith.mulf %976, %1686 : vector<8x8xf32>
    %c101_640 = arith.constant 101 : index
    %1688 = memref.load %arg3[%c101_640] : memref<128xf32, #tpu.memory_space<smem>>
    %1689 = vector.broadcast %1688 : f32 to vector<8x8xf32>
    %1690 = arith.mulf %1037, %1689 : vector<8x8xf32>
    %1691 = arith.addf %1687, %1690 : vector<8x8xf32>
    %c102_641 = arith.constant 102 : index
    %1692 = memref.load %arg3[%c102_641] : memref<128xf32, #tpu.memory_space<smem>>
    %1693 = vector.broadcast %1692 : f32 to vector<8x8xf32>
    %1694 = arith.mulf %1098, %1693 : vector<8x8xf32>
    %1695 = arith.addf %1691, %1694 : vector<8x8xf32>
    %c103_642 = arith.constant 103 : index
    %1696 = memref.load %arg3[%c103_642] : memref<128xf32, #tpu.memory_space<smem>>
    %1697 = vector.broadcast %1696 : f32 to vector<8x8xf32>
    %1698 = arith.mulf %1159, %1697 : vector<8x8xf32>
    %1699 = arith.addf %1695, %1698 : vector<8x8xf32>
    %c25_643 = arith.constant 25 : index
    %1700 = memref.load %arg4[%c25_643] : memref<32xf32, #tpu.memory_space<smem>>
    %1701 = vector.broadcast %1700 : f32 to vector<8x8xf32>
    %1702 = arith.addf %1699, %1701 : vector<8x8xf32>
    %c57_644 = arith.constant 57 : index
    %c0_645 = arith.constant 0 : index
    %c0_646 = arith.constant 0 : index
    %1703 = vector.load %arg5[%c57_644, %c0_645, %c0_646] : memref<64x8x8xf32, #tpu.memory_space<vmem>>, vector<1x8x8xf32>
    %1704 = vector.shape_cast %1703 : vector<1x8x8xf32> to vector<8x8xf32>
    %1705 = vector.shape_cast %1702 : vector<8x8xf32> to vector<1x8x8xf32>
    tpu.vector_store %arg5[%c57_644, %c0_645, %c0_646], %1705 {strides = array<i32>} : memref<64x8x8xf32, #tpu.memory_space<vmem>>, vector<1x8x8xf32>,
    %c104_647 = arith.constant 104 : index
    %1706 = memref.load %arg3[%c104_647] : memref<128xf32, #tpu.memory_space<smem>>
    %1707 = vector.broadcast %1706 : f32 to vector<8x8xf32>
    %1708 = arith.mulf %976, %1707 : vector<8x8xf32>
    %c105_648 = arith.constant 105 : index
    %1709 = memref.load %arg3[%c105_648] : memref<128xf32, #tpu.memory_space<smem>>
    %1710 = vector.broadcast %1709 : f32 to vector<8x8xf32>
    %1711 = arith.mulf %1037, %1710 : vector<8x8xf32>
    %1712 = arith.addf %1708, %1711 : vector<8x8xf32>
    %c106_649 = arith.constant 106 : index
    %1713 = memref.load %arg3[%c106_649] : memref<128xf32, #tpu.memory_space<smem>>
    %1714 = vector.broadcast %1713 : f32 to vector<8x8xf32>
    %1715 = arith.mulf %1098, %1714 : vector<8x8xf32>
    %1716 = arith.addf %1712, %1715 : vector<8x8xf32>
    %c107_650 = arith.constant 107 : index
    %1717 = memref.load %arg3[%c107_650] : memref<128xf32, #tpu.memory_space<smem>>
    %1718 = vector.broadcast %1717 : f32 to vector<8x8xf32>
    %1719 = arith.mulf %1159, %1718 : vector<8x8xf32>
    %1720 = arith.addf %1716, %1719 : vector<8x8xf32>
    %c26_651 = arith.constant 26 : index
    %1721 = memref.load %arg4[%c26_651] : memref<32xf32, #tpu.memory_space<smem>>
    %1722 = vector.broadcast %1721 : f32 to vector<8x8xf32>
    %1723 = arith.addf %1720, %1722 : vector<8x8xf32>
    %c58_652 = arith.constant 58 : index
    %c0_653 = arith.constant 0 : index
    %c0_654 = arith.constant 0 : index
    %1724 = vector.load %arg5[%c58_652, %c0_653, %c0_654] : memref<64x8x8xf32, #tpu.memory_space<vmem>>, vector<1x8x8xf32>
    %1725 = vector.shape_cast %1724 : vector<1x8x8xf32> to vector<8x8xf32>
    %1726 = vector.shape_cast %1723 : vector<8x8xf32> to vector<1x8x8xf32>
    tpu.vector_store %arg5[%c58_652, %c0_653, %c0_654], %1726 {strides = array<i32>} : memref<64x8x8xf32, #tpu.memory_space<vmem>>, vector<1x8x8xf32>,
    %c108_655 = arith.constant 108 : index
    %1727 = memref.load %arg3[%c108_655] : memref<128xf32, #tpu.memory_space<smem>>
    %1728 = vector.broadcast %1727 : f32 to vector<8x8xf32>
    %1729 = arith.mulf %976, %1728 : vector<8x8xf32>
    %c109_656 = arith.constant 109 : index
    %1730 = memref.load %arg3[%c109_656] : memref<128xf32, #tpu.memory_space<smem>>
    %1731 = vector.broadcast %1730 : f32 to vector<8x8xf32>
    %1732 = arith.mulf %1037, %1731 : vector<8x8xf32>
    %1733 = arith.addf %1729, %1732 : vector<8x8xf32>
    %c110_657 = arith.constant 110 : index
    %1734 = memref.load %arg3[%c110_657] : memref<128xf32, #tpu.memory_space<smem>>
    %1735 = vector.broadcast %1734 : f32 to vector<8x8xf32>
    %1736 = arith.mulf %1098, %1735 : vector<8x8xf32>
    %1737 = arith.addf %1733, %1736 : vector<8x8xf32>
    %c111_658 = arith.constant 111 : index
    %1738 = memref.load %arg3[%c111_658] : memref<128xf32, #tpu.memory_space<smem>>
    %1739 = vector.broadcast %1738 : f32 to vector<8x8xf32>
    %1740 = arith.mulf %1159, %1739 : vector<8x8xf32>
    %1741 = arith.addf %1737, %1740 : vector<8x8xf32>
    %c27_659 = arith.constant 27 : index
    %1742 = memref.load %arg4[%c27_659] : memref<32xf32, #tpu.memory_space<smem>>
    %1743 = vector.broadcast %1742 : f32 to vector<8x8xf32>
    %1744 = arith.addf %1741, %1743 : vector<8x8xf32>
    %c59_660 = arith.constant 59 : index
    %c0_661 = arith.constant 0 : index
    %c0_662 = arith.constant 0 : index
    %1745 = vector.load %arg5[%c59_660, %c0_661, %c0_662] : memref<64x8x8xf32, #tpu.memory_space<vmem>>, vector<1x8x8xf32>
    %1746 = vector.shape_cast %1745 : vector<1x8x8xf32> to vector<8x8xf32>
    %1747 = vector.shape_cast %1744 : vector<8x8xf32> to vector<1x8x8xf32>
    tpu.vector_store %arg5[%c59_660, %c0_661, %c0_662], %1747 {strides = array<i32>} : memref<64x8x8xf32, #tpu.memory_space<vmem>>, vector<1x8x8xf32>,
    %c112_663 = arith.constant 112 : index
    %1748 = memref.load %arg3[%c112_663] : memref<128xf32, #tpu.memory_space<smem>>
    %1749 = vector.broadcast %1748 : f32 to vector<8x8xf32>
    %1750 = arith.mulf %976, %1749 : vector<8x8xf32>
    %c113_664 = arith.constant 113 : index
    %1751 = memref.load %arg3[%c113_664] : memref<128xf32, #tpu.memory_space<smem>>
    %1752 = vector.broadcast %1751 : f32 to vector<8x8xf32>
    %1753 = arith.mulf %1037, %1752 : vector<8x8xf32>
    %1754 = arith.addf %1750, %1753 : vector<8x8xf32>
    %c114_665 = arith.constant 114 : index
    %1755 = memref.load %arg3[%c114_665] : memref<128xf32, #tpu.memory_space<smem>>
    %1756 = vector.broadcast %1755 : f32 to vector<8x8xf32>
    %1757 = arith.mulf %1098, %1756 : vector<8x8xf32>
    %1758 = arith.addf %1754, %1757 : vector<8x8xf32>
    %c115_666 = arith.constant 115 : index
    %1759 = memref.load %arg3[%c115_666] : memref<128xf32, #tpu.memory_space<smem>>
    %1760 = vector.broadcast %1759 : f32 to vector<8x8xf32>
    %1761 = arith.mulf %1159, %1760 : vector<8x8xf32>
    %1762 = arith.addf %1758, %1761 : vector<8x8xf32>
    %c28_667 = arith.constant 28 : index
    %1763 = memref.load %arg4[%c28_667] : memref<32xf32, #tpu.memory_space<smem>>
    %1764 = vector.broadcast %1763 : f32 to vector<8x8xf32>
    %1765 = arith.addf %1762, %1764 : vector<8x8xf32>
    %c60_668 = arith.constant 60 : index
    %c0_669 = arith.constant 0 : index
    %c0_670 = arith.constant 0 : index
    %1766 = vector.load %arg5[%c60_668, %c0_669, %c0_670] : memref<64x8x8xf32, #tpu.memory_space<vmem>>, vector<1x8x8xf32>
    %1767 = vector.shape_cast %1766 : vector<1x8x8xf32> to vector<8x8xf32>
    %1768 = vector.shape_cast %1765 : vector<8x8xf32> to vector<1x8x8xf32>
    tpu.vector_store %arg5[%c60_668, %c0_669, %c0_670], %1768 {strides = array<i32>} : memref<64x8x8xf32, #tpu.memory_space<vmem>>, vector<1x8x8xf32>,
    %c116_671 = arith.constant 116 : index
    %1769 = memref.load %arg3[%c116_671] : memref<128xf32, #tpu.memory_space<smem>>
    %1770 = vector.broadcast %1769 : f32 to vector<8x8xf32>
    %1771 = arith.mulf %976, %1770 : vector<8x8xf32>
    %c117_672 = arith.constant 117 : index
    %1772 = memref.load %arg3[%c117_672] : memref<128xf32, #tpu.memory_space<smem>>
    %1773 = vector.broadcast %1772 : f32 to vector<8x8xf32>
    %1774 = arith.mulf %1037, %1773 : vector<8x8xf32>
    %1775 = arith.addf %1771, %1774 : vector<8x8xf32>
    %c118_673 = arith.constant 118 : index
    %1776 = memref.load %arg3[%c118_673] : memref<128xf32, #tpu.memory_space<smem>>
    %1777 = vector.broadcast %1776 : f32 to vector<8x8xf32>
    %1778 = arith.mulf %1098, %1777 : vector<8x8xf32>
    %1779 = arith.addf %1775, %1778 : vector<8x8xf32>
    %c119_674 = arith.constant 119 : index
    %1780 = memref.load %arg3[%c119_674] : memref<128xf32, #tpu.memory_space<smem>>
    %1781 = vector.broadcast %1780 : f32 to vector<8x8xf32>
    %1782 = arith.mulf %1159, %1781 : vector<8x8xf32>
    %1783 = arith.addf %1779, %1782 : vector<8x8xf32>
    %c29_675 = arith.constant 29 : index
    %1784 = memref.load %arg4[%c29_675] : memref<32xf32, #tpu.memory_space<smem>>
    %1785 = vector.broadcast %1784 : f32 to vector<8x8xf32>
    %1786 = arith.addf %1783, %1785 : vector<8x8xf32>
    %c61_676 = arith.constant 61 : index
    %c0_677 = arith.constant 0 : index
    %c0_678 = arith.constant 0 : index
    %1787 = vector.load %arg5[%c61_676, %c0_677, %c0_678] : memref<64x8x8xf32, #tpu.memory_space<vmem>>, vector<1x8x8xf32>
    %1788 = vector.shape_cast %1787 : vector<1x8x8xf32> to vector<8x8xf32>
    %1789 = vector.shape_cast %1786 : vector<8x8xf32> to vector<1x8x8xf32>
    tpu.vector_store %arg5[%c61_676, %c0_677, %c0_678], %1789 {strides = array<i32>} : memref<64x8x8xf32, #tpu.memory_space<vmem>>, vector<1x8x8xf32>,
    %c120_679 = arith.constant 120 : index
    %1790 = memref.load %arg3[%c120_679] : memref<128xf32, #tpu.memory_space<smem>>
    %1791 = vector.broadcast %1790 : f32 to vector<8x8xf32>
    %1792 = arith.mulf %976, %1791 : vector<8x8xf32>
    %c121_680 = arith.constant 121 : index
    %1793 = memref.load %arg3[%c121_680] : memref<128xf32, #tpu.memory_space<smem>>
    %1794 = vector.broadcast %1793 : f32 to vector<8x8xf32>
    %1795 = arith.mulf %1037, %1794 : vector<8x8xf32>
    %1796 = arith.addf %1792, %1795 : vector<8x8xf32>
    %c122_681 = arith.constant 122 : index
    %1797 = memref.load %arg3[%c122_681] : memref<128xf32, #tpu.memory_space<smem>>
    %1798 = vector.broadcast %1797 : f32 to vector<8x8xf32>
    %1799 = arith.mulf %1098, %1798 : vector<8x8xf32>
    %1800 = arith.addf %1796, %1799 : vector<8x8xf32>
    %c123_682 = arith.constant 123 : index
    %1801 = memref.load %arg3[%c123_682] : memref<128xf32, #tpu.memory_space<smem>>
    %1802 = vector.broadcast %1801 : f32 to vector<8x8xf32>
    %1803 = arith.mulf %1159, %1802 : vector<8x8xf32>
    %1804 = arith.addf %1800, %1803 : vector<8x8xf32>
    %c30_683 = arith.constant 30 : index
    %1805 = memref.load %arg4[%c30_683] : memref<32xf32, #tpu.memory_space<smem>>
    %1806 = vector.broadcast %1805 : f32 to vector<8x8xf32>
    %1807 = arith.addf %1804, %1806 : vector<8x8xf32>
    %c62_684 = arith.constant 62 : index
    %c0_685 = arith.constant 0 : index
    %c0_686 = arith.constant 0 : index
    %1808 = vector.load %arg5[%c62_684, %c0_685, %c0_686] : memref<64x8x8xf32, #tpu.memory_space<vmem>>, vector<1x8x8xf32>
    %1809 = vector.shape_cast %1808 : vector<1x8x8xf32> to vector<8x8xf32>
    %1810 = vector.shape_cast %1807 : vector<8x8xf32> to vector<1x8x8xf32>
    tpu.vector_store %arg5[%c62_684, %c0_685, %c0_686], %1810 {strides = array<i32>} : memref<64x8x8xf32, #tpu.memory_space<vmem>>, vector<1x8x8xf32>,
    %c124_687 = arith.constant 124 : index
    %1811 = memref.load %arg3[%c124_687] : memref<128xf32, #tpu.memory_space<smem>>
    %1812 = vector.broadcast %1811 : f32 to vector<8x8xf32>
    %1813 = arith.mulf %976, %1812 : vector<8x8xf32>
    %c125_688 = arith.constant 125 : index
    %1814 = memref.load %arg3[%c125_688] : memref<128xf32, #tpu.memory_space<smem>>
    %1815 = vector.broadcast %1814 : f32 to vector<8x8xf32>
    %1816 = arith.mulf %1037, %1815 : vector<8x8xf32>
    %1817 = arith.addf %1813, %1816 : vector<8x8xf32>
    %c126_689 = arith.constant 126 : index
    %1818 = memref.load %arg3[%c126_689] : memref<128xf32, #tpu.memory_space<smem>>
    %1819 = vector.broadcast %1818 : f32 to vector<8x8xf32>
    %1820 = arith.mulf %1098, %1819 : vector<8x8xf32>
    %1821 = arith.addf %1817, %1820 : vector<8x8xf32>
    %c127_690 = arith.constant 127 : index
    %1822 = memref.load %arg3[%c127_690] : memref<128xf32, #tpu.memory_space<smem>>
    %1823 = vector.broadcast %1822 : f32 to vector<8x8xf32>
    %1824 = arith.mulf %1159, %1823 : vector<8x8xf32>
    %1825 = arith.addf %1821, %1824 : vector<8x8xf32>
    %c31_691 = arith.constant 31 : index
    %1826 = memref.load %arg4[%c31_691] : memref<32xf32, #tpu.memory_space<smem>>
    %1827 = vector.broadcast %1826 : f32 to vector<8x8xf32>
    %1828 = arith.addf %1825, %1827 : vector<8x8xf32>
    %c63_692 = arith.constant 63 : index
    %c0_693 = arith.constant 0 : index
    %c0_694 = arith.constant 0 : index
    %1829 = vector.load %arg5[%c63_692, %c0_693, %c0_694] : memref<64x8x8xf32, #tpu.memory_space<vmem>>, vector<1x8x8xf32>
    %1830 = vector.shape_cast %1829 : vector<1x8x8xf32> to vector<8x8xf32>
    %1831 = vector.shape_cast %1828 : vector<8x8xf32> to vector<1x8x8xf32>
    tpu.vector_store %arg5[%c63_692, %c0_693, %c0_694], %1831 {strides = array<i32>} : memref<64x8x8xf32, #tpu.memory_space<vmem>>, vector<1x8x8xf32>,
    return
  }
}

</mosaic_0001>

<llo_original>
// kernel: tpu_custom_call.1
$region0: #{tpu_custom_call.1}
  #allocation0 [shape = 'u32[]', space=smem, size = 0x4, offset = 0x4, fixed_abs, tag = 'smem constant byte address 0x4 - core index']
  #allocation1 [shape = 'u32[144,128]{1,0:T(1,128)}', space=vmem, size = 0x12000, scoped, tag = 'internal scratch']
  %s0 = inlined_call_operand.vmem [shape: f32[32,9,9], index: 0, kind: input, shape index: {}]
  %s1 = inlined_call_operand.vmem [shape: f32[36], index: 1, kind: input, shape index: {}]
  %s2 = inlined_call_operand.vmem [shape: f32[4], index: 2, kind: input, shape index: {}]
  %s3 = inlined_call_operand.vmem [shape: f32[128], index: 3, kind: input, shape index: {}]
  %s4 = inlined_call_operand.vmem [shape: f32[32], index: 4, kind: input, shape index: {}]
  %s5 = inlined_call_operand.vmem [shape: f32[64,8,8], index: 5, kind: output, shape index: {}]
  %s6 = sld [smem:[#allocation0]]
  $region46: #{tpu_custom_call.1} parent=0
    _
  %s8 = ssub.s32 1, %s6
  %s9 = scalar_select 0, %s8, %s6
  $region1: #{tpu_custom_call.1} parent=0
    #allocation2 [shape = 'u8[512]{0}', space=smem, size = 0x200, scoped, tag = 'input window, operand 1, single buffered']
    #allocation3 [shape = 's32[1]{0}', space=sflag, size = 0x4, scoped, tag = 'scoped memory for tpu_custom_call.1']
    #allocation4 [shape = 'u8[512]{0}', space=smem, size = 0x200, scoped, tag = 'input window, operand 2, single buffered']
    #allocation5 [shape = 's32[1]{0}', space=sflag, size = 0x4, scoped, tag = 'scoped memory for tpu_custom_call.1']
    #allocation6 [shape = 'u8[512]{0}', space=smem, size = 0x200, scoped, tag = 'input window, operand 3, single buffered']
    #allocation7 [shape = 'u8[512]{0}', space=smem, size = 0x200, scoped, tag = 'input window, operand 4, single buffered']
    #allocation8 [shape = 's32[1]{0}', space=sflag, size = 0x4, scoped, tag = 'scoped memory for tpu_custom_call.1']
    %10 = vsyncpa [#allocation3], 0
    %11 = vsyncpa [#allocation5], 0
    %12 = vsyncpa [#allocation8], 0
    // Predicated region
    $region2: #{tpu_custom_call.1} parent=1 // pred_check
      _
    $region3: #{tpu_custom_call.1} parent=1 // pred_check_branch
      %14 = sbr.rel (0) target = $region5
    $region4: #{tpu_custom_call.1} parent=1 // pred_region
      _
    $region5: #{tpu_custom_call.1} parent=1 // pred_fallthru
      _
    // Predicated region
    $region6: #{tpu_custom_call.1} parent=1 // pred_check
      _
    $region7: #{tpu_custom_call.1} parent=1 // pred_check_branch
      %16 = sbr.rel (0) target = $region9
    $region8: #{tpu_custom_call.1} parent=1 // pred_region
      %s18 = ssub.s32 16, 16
      %19 = vsyncadd [#allocation3], %s18
      %s21 = sshll.u32 %s1, 4
      %s22 = int_to_ptr.vmem [resolvable:$true] %s21
      %24 = dma.vmem_to_smem %s22, 16, [#allocation2], [#allocation3]
    $region9: #{tpu_custom_call.1} parent=1 // pred_fallthru
      _
    // Predicated region
    $region10: #{tpu_custom_call.1} parent=1 // pred_check
      _
    $region11: #{tpu_custom_call.1} parent=1 // pred_check_branch
      %26 = sbr.rel (0) target = $region13
    $region12: #{tpu_custom_call.1} parent=1 // pred_region
      %s28 = ssub.s32 16, 16
      %29 = vsyncadd [#allocation5], %s28
      %s31 = sshll.u32 %s2, 4
      %s32 = int_to_ptr.vmem [resolvable:$true] %s31
      %34 = dma.vmem_to_smem %s32, 16, [#allocation4], [#allocation5]
    $region13: #{tpu_custom_call.1} parent=1 // pred_fallthru
      _
    // Predicated region
    $region14: #{tpu_custom_call.1} parent=1 // pred_check
      _
    $region15: #{tpu_custom_call.1} parent=1 // pred_check_branch
      %36 = sbr.rel (0) target = $region17
    $region16: #{tpu_custom_call.1} parent=1 // pred_region
      %s38 = ssub.s32 16, 16
      %39 = vsyncadd [#allocation5], %s38
      %s41 = sshll.u32 %s3, 4
      %s42 = int_to_ptr.vmem [resolvable:$true] %s41
      %44 = dma.vmem_to_smem %s42, 16, [#allocation6], [#allocation5]
    $region17: #{tpu_custom_call.1} parent=1 // pred_fallthru
      _
    // Predicated region
    $region18: #{tpu_custom_call.1} parent=1 // pred_check
      _
    $region19: #{tpu_custom_call.1} parent=1 // pred_check_branch
      %46 = sbr.rel (0) target = $region21
    $region20: #{tpu_custom_call.1} parent=1 // pred_region
      %s48 = ssub.s32 16, 16
      %49 = vsyncadd [#allocation8], %s48
      %s51 = sshll.u32 %s4, 4
      %s52 = int_to_ptr.vmem [resolvable:$true] %s51
      %54 = dma.vmem_to_smem %s52, 16, [#allocation7], [#allocation8]
    $region21: #{tpu_custom_call.1} parent=1 // pred_fallthru
      _
    // Predicated region
    $region22: #{tpu_custom_call.1} parent=1 // pred_check
      _
    $region23: #{tpu_custom_call.1} parent=1 // pred_check_branch
      %56 = sbr.rel (0) target = $region25
    $region24: #{tpu_custom_call.1} parent=1 // pred_region
      %57 = dma.done [#allocation3], 16
    $region25: #{tpu_custom_call.1} parent=1 // pred_fallthru
      _
    // Predicated region
    $region26: #{tpu_custom_call.1} parent=1 // pred_check
      _
    $region27: #{tpu_custom_call.1} parent=1 // pred_check_branch
      %59 = sbr.rel (0) target = $region29
    $region28: #{tpu_custom_call.1} parent=1 // pred_region
      %60 = dma.done [#allocation5], 16
    $region29: #{tpu_custom_call.1} parent=1 // pred_fallthru
      _
    // Predicated region
    $region30: #{tpu_custom_call.1} parent=1 // pred_check
      _
    $region31: #{tpu_custom_call.1} parent=1 // pred_check_branch
      %62 = sbr.rel (0) target = $region33
    $region32: #{tpu_custom_call.1} parent=1 // pred_region
      %63 = dma.done [#allocation5], 16
    $region33: #{tpu_custom_call.1} parent=1 // pred_fallthru
      _
    // Predicated region
    $region34: #{tpu_custom_call.1} parent=1 // pred_check
      _
    $region35: #{tpu_custom_call.1} parent=1 // pred_check_branch
      %65 = sbr.rel (0) target = $region37
    $region36: #{tpu_custom_call.1} parent=1 // pred_region
      %66 = dma.done [#allocation8], 16
    $region37: #{tpu_custom_call.1} parent=1 // pred_fallthru
      _
    %67 = sfence
    %v68 = vld [vmem:[%s0] sm:$0xff]
    %s69 = sld [smem:[#allocation2]]
    %v70 = vstv %s69
    %v71 = vmul.f32 %v68, %v70
    %s72 = scalar_lea.vmem %s0, 16
    %v73 = vld [vmem:[%s72] sm:$0xff]
    %s74 = sld [smem:[#allocation2 + $0x4]]
    %v75 = vstv %s74
    %v76 = vmul.f32 %v73, %v75
    %s77 = sld [smem:[#allocation2 + $0x8]]
    %v78 = vstv %s77
    %v79 = vmul.f32 %v68, %v78
    %s80 = scalar_lea.vmem %s0, 32
    %v81 = vld [vmem:[%s80] sm:$0xff]
    %s82 = sld [smem:[#allocation2 + $0xc]]
    %v83 = vstv %s82
    %v84 = vmul.f32 %v81, %v83
    %s85 = scalar_lea.vmem %s0, 48
    %v86 = vld [vmem:[%s85] sm:$0xff]
    %s87 = sld [smem:[#allocation2 + $0x10]]
    %v88 = vstv %s87
    %v89 = vmul.f32 %v86, %v88
    %s90 = sld [smem:[#allocation2 + $0x14]]
    %v91 = vstv %s90
    %v92 = vmul.f32 %v81, %v91
    %v93 = vld [vmem:[%s0 + $0x1] sm:$0xff]
    %s94 = sld [smem:[#allocation2 + $0x18]]
    %v95 = vstv %s94
    %v96 = vmul.f32 %v93, %v95
    %v97 = vld [vmem:[%s72 + $0x1] sm:$0xff]
    %s98 = sld [smem:[#allocation2 + $0x1c]]
    %v99 = vstv %s98
    %v100 = vmul.f32 %v97, %v99
    %s101 = sld [smem:[#allocation2 + $0x20]]
    %v102 = vstv %s101
    %v103 = vmul.f32 %v93, %v102
    %v104 = vadd.f32 %v71, %v76
    %106 = vrot.lane.b32.xlu0 %v84, 1
    %v107 = vpop.permute.xlu0 %106
    %v109 = vadd.f32 %v79, %v107
    %111 = vrot.lane.b32.xlu0 %v92, 127
    %v112 = vpop.permute.xlu0 %111
    %v114 = vadd.f32 %v89, %v112
    %v115 = vadd.f32 %v96, %v100
    %117 = vrot.lane.b32.xlu0 %v109, 127
    %v118 = vpop.permute.xlu0 %117
    %v120 = vadd.f32 %v104, %v118
    %v121 = vadd.f32 %v114, %v115
    %v122 = vadd.f32 %v120, %v121
    %124 = vrot.lane.b32.xlu0 %v103, 127
    %v125 = vpop.permute.xlu0 %124
    %v127 = vadd.f32 %v122, %v125
    %s128 = sld [smem:[#allocation4]]
    %v129 = vstv %s128
    %v130 = vadd.f32 %v127, %v129
    %vm131 = vcmp.ge.f32.partialorder %v130, 0.0
    %v132 = vmul.f32 %v130, 0.01
    %v133 = vsel %vm131, %v130, %v132
    %s134 = scalar_lea.vmem %s0, 64
    %v135 = vld [vmem:[%s134] sm:$0xff]
    %s136 = sld [smem:[#allocation2 + $0x1]]
    %v137 = vstv %s136
    %v138 = vmul.f32 %v135, %v137
    %s139 = scalar_lea.vmem %s0, 80
    %v140 = vld [vmem:[%s139] sm:$0xff]
    %s141 = sld [smem:[#allocation2 + $0x5]]
    %v142 = vstv %s141
    %v143 = vmul.f32 %v140, %v142
    %s144 = sld [smem:[#allocation2 + $0x9]]
    %v145 = vstv %s144
    %v146 = vmul.f32 %v135, %v145
    %s147 = scalar_lea.vmem %s0, 96
    %v148 = vld [vmem:[%s147] sm:$0xff]
    %s149 = sld [smem:[#allocation2 + $0xd]]
    %v150 = vstv %s149
    %v151 = vmul.f32 %v148, %v150
    %s152 = scalar_lea.vmem %s0, 112
    %v153 = vld [vmem:[%s152] sm:$0xff]
    %s154 = sld [smem:[#allocation2 + $0x11]]
    %v155 = vstv %s154
    %v156 = vmul.f32 %v153, %v155
    %s157 = sld [smem:[#allocation2 + $0x15]]
    %v158 = vstv %s157
    %v159 = vmul.f32 %v148, %v158
    %v160 = vld [vmem:[%s134 + $0x1] sm:$0xff]
    %s161 = sld [smem:[#allocation2 + $0x19]]
    %v162 = vstv %s161
    %v163 = vmul.f32 %v160, %v162
    %v164 = vld [vmem:[%s139 + $0x1] sm:$0xff]
    %s165 = sld [smem:[#allocation2 + $0x1d]]
    %v166 = vstv %s165
    %v167 = vmul.f32 %v164, %v166
    %s168 = sld [smem:[#allocation2 + $0x21]]
    %v169 = vstv %s168
    %v170 = vmul.f32 %v160, %v169
    %v171 = vadd.f32 %v138, %v143
    %173 = vrot.lane.b32.xlu0 %v151, 1
    %v174 = vpop.permute.xlu0 %173
    %v176 = vadd.f32 %v146, %v174
    %178 = vrot.lane.b32.xlu0 %v159, 127
    %v179 = vpop.permute.xlu0 %178
    %v181 = vadd.f32 %v156, %v179
    %v182 = vadd.f32 %v163, %v167
    %184 = vrot.lane.b32.xlu0 %v176, 127
    %v185 = vpop.permute.xlu0 %184
    %v187 = vadd.f32 %v171, %v185
    %v188 = vadd.f32 %v181, %v182
    %v189 = vadd.f32 %v187, %v188
    %191 = vrot.lane.b32.xlu0 %v170, 127
    %v192 = vpop.permute.xlu0 %191
    %v194 = vadd.f32 %v189, %v192
    %s195 = sld [smem:[#allocation4 + $0x1]]
    %v196 = vstv %s195
    %v197 = vadd.f32 %v194, %v196
    %vm198 = vcmp.ge.f32.partialorder %v197, 0.0
    %v199 = vmul.f32 %v197, 0.01
    %v200 = vsel %vm198, %v197, %v199
    %s201 = scalar_lea.vmem %s0, 128
    %v202 = vld [vmem:[%s201] sm:$0xff]
    %s203 = sld [smem:[#allocation2 + $0x2]]
    %v204 = vstv %s203
    %v205 = vmul.f32 %v202, %v204
    %s206 = scalar_lea.vmem %s0, 144
    %v207 = vld [vmem:[%s206] sm:$0xff]
    %s208 = sld [smem:[#allocation2 + $0x6]]
    %v209 = vstv %s208
    %v210 = vmul.f32 %v207, %v209
    %s211 = sld [smem:[#allocation2 + $0xa]]
    %v212 = vstv %s211
    %v213 = vmul.f32 %v202, %v212
    %s214 = scalar_lea.vmem %s0, 160
    %v215 = vld [vmem:[%s214] sm:$0xff]
    %s216 = sld [smem:[#allocation2 + $0xe]]
    %v217 = vstv %s216
    %v218 = vmul.f32 %v215, %v217
    %s219 = scalar_lea.vmem %s0, 176
    %v220 = vld [vmem:[%s219] sm:$0xff]
    %s221 = sld [smem:[#allocation2 + $0x12]]
    %v222 = vstv %s221
    %v223 = vmul.f32 %v220, %v222
    %s224 = sld [smem:[#allocation2 + $0x16]]
    %v225 = vstv %s224
    %v226 = vmul.f32 %v215, %v225
    %v227 = vld [vmem:[%s201 + $0x1] sm:$0xff]
    %s228 = sld [smem:[#allocation2 + $0x1a]]
    %v229 = vstv %s228
    %v230 = vmul.f32 %v227, %v229
    %v231 = vld [vmem:[%s206 + $0x1] sm:$0xff]
    %s232 = sld [smem:[#allocation2 + $0x1e]]
    %v233 = vstv %s232
    %v234 = vmul.f32 %v231, %v233
    %s235 = sld [smem:[#allocation2 + $0x22]]
    %v236 = vstv %s235
    %v237 = vmul.f32 %v227, %v236
    %v238 = vadd.f32 %v205, %v210
    %240 = vrot.lane.b32.xlu0 %v218, 1
    %v241 = vpop.permute.xlu0 %240
    %v243 = vadd.f32 %v213, %v241
    %245 = vrot.lane.b32.xlu0 %v226, 127
    %v246 = vpop.permute.xlu0 %245
    %v248 = vadd.f32 %v223, %v246
    %v249 = vadd.f32 %v230, %v234
    %251 = vrot.lane.b32.xlu0 %v243, 127
    %v252 = vpop.permute.xlu0 %251
    %v254 = vadd.f32 %v238, %v252
    %v255 = vadd.f32 %v248, %v249
    %v256 = vadd.f32 %v254, %v255
    %258 = vrot.lane.b32.xlu0 %v237, 127
    %v259 = vpop.permute.xlu0 %258
    %v261 = vadd.f32 %v256, %v259
    %s262 = sld [smem:[#allocation4 + $0x2]]
    %v263 = vstv %s262
    %v264 = vadd.f32 %v261, %v263
    %vm265 = vcmp.ge.f32.partialorder %v264, 0.0
    %v266 = vmul.f32 %v264, 0.01
    %v267 = vsel %vm265, %v264, %v266
    %s268 = scalar_lea.vmem %s0, 192
    %v269 = vld [vmem:[%s268] sm:$0xff]
    %s270 = sld [smem:[#allocation2 + $0x3]]
    %v271 = vstv %s270
    %v272 = vmul.f32 %v269, %v271
    %s273 = scalar_lea.vmem %s0, 208
    %v274 = vld [vmem:[%s273] sm:$0xff]
    %s275 = sld [smem:[#allocation2 + $0x7]]
    %v276 = vstv %s275
    %v277 = vmul.f32 %v274, %v276
    %s278 = sld [smem:[#allocation2 + $0xb]]
    %v279 = vstv %s278
    %v280 = vmul.f32 %v269, %v279
    %s281 = scalar_lea.vmem %s0, 224
    %v282 = vld [vmem:[%s281] sm:$0xff]
    %s283 = sld [smem:[#allocation2 + $0xf]]
    %v284 = vstv %s283
    %v285 = vmul.f32 %v282, %v284
    %s286 = scalar_lea.vmem %s0, 240
    %v287 = vld [vmem:[%s286] sm:$0xff]
    %s288 = sld [smem:[#allocation2 + $0x13]]
    %v289 = vstv %s288
    %v290 = vmul.f32 %v287, %v289
    %s291 = sld [smem:[#allocation2 + $0x17]]
    %v292 = vstv %s291
    %v293 = vmul.f32 %v282, %v292
    %v294 = vld [vmem:[%s268 + $0x1] sm:$0xff]
    %s295 = sld [smem:[#allocation2 + $0x1b]]
    %v296 = vstv %s295
    %v297 = vmul.f32 %v294, %v296
    %v298 = vld [vmem:[%s273 + $0x1] sm:$0xff]
    %s299 = sld [smem:[#allocation2 + $0x1f]]
    %v300 = vstv %s299
    %v301 = vmul.f32 %v298, %v300
    %s302 = sld [smem:[#allocation2 + $0x23]]
    %v303 = vstv %s302
    %v304 = vmul.f32 %v294, %v303
    %v305 = vadd.f32 %v272, %v277
    %307 = vrot.lane.b32.xlu0 %v285, 1
    %v308 = vpop.permute.xlu0 %307
    %v310 = vadd.f32 %v280, %v308
    %312 = vrot.lane.b32.xlu0 %v293, 127
    %v313 = vpop.permute.xlu0 %312
    %v315 = vadd.f32 %v290, %v313
    %v316 = vadd.f32 %v297, %v301
    %318 = vrot.lane.b32.xlu0 %v310, 127
    %v319 = vpop.permute.xlu0 %318
    %v321 = vadd.f32 %v305, %v319
    %v322 = vadd.f32 %v315, %v316
    %v323 = vadd.f32 %v321, %v322
    %325 = vrot.lane.b32.xlu0 %v304, 127
    %v326 = vpop.permute.xlu0 %325
    %v328 = vadd.f32 %v323, %v326
    %s329 = sld [smem:[#allocation4 + $0x3]]
    %v330 = vstv %s329
    %v331 = vadd.f32 %v328, %v330
    %vm332 = vcmp.ge.f32.partialorder %v331, 0.0
    %v333 = vmul.f32 %v331, 0.01
    %v334 = vsel %vm332, %v331, %v333
    %s335 = sld [smem:[#allocation6]]
    %v336 = vstv %s335
    %v337 = vmul.f32 %v133, %v336
    %s338 = sld [smem:[#allocation6 + $0x1]]
    %v339 = vstv %s338
    %v340 = vmul.f32 %v200, %v339
    %v341 = vadd.f32 %v337, %v340
    %s342 = sld [smem:[#allocation6 + $0x2]]
    %v343 = vstv %s342
    %v344 = vmul.f32 %v267, %v343
    %v345 = vadd.f32 %v341, %v344
    %s346 = sld [smem:[#allocation6 + $0x3]]
    %v347 = vstv %s346
    %v348 = vmul.f32 %v334, %v347
    %v349 = vadd.f32 %v345, %v348
    %s350 = sld [smem:[#allocation7]]
    %v351 = vstv %s350
    %v352 = vadd.f32 %v349, %v351
    %vm353 = vcmask 64512
    %354 = vst.msk [vmem:[%s5] sm:$0xff] %vm353, %v352
    %s355 = sld [smem:[#allocation6 + $0x4]]
    %v356 = vstv %s355
    %v357 = vmul.f32 %v133, %v356
    %s358 = sld [smem:[#allocation6 + $0x5]]
    %v359 = vstv %s358
    %v360 = vmul.f32 %v200, %v359
    %v361 = vadd.f32 %v357, %v360
    %s362 = sld [smem:[#allocation6 + $0x6]]
    %v363 = vstv %s362
    %v364 = vmul.f32 %v267, %v363
    %v365 = vadd.f32 %v361, %v364
    %s366 = sld [smem:[#allocation6 + $0x7]]
    %v367 = vstv %s366
    %v368 = vmul.f32 %v334, %v367
    %v369 = vadd.f32 %v365, %v368
    %s370 = sld [smem:[#allocation7 + $0x1]]
    %v371 = vstv %s370
    %v372 = vadd.f32 %v369, %v371
    %s373 = scalar_lea.vmem %s5, 8
    %374 = vst.msk [vmem:[%s373] sm:$0xff] %vm353, %v372
    %s375 = sld [smem:[#allocation6 + $0x8]]
    %v376 = vstv %s375
    %v377 = vmul.f32 %v133, %v376
    %s378 = sld [smem:[#allocation6 + $0x9]]
    %v379 = vstv %s378
    %v380 = vmul.f32 %v200, %v379
    %v381 = vadd.f32 %v377, %v380
    %s382 = sld [smem:[#allocation6 + $0xa]]
    %v383 = vstv %s382
    %v384 = vmul.f32 %v267, %v383
    %v385 = vadd.f32 %v381, %v384
    %s386 = sld [smem:[#allocation6 + $0xb]]
    %v387 = vstv %s386
    %v388 = vmul.f32 %v334, %v387
    %v389 = vadd.f32 %v385, %v388
    %s390 = sld [smem:[#allocation7 + $0x2]]
    %v391 = vstv %s390
    %v392 = vadd.f32 %v389, %v391
    %s393 = scalar_lea.vmem %s5, 16
    %394 = vst.msk [vmem:[%s393] sm:$0xff] %vm353, %v392
    %s395 = sld [smem:[#allocation6 + $0xc]]
    %v396 = vstv %s395
    %v397 = vmul.f32 %v133, %v396
    %s398 = sld [smem:[#allocation6 + $0xd]]
    %v399 = vstv %s398
    %v400 = vmul.f32 %v200, %v399
    %v401 = vadd.f32 %v397, %v400
    %s402 = sld [smem:[#allocation6 + $0xe]]
    %v403 = vstv %s402
    %v404 = vmul.f32 %v267, %v403
    %v405 = vadd.f32 %v401, %v404
    %s406 = sld [smem:[#allocation6 + $0xf]]
    %v407 = vstv %s406
    %v408 = vmul.f32 %v334, %v407
    %v409 = vadd.f32 %v405, %v408
    %s410 = sld [smem:[#allocation7 + $0x3]]
    %v411 = vstv %s410
    %v412 = vadd.f32 %v409, %v411
    %s413 = scalar_lea.vmem %s5, 24
    %414 = vst.msk [vmem:[%s413] sm:$0xff] %vm353, %v412
    %s415 = sld [smem:[#allocation6 + $0x10]]
    %v416 = vstv %s415
    %v417 = vmul.f32 %v133, %v416
    %s418 = sld [smem:[#allocation6 + $0x11]]
    %v419 = vstv %s418
    %v420 = vmul.f32 %v200, %v419
    %v421 = vadd.f32 %v417, %v420
    %s422 = sld [smem:[#allocation6 + $0x12]]
    %v423 = vstv %s422
    %v424 = vmul.f32 %v267, %v423
    %v425 = vadd.f32 %v421, %v424
    %s426 = sld [smem:[#allocation6 + $0x13]]
    %v427 = vstv %s426
    %v428 = vmul.f32 %v334, %v427
    %v429 = vadd.f32 %v425, %v428
    %s430 = sld [smem:[#allocation7 + $0x4]]
    %v431 = vstv %s430
    %v432 = vadd.f32 %v429, %v431
    %s433 = scalar_lea.vmem %s5, 32
    %434 = vst.msk [vmem:[%s433] sm:$0xff] %vm353, %v432
    %s435 = sld [smem:[#allocation6 + $0x14]]
    %v436 = vstv %s435
    %v437 = vmul.f32 %v133, %v436
    %s438 = sld [smem:[#allocation6 + $0x15]]
    %v439 = vstv %s438
    %v440 = vmul.f32 %v200, %v439
    %v441 = vadd.f32 %v437, %v440
    %s442 = sld [smem:[#allocation6 + $0x16]]
    %v443 = vstv %s442
    %v444 = vmul.f32 %v267, %v443
    %v445 = vadd.f32 %v441, %v444
    %s446 = sld [smem:[#allocation6 + $0x17]]
    %v447 = vstv %s446
    %v448 = vmul.f32 %v334, %v447
    %v449 = vadd.f32 %v445, %v448
    %s450 = sld [smem:[#allocation7 + $0x5]]
    %v451 = vstv %s450
    %v452 = vadd.f32 %v449, %v451
    %s453 = scalar_lea.vmem %s5, 40
    %454 = vst.msk [vmem:[%s453] sm:$0xff] %vm353, %v452
    %s455 = sld [smem:[#allocation6 + $0x18]]
    %v456 = vstv %s455
    %v457 = vmul.f32 %v133, %v456
    %s458 = sld [smem:[#allocation6 + $0x19]]
    %v459 = vstv %s458
    %v460 = vmul.f32 %v200, %v459
    %v461 = vadd.f32 %v457, %v460
    %s462 = sld [smem:[#allocation6 + $0x1a]]
    %v463 = vstv %s462
    %v464 = vmul.f32 %v267, %v463
    %v465 = vadd.f32 %v461, %v464
    %s466 = sld [smem:[#allocation6 + $0x1b]]
    %v467 = vstv %s466
    %v468 = vmul.f32 %v334, %v467
    %v469 = vadd.f32 %v465, %v468
    %s470 = sld [smem:[#allocation7 + $0x6]]
    %v471 = vstv %s470
    %v472 = vadd.f32 %v469, %v471
    %s473 = scalar_lea.vmem %s5, 48
    %474 = vst.msk [vmem:[%s473] sm:$0xff] %vm353, %v472
    %s475 = sld [smem:[#allocation6 + $0x1c]]
    %v476 = vstv %s475
    %v477 = vmul.f32 %v133, %v476
    %s478 = sld [smem:[#allocation6 + $0x1d]]
    %v479 = vstv %s478
    %v480 = vmul.f32 %v200, %v479
    %v481 = vadd.f32 %v477, %v480
    %s482 = sld [smem:[#allocation6 + $0x1e]]
    %v483 = vstv %s482
    %v484 = vmul.f32 %v267, %v483
    %v485 = vadd.f32 %v481, %v484
    %s486 = sld [smem:[#allocation6 + $0x1f]]
    %v487 = vstv %s486
    %v488 = vmul.f32 %v334, %v487
    %v489 = vadd.f32 %v485, %v488
    %s490 = sld [smem:[#allocation7 + $0x7]]
    %v491 = vstv %s490
    %v492 = vadd.f32 %v489, %v491
    %s493 = scalar_lea.vmem %s5, 56
    %494 = vst.msk [vmem:[%s493] sm:$0xff] %vm353, %v492
    %s495 = sld [smem:[#allocation6 + $0x20]]
    %v496 = vstv %s495
    %v497 = vmul.f32 %v133, %v496
    %s498 = sld [smem:[#allocation6 + $0x21]]
    %v499 = vstv %s498
    %v500 = vmul.f32 %v200, %v499
    %v501 = vadd.f32 %v497, %v500
    %s502 = sld [smem:[#allocation6 + $0x22]]
    %v503 = vstv %s502
    %v504 = vmul.f32 %v267, %v503
    %v505 = vadd.f32 %v501, %v504
    %s506 = sld [smem:[#allocation6 + $0x23]]
    %v507 = vstv %s506
    %v508 = vmul.f32 %v334, %v507
    %v509 = vadd.f32 %v505, %v508
    %s510 = sld [smem:[#allocation7 + $0x8]]
    %v511 = vstv %s510
    %v512 = vadd.f32 %v509, %v511
    %s513 = scalar_lea.vmem %s5, 64
    %514 = vst.msk [vmem:[%s513] sm:$0xff] %vm353, %v512
    %s515 = sld [smem:[#allocation6 + $0x24]]
    %v516 = vstv %s515
    %v517 = vmul.f32 %v133, %v516
    %s518 = sld [smem:[#allocation6 + $0x25]]
    %v519 = vstv %s518
    %v520 = vmul.f32 %v200, %v519
    %v521 = vadd.f32 %v517, %v520
    %s522 = sld [smem:[#allocation6 + $0x26]]
    %v523 = vstv %s522
    %v524 = vmul.f32 %v267, %v523
    %v525 = vadd.f32 %v521, %v524
    %s526 = sld [smem:[#allocation6 + $0x27]]
    %v527 = vstv %s526
    %v528 = vmul.f32 %v334, %v527
    %v529 = vadd.f32 %v525, %v528
    %s530 = sld [smem:[#allocation7 + $0x9]]
    %v531 = vstv %s530
    %v532 = vadd.f32 %v529, %v531
    %s533 = scalar_lea.vmem %s5, 72
    %534 = vst.msk [vmem:[%s533] sm:$0xff] %vm353, %v532
    %s535 = sld [smem:[#allocation6 + $0x28]]
    %v536 = vstv %s535
    %v537 = vmul.f32 %v133, %v536
    %s538 = sld [smem:[#allocation6 + $0x29]]
    %v539 = vstv %s538
    %v540 = vmul.f32 %v200, %v539
    %v541 = vadd.f32 %v537, %v540
    %s542 = sld [smem:[#allocation6 + $0x2a]]
    %v543 = vstv %s542
    %v544 = vmul.f32 %v267, %v543
    %v545 = vadd.f32 %v541, %v544
    %s546 = sld [smem:[#allocation6 + $0x2b]]
    %v547 = vstv %s546
    %v548 = vmul.f32 %v334, %v547
    %v549 = vadd.f32 %v545, %v548
    %s550 = sld [smem:[#allocation7 + $0xa]]
    %v551 = vstv %s550
    %v552 = vadd.f32 %v549, %v551
    %s553 = scalar_lea.vmem %s5, 80
    %554 = vst.msk [vmem:[%s553] sm:$0xff] %vm353, %v552
    %s555 = sld [smem:[#allocation6 + $0x2c]]
    %v556 = vstv %s555
    %v557 = vmul.f32 %v133, %v556
    %s558 = sld [smem:[#allocation6 + $0x2d]]
    %v559 = vstv %s558
    %v560 = vmul.f32 %v200, %v559
    %v561 = vadd.f32 %v557, %v560
    %s562 = sld [smem:[#allocation6 + $0x2e]]
    %v563 = vstv %s562
    %v564 = vmul.f32 %v267, %v563
    %v565 = vadd.f32 %v561, %v564
    %s566 = sld [smem:[#allocation6 + $0x2f]]
    %v567 = vstv %s566
    %v568 = vmul.f32 %v334, %v567
    %v569 = vadd.f32 %v565, %v568
    %s570 = sld [smem:[#allocation7 + $0xb]]
    %v571 = vstv %s570
    %v572 = vadd.f32 %v569, %v571
    %s573 = scalar_lea.vmem %s5, 88
    %574 = vst.msk [vmem:[%s573] sm:$0xff] %vm353, %v572
    %s575 = sld [smem:[#allocation6 + $0x30]]
    %v576 = vstv %s575
    %v577 = vmul.f32 %v133, %v576
    %s578 = sld [smem:[#allocation6 + $0x31]]
    %v579 = vstv %s578
    %v580 = vmul.f32 %v200, %v579
    %v581 = vadd.f32 %v577, %v580
    %s582 = sld [smem:[#allocation6 + $0x32]]
    %v583 = vstv %s582
    %v584 = vmul.f32 %v267, %v583
    %v585 = vadd.f32 %v581, %v584
    %s586 = sld [smem:[#allocation6 + $0x33]]
    %v587 = vstv %s586
    %v588 = vmul.f32 %v334, %v587
    %v589 = vadd.f32 %v585, %v588
    %s590 = sld [smem:[#allocation7 + $0xc]]
    %v591 = vstv %s590
    %v592 = vadd.f32 %v589, %v591
    %s593 = scalar_lea.vmem %s5, 96
    %594 = vst.msk [vmem:[%s593] sm:$0xff] %vm353, %v592
    %s595 = sld [smem:[#allocation6 + $0x34]]
    %v596 = vstv %s595
    %v597 = vmul.f32 %v133, %v596
    %s598 = sld [smem:[#allocation6 + $0x35]]
    %v599 = vstv %s598
    %v600 = vmul.f32 %v200, %v599
    %v601 = vadd.f32 %v597, %v600
    %s602 = sld [smem:[#allocation6 + $0x36]]
    %v603 = vstv %s602
    %v604 = vmul.f32 %v267, %v603
    %v605 = vadd.f32 %v601, %v604
    %s606 = sld [smem:[#allocation6 + $0x37]]
    %v607 = vstv %s606
    %v608 = vmul.f32 %v334, %v607
    %v609 = vadd.f32 %v605, %v608
    %s610 = sld [smem:[#allocation7 + $0xd]]
    %v611 = vstv %s610
    %v612 = vadd.f32 %v609, %v611
    %s613 = scalar_lea.vmem %s5, 104
    %614 = vst.msk [vmem:[%s613] sm:$0xff] %vm353, %v612
    %s615 = sld [smem:[#allocation6 + $0x38]]
    %v616 = vstv %s615
    %v617 = vmul.f32 %v133, %v616
    %s618 = sld [smem:[#allocation6 + $0x39]]
    %v619 = vstv %s618
    %v620 = vmul.f32 %v200, %v619
    %v621 = vadd.f32 %v617, %v620
    %s622 = sld [smem:[#allocation6 + $0x3a]]
    %v623 = vstv %s622
    %v624 = vmul.f32 %v267, %v623
    %v625 = vadd.f32 %v621, %v624
    %s626 = sld [smem:[#allocation6 + $0x3b]]
    %v627 = vstv %s626
    %v628 = vmul.f32 %v334, %v627
    %v629 = vadd.f32 %v625, %v628
    %s630 = sld [smem:[#allocation7 + $0xe]]
    %v631 = vstv %s630
    %v632 = vadd.f32 %v629, %v631
    %s633 = scalar_lea.vmem %s5, 112
    %634 = vst.msk [vmem:[%s633] sm:$0xff] %vm353, %v632
    %s635 = sld [smem:[#allocation6 + $0x3c]]
    %v636 = vstv %s635
    %v637 = vmul.f32 %v133, %v636
    %s638 = sld [smem:[#allocation6 + $0x3d]]
    %v639 = vstv %s638
    %v640 = vmul.f32 %v200, %v639
    %v641 = vadd.f32 %v637, %v640
    %s642 = sld [smem:[#allocation6 + $0x3e]]
    %v643 = vstv %s642
    %v644 = vmul.f32 %v267, %v643
    %v645 = vadd.f32 %v641, %v644
    %s646 = sld [smem:[#allocation6 + $0x3f]]
    %v647 = vstv %s646
    %v648 = vmul.f32 %v334, %v647
    %v649 = vadd.f32 %v645, %v648
    %s650 = sld [smem:[#allocation7 + $0xf]]
    %v651 = vstv %s650
    %v652 = vadd.f32 %v649, %v651
    %s653 = scalar_lea.vmem %s5, 120
    %654 = vst.msk [vmem:[%s653] sm:$0xff] %vm353, %v652
    %s655 = sld [smem:[#allocation6 + $0x40]]
    %v656 = vstv %s655
    %v657 = vmul.f32 %v133, %v656
    %s658 = sld [smem:[#allocation6 + $0x41]]
    %v659 = vstv %s658
    %v660 = vmul.f32 %v200, %v659
    %v661 = vadd.f32 %v657, %v660
    %s662 = sld [smem:[#allocation6 + $0x42]]
    %v663 = vstv %s662
    %v664 = vmul.f32 %v267, %v663
    %v665 = vadd.f32 %v661, %v664
    %s666 = sld [smem:[#allocation6 + $0x43]]
    %v667 = vstv %s666
    %v668 = vmul.f32 %v334, %v667
    %v669 = vadd.f32 %v665, %v668
    %s670 = sld [smem:[#allocation7 + $0x10]]
    %v671 = vstv %s670
    %v672 = vadd.f32 %v669, %v671
    %s673 = scalar_lea.vmem %s5, 128
    %674 = vst.msk [vmem:[%s673] sm:$0xff] %vm353, %v672
    %s675 = sld [smem:[#allocation6 + $0x44]]
    %v676 = vstv %s675
    %v677 = vmul.f32 %v133, %v676
    %s678 = sld [smem:[#allocation6 + $0x45]]
    %v679 = vstv %s678
    %v680 = vmul.f32 %v200, %v679
    %v681 = vadd.f32 %v677, %v680
    %s682 = sld [smem:[#allocation6 + $0x46]]
    %v683 = vstv %s682
    %v684 = vmul.f32 %v267, %v683
    %v685 = vadd.f32 %v681, %v684
    %s686 = sld [smem:[#allocation6 + $0x47]]
    %v687 = vstv %s686
    %v688 = vmul.f32 %v334, %v687
    %v689 = vadd.f32 %v685, %v688
    %s690 = sld [smem:[#allocation7 + $0x11]]
    %v691 = vstv %s690
    %v692 = vadd.f32 %v689, %v691
    %s693 = scalar_lea.vmem %s5, 136
    %694 = vst.msk [vmem:[%s693] sm:$0xff] %vm353, %v692
    %s695 = sld [smem:[#allocation6 + $0x48]]
    %v696 = vstv %s695
    %v697 = vmul.f32 %v133, %v696
    %s698 = sld [smem:[#allocation6 + $0x49]]
    %v699 = vstv %s698
    %v700 = vmul.f32 %v200, %v699
    %v701 = vadd.f32 %v697, %v700
    %s702 = sld [smem:[#allocation6 + $0x4a]]
    %v703 = vstv %s702
    %v704 = vmul.f32 %v267, %v703
    %v705 = vadd.f32 %v701, %v704
    %s706 = sld [smem:[#allocation6 + $0x4b]]
    %v707 = vstv %s706
    %v708 = vmul.f32 %v334, %v707
    %v709 = vadd.f32 %v705, %v708
    %s710 = sld [smem:[#allocation7 + $0x12]]
    %v711 = vstv %s710
    %v712 = vadd.f32 %v709, %v711
    %s713 = scalar_lea.vmem %s5, 144
    %714 = vst.msk [vmem:[%s713] sm:$0xff] %vm353, %v712
    %s715 = sld [smem:[#allocation6 + $0x4c]]
    %v716 = vstv %s715
    %v717 = vmul.f32 %v133, %v716
    %s718 = sld [smem:[#allocation6 + $0x4d]]
    %v719 = vstv %s718
    %v720 = vmul.f32 %v200, %v719
    %v721 = vadd.f32 %v717, %v720
    %s722 = sld [smem:[#allocation6 + $0x4e]]
    %v723 = vstv %s722
    %v724 = vmul.f32 %v267, %v723
    %v725 = vadd.f32 %v721, %v724
    %s726 = sld [smem:[#allocation6 + $0x4f]]
    %v727 = vstv %s726
    %v728 = vmul.f32 %v334, %v727
    %v729 = vadd.f32 %v725, %v728
    %s730 = sld [smem:[#allocation7 + $0x13]]
    %v731 = vstv %s730
    %v732 = vadd.f32 %v729, %v731
    %s733 = scalar_lea.vmem %s5, 152
    %734 = vst.msk [vmem:[%s733] sm:$0xff] %vm353, %v732
    %s735 = sld [smem:[#allocation6 + $0x50]]
    %v736 = vstv %s735
    %v737 = vmul.f32 %v133, %v736
    %s738 = sld [smem:[#allocation6 + $0x51]]
    %v739 = vstv %s738
    %v740 = vmul.f32 %v200, %v739
    %v741 = vadd.f32 %v737, %v740
    %s742 = sld [smem:[#allocation6 + $0x52]]
    %v743 = vstv %s742
    %v744 = vmul.f32 %v267, %v743
    %v745 = vadd.f32 %v741, %v744
    %s746 = sld [smem:[#allocation6 + $0x53]]
    %v747 = vstv %s746
    %v748 = vmul.f32 %v334, %v747
    %v749 = vadd.f32 %v745, %v748
    %s750 = sld [smem:[#allocation7 + $0x14]]
    %v751 = vstv %s750
    %v752 = vadd.f32 %v749, %v751
    %s753 = scalar_lea.vmem %s5, 160
    %754 = vst.msk [vmem:[%s753] sm:$0xff] %vm353, %v752
    %s755 = sld [smem:[#allocation6 + $0x54]]
    %v756 = vstv %s755
    %v757 = vmul.f32 %v133, %v756
    %s758 = sld [smem:[#allocation6 + $0x55]]
    %v759 = vstv %s758
    %v760 = vmul.f32 %v200, %v759
    %v761 = vadd.f32 %v757, %v760
    %s762 = sld [smem:[#allocation6 + $0x56]]
    %v763 = vstv %s762
    %v764 = vmul.f32 %v267, %v763
    %v765 = vadd.f32 %v761, %v764
    %s766 = sld [smem:[#allocation6 + $0x57]]
    %v767 = vstv %s766
    %v768 = vmul.f32 %v334, %v767
    %v769 = vadd.f32 %v765, %v768
    %s770 = sld [smem:[#allocation7 + $0x15]]
    %v771 = vstv %s770
    %v772 = vadd.f32 %v769, %v771
    %s773 = scalar_lea.vmem %s5, 168
    %774 = vst.msk [vmem:[%s773] sm:$0xff] %vm353, %v772
    %s775 = sld [smem:[#allocation6 + $0x58]]
    %v776 = vstv %s775
    %v777 = vmul.f32 %v133, %v776
    %s778 = sld [smem:[#allocation6 + $0x59]]
    %v779 = vstv %s778
    %v780 = vmul.f32 %v200, %v779
    %v781 = vadd.f32 %v777, %v780
    %s782 = sld [smem:[#allocation6 + $0x5a]]
    %v783 = vstv %s782
    %v784 = vmul.f32 %v267, %v783
    %v785 = vadd.f32 %v781, %v784
    %s786 = sld [smem:[#allocation6 + $0x5b]]
    %v787 = vstv %s786
    %v788 = vmul.f32 %v334, %v787
    %v789 = vadd.f32 %v785, %v788
    %s790 = sld [smem:[#allocation7 + $0x16]]
    %v791 = vstv %s790
    %v792 = vadd.f32 %v789, %v791
    %s793 = scalar_lea.vmem %s5, 176
    %794 = vst.msk [vmem:[%s793] sm:$0xff] %vm353, %v792
    %s795 = sld [smem:[#allocation6 + $0x5c]]
    %v796 = vstv %s795
    %v797 = vmul.f32 %v133, %v796
    %s798 = sld [smem:[#allocation6 + $0x5d]]
    %v799 = vstv %s798
    %v800 = vmul.f32 %v200, %v799
    %v801 = vadd.f32 %v797, %v800
    %s802 = sld [smem:[#allocation6 + $0x5e]]
    %v803 = vstv %s802
    %v804 = vmul.f32 %v267, %v803
    %v805 = vadd.f32 %v801, %v804
    %s806 = sld [smem:[#allocation6 + $0x5f]]
    %v807 = vstv %s806
    %v808 = vmul.f32 %v334, %v807
    %v809 = vadd.f32 %v805, %v808
    %s810 = sld [smem:[#allocation7 + $0x17]]
    %v811 = vstv %s810
    %v812 = vadd.f32 %v809, %v811
    %s813 = scalar_lea.vmem %s5, 184
    %814 = vst.msk [vmem:[%s813] sm:$0xff] %vm353, %v812
    %s815 = sld [smem:[#allocation6 + $0x60]]
    %v816 = vstv %s815
    %v817 = vmul.f32 %v133, %v816
    %s818 = sld [smem:[#allocation6 + $0x61]]
    %v819 = vstv %s818
    %v820 = vmul.f32 %v200, %v819
    %v821 = vadd.f32 %v817, %v820
    %s822 = sld [smem:[#allocation6 + $0x62]]
    %v823 = vstv %s822
    %v824 = vmul.f32 %v267, %v823
    %v825 = vadd.f32 %v821, %v824
    %s826 = sld [smem:[#allocation6 + $0x63]]
    %v827 = vstv %s826
    %v828 = vmul.f32 %v334, %v827
    %v829 = vadd.f32 %v825, %v828
    %s830 = sld [smem:[#allocation7 + $0x18]]
    %v831 = vstv %s830
    %v832 = vadd.f32 %v829, %v831
    %s833 = scalar_lea.vmem %s5, 192
    %834 = vst.msk [vmem:[%s833] sm:$0xff] %vm353, %v832
    %s835 = sld [smem:[#allocation6 + $0x64]]
    %v836 = vstv %s835
    %v837 = vmul.f32 %v133, %v836
    %s838 = sld [smem:[#allocation6 + $0x65]]
    %v839 = vstv %s838
    %v840 = vmul.f32 %v200, %v839
    %v841 = vadd.f32 %v837, %v840
    %s842 = sld [smem:[#allocation6 + $0x66]]
    %v843 = vstv %s842
    %v844 = vmul.f32 %v267, %v843
    %v845 = vadd.f32 %v841, %v844
    %s846 = sld [smem:[#allocation6 + $0x67]]
    %v847 = vstv %s846
    %v848 = vmul.f32 %v334, %v847
    %v849 = vadd.f32 %v845, %v848
    %s850 = sld [smem:[#allocation7 + $0x19]]
    %v851 = vstv %s850
    %v852 = vadd.f32 %v849, %v851
    %s853 = scalar_lea.vmem %s5, 200
    %854 = vst.msk [vmem:[%s853] sm:$0xff] %vm353, %v852
    %s855 = sld [smem:[#allocation6 + $0x68]]
    %v856 = vstv %s855
    %v857 = vmul.f32 %v133, %v856
    %s858 = sld [smem:[#allocation6 + $0x69]]
    %v859 = vstv %s858
    %v860 = vmul.f32 %v200, %v859
    %v861 = vadd.f32 %v857, %v860
    %s862 = sld [smem:[#allocation6 + $0x6a]]
    %v863 = vstv %s862
    %v864 = vmul.f32 %v267, %v863
    %v865 = vadd.f32 %v861, %v864
    %s866 = sld [smem:[#allocation6 + $0x6b]]
    %v867 = vstv %s866
    %v868 = vmul.f32 %v334, %v867
    %v869 = vadd.f32 %v865, %v868
    %s870 = sld [smem:[#allocation7 + $0x1a]]
    %v871 = vstv %s870
    %v872 = vadd.f32 %v869, %v871
    %s873 = scalar_lea.vmem %s5, 208
    %874 = vst.msk [vmem:[%s873] sm:$0xff] %vm353, %v872
    %s875 = sld [smem:[#allocation6 + $0x6c]]
    %v876 = vstv %s875
    %v877 = vmul.f32 %v133, %v876
    %s878 = sld [smem:[#allocation6 + $0x6d]]
    %v879 = vstv %s878
    %v880 = vmul.f32 %v200, %v879
    %v881 = vadd.f32 %v877, %v880
    %s882 = sld [smem:[#allocation6 + $0x6e]]
    %v883 = vstv %s882
    %v884 = vmul.f32 %v267, %v883
    %v885 = vadd.f32 %v881, %v884
    %s886 = sld [smem:[#allocation6 + $0x6f]]
    %v887 = vstv %s886
    %v888 = vmul.f32 %v334, %v887
    %v889 = vadd.f32 %v885, %v888
    %s890 = sld [smem:[#allocation7 + $0x1b]]
    %v891 = vstv %s890
    %v892 = vadd.f32 %v889, %v891
    %s893 = scalar_lea.vmem %s5, 216
    %894 = vst.msk [vmem:[%s893] sm:$0xff] %vm353, %v892
    %s895 = sld [smem:[#allocation6 + $0x70]]
    %v896 = vstv %s895
    %v897 = vmul.f32 %v133, %v896
    %s898 = sld [smem:[#allocation6 + $0x71]]
    %v899 = vstv %s898
    %v900 = vmul.f32 %v200, %v899
    %v901 = vadd.f32 %v897, %v900
    %s902 = sld [smem:[#allocation6 + $0x72]]
    %v903 = vstv %s902
    %v904 = vmul.f32 %v267, %v903
    %v905 = vadd.f32 %v901, %v904
    %s906 = sld [smem:[#allocation6 + $0x73]]
    %v907 = vstv %s906
    %v908 = vmul.f32 %v334, %v907
    %v909 = vadd.f32 %v905, %v908
    %s910 = sld [smem:[#allocation7 + $0x1c]]
    %v911 = vstv %s910
    %v912 = vadd.f32 %v909, %v911
    %s913 = scalar_lea.vmem %s5, 224
    %914 = vst.msk [vmem:[%s913] sm:$0xff] %vm353, %v912
    %s915 = sld [smem:[#allocation6 + $0x74]]
    %v916 = vstv %s915
    %v917 = vmul.f32 %v133, %v916
    %s918 = sld [smem:[#allocation6 + $0x75]]
    %v919 = vstv %s918
    %v920 = vmul.f32 %v200, %v919
    %v921 = vadd.f32 %v917, %v920
    %s922 = sld [smem:[#allocation6 + $0x76]]
    %v923 = vstv %s922
    %v924 = vmul.f32 %v267, %v923
    %v925 = vadd.f32 %v921, %v924
    %s926 = sld [smem:[#allocation6 + $0x77]]
    %v927 = vstv %s926
    %v928 = vmul.f32 %v334, %v927
    %v929 = vadd.f32 %v925, %v928
    %s930 = sld [smem:[#allocation7 + $0x1d]]
    %v931 = vstv %s930
    %v932 = vadd.f32 %v929, %v931
    %s933 = scalar_lea.vmem %s5, 232
    %934 = vst.msk [vmem:[%s933] sm:$0xff] %vm353, %v932
    %s935 = sld [smem:[#allocation6 + $0x78]]
    %v936 = vstv %s935
    %v937 = vmul.f32 %v133, %v936
    %s938 = sld [smem:[#allocation6 + $0x79]]
    %v939 = vstv %s938
    %v940 = vmul.f32 %v200, %v939
    %v941 = vadd.f32 %v937, %v940
    %s942 = sld [smem:[#allocation6 + $0x7a]]
    %v943 = vstv %s942
    %v944 = vmul.f32 %v267, %v943
    %v945 = vadd.f32 %v941, %v944
    %s946 = sld [smem:[#allocation6 + $0x7b]]
    %v947 = vstv %s946
    %v948 = vmul.f32 %v334, %v947
    %v949 = vadd.f32 %v945, %v948
    %s950 = sld [smem:[#allocation7 + $0x1e]]
    %v951 = vstv %s950
    %v952 = vadd.f32 %v949, %v951
    %s953 = scalar_lea.vmem %s5, 240
    %954 = vst.msk [vmem:[%s953] sm:$0xff] %vm353, %v952
    %s955 = sld [smem:[#allocation6 + $0x7c]]
    %v956 = vstv %s955
    %v957 = vmul.f32 %v133, %v956
    %s958 = sld [smem:[#allocation6 + $0x7d]]
    %v959 = vstv %s958
    %v960 = vmul.f32 %v200, %v959
    %v961 = vadd.f32 %v957, %v960
    %s962 = sld [smem:[#allocation6 + $0x7e]]
    %v963 = vstv %s962
    %v964 = vmul.f32 %v267, %v963
    %v965 = vadd.f32 %v961, %v964
    %s966 = sld [smem:[#allocation6 + $0x7f]]
    %v967 = vstv %s966
    %v968 = vmul.f32 %v334, %v967
    %v969 = vadd.f32 %v965, %v968
    %s970 = sld [smem:[#allocation7 + $0x1f]]
    %v971 = vstv %s970
    %v972 = vadd.f32 %v969, %v971
    %s973 = scalar_lea.vmem %s5, 248
    %974 = vst.msk [vmem:[%s973] sm:$0xff] %vm353, %v972
    %s975 = scalar_lea.vmem %s0, 256
    %v976 = vld [vmem:[%s975] sm:$0xff]
    %s977 = sld [smem:[#allocation2]]
    %v978 = vstv %s977
    %v979 = vmul.f32 %v976, %v978
    %s980 = scalar_lea.vmem %s0, 272
    %v981 = vld [vmem:[%s980] sm:$0xff]
    %s982 = sld [smem:[#allocation2 + $0x4]]
    %v983 = vstv %s982
    %v984 = vmul.f32 %v981, %v983
    %s985 = sld [smem:[#allocation2 + $0x8]]
    %v986 = vstv %s985
    %v987 = vmul.f32 %v976, %v986
    %s988 = scalar_lea.vmem %s0, 288
    %v989 = vld [vmem:[%s988] sm:$0xff]
    %s990 = sld [smem:[#allocation2 + $0xc]]
    %v991 = vstv %s990
    %v992 = vmul.f32 %v989, %v991
    %s993 = scalar_lea.vmem %s0, 304
    %v994 = vld [vmem:[%s993] sm:$0xff]
    %s995 = sld [smem:[#allocation2 + $0x10]]
    %v996 = vstv %s995
    %v997 = vmul.f32 %v994, %v996
    %s998 = sld [smem:[#allocation2 + $0x14]]
    %v999 = vstv %s998
    %v1000 = vmul.f32 %v989, %v999
    %v1001 = vld [vmem:[%s975 + $0x1] sm:$0xff]
    %s1002 = sld [smem:[#allocation2 + $0x18]]
    %v1003 = vstv %s1002
    %v1004 = vmul.f32 %v1001, %v1003
    %v1005 = vld [vmem:[%s980 + $0x1] sm:$0xff]
    %s1006 = sld [smem:[#allocation2 + $0x1c]]
    %v1007 = vstv %s1006
    %v1008 = vmul.f32 %v1005, %v1007
    %s1009 = sld [smem:[#allocation2 + $0x20]]
    %v1010 = vstv %s1009
    %v1011 = vmul.f32 %v1001, %v1010
    %v1012 = vadd.f32 %v979, %v984
    %1014 = vrot.lane.b32.xlu0 %v992, 1
    %v1015 = vpop.permute.xlu0 %1014
    %v1017 = vadd.f32 %v987, %v1015
    %1019 = vrot.lane.b32.xlu0 %v1000, 127
    %v1020 = vpop.permute.xlu0 %1019
    %v1022 = vadd.f32 %v997, %v1020
    %v1023 = vadd.f32 %v1004, %v1008
    %1025 = vrot.lane.b32.xlu0 %v1017, 127
    %v1026 = vpop.permute.xlu0 %1025
    %v1028 = vadd.f32 %v1012, %v1026
    %v1029 = vadd.f32 %v1022, %v1023
    %v1030 = vadd.f32 %v1028, %v1029
    %1032 = vrot.lane.b32.xlu0 %v1011, 127
    %v1033 = vpop.permute.xlu0 %1032
    %v1035 = vadd.f32 %v1030, %v1033
    %s1036 = sld [smem:[#allocation4]]
    %v1037 = vstv %s1036
    %v1038 = vadd.f32 %v1035, %v1037
    %vm1039 = vcmp.ge.f32.partialorder %v1038, 0.0
    %v1040 = vmul.f32 %v1038, 0.01
    %v1041 = vsel %vm1039, %v1038, %v1040
    %s1042 = scalar_lea.vmem %s0, 320
    %v1043 = vld [vmem:[%s1042] sm:$0xff]
    %s1044 = sld [smem:[#allocation2 + $0x1]]
    %v1045 = vstv %s1044
    %v1046 = vmul.f32 %v1043, %v1045
    %s1047 = scalar_lea.vmem %s0, 336
    %v1048 = vld [vmem:[%s1047] sm:$0xff]
    %s1049 = sld [smem:[#allocation2 + $0x5]]
    %v1050 = vstv %s1049
    %v1051 = vmul.f32 %v1048, %v1050
    %s1052 = sld [smem:[#allocation2 + $0x9]]
    %v1053 = vstv %s1052
    %v1054 = vmul.f32 %v1043, %v1053
    %s1055 = scalar_lea.vmem %s0, 352
    %v1056 = vld [vmem:[%s1055] sm:$0xff]
    %s1057 = sld [smem:[#allocation2 + $0xd]]
    %v1058 = vstv %s1057
    %v1059 = vmul.f32 %v1056, %v1058
    %s1060 = scalar_lea.vmem %s0, 368
    %v1061 = vld [vmem:[%s1060] sm:$0xff]
    %s1062 = sld [smem:[#allocation2 + $0x11]]
    %v1063 = vstv %s1062
    %v1064 = vmul.f32 %v1061, %v1063
    %s1065 = sld [smem:[#allocation2 + $0x15]]
    %v1066 = vstv %s1065
    %v1067 = vmul.f32 %v1056, %v1066
    %v1068 = vld [vmem:[%s1042 + $0x1] sm:$0xff]
    %s1069 = sld [smem:[#allocation2 + $0x19]]
    %v1070 = vstv %s1069
    %v1071 = vmul.f32 %v1068, %v1070
    %v1072 = vld [vmem:[%s1047 + $0x1] sm:$0xff]
    %s1073 = sld [smem:[#allocation2 + $0x1d]]
    %v1074 = vstv %s1073
    %v1075 = vmul.f32 %v1072, %v1074
    %s1076 = sld [smem:[#allocation2 + $0x21]]
    %v1077 = vstv %s1076
    %v1078 = vmul.f32 %v1068, %v1077
    %v1079 = vadd.f32 %v1046, %v1051
    %1081 = vrot.lane.b32.xlu0 %v1059, 1
    %v1082 = vpop.permute.xlu0 %1081
    %v1084 = vadd.f32 %v1054, %v1082
    %1086 = vrot.lane.b32.xlu0 %v1067, 127
    %v1087 = vpop.permute.xlu0 %1086
    %v1089 = vadd.f32 %v1064, %v1087
    %v1090 = vadd.f32 %v1071, %v1075
    %1092 = vrot.lane.b32.xlu0 %v1084, 127
    %v1093 = vpop.permute.xlu0 %1092
    %v1095 = vadd.f32 %v1079, %v1093
    %v1096 = vadd.f32 %v1089, %v1090
    %v1097 = vadd.f32 %v1095, %v1096
    %1099 = vrot.lane.b32.xlu0 %v1078, 127
    %v1100 = vpop.permute.xlu0 %1099
    %v1102 = vadd.f32 %v1097, %v1100
    %s1103 = sld [smem:[#allocation4 + $0x1]]
    %v1104 = vstv %s1103
    %v1105 = vadd.f32 %v1102, %v1104
    %vm1106 = vcmp.ge.f32.partialorder %v1105, 0.0
    %v1107 = vmul.f32 %v1105, 0.01
    %v1108 = vsel %vm1106, %v1105, %v1107
    %s1109 = scalar_lea.vmem %s0, 384
    %v1110 = vld [vmem:[%s1109] sm:$0xff]
    %s1111 = sld [smem:[#allocation2 + $0x2]]
    %v1112 = vstv %s1111
    %v1113 = vmul.f32 %v1110, %v1112
    %s1114 = scalar_lea.vmem %s0, 400
    %v1115 = vld [vmem:[%s1114] sm:$0xff]
    %s1116 = sld [smem:[#allocation2 + $0x6]]
    %v1117 = vstv %s1116
    %v1118 = vmul.f32 %v1115, %v1117
    %s1119 = sld [smem:[#allocation2 + $0xa]]
    %v1120 = vstv %s1119
    %v1121 = vmul.f32 %v1110, %v1120
    %s1122 = scalar_lea.vmem %s0, 416
    %v1123 = vld [vmem:[%s1122] sm:$0xff]
    %s1124 = sld [smem:[#allocation2 + $0xe]]
    %v1125 = vstv %s1124
    %v1126 = vmul.f32 %v1123, %v1125
    %s1127 = scalar_lea.vmem %s0, 432
    %v1128 = vld [vmem:[%s1127] sm:$0xff]
    %s1129 = sld [smem:[#allocation2 + $0x12]]
    %v1130 = vstv %s1129
    %v1131 = vmul.f32 %v1128, %v1130
    %s1132 = sld [smem:[#allocation2 + $0x16]]
    %v1133 = vstv %s1132
    %v1134 = vmul.f32 %v1123, %v1133
    %v1135 = vld [vmem:[%s1109 + $0x1] sm:$0xff]
    %s1136 = sld [smem:[#allocation2 + $0x1a]]
    %v1137 = vstv %s1136
    %v1138 = vmul.f32 %v1135, %v1137
    %v1139 = vld [vmem:[%s1114 + $0x1] sm:$0xff]
    %s1140 = sld [smem:[#allocation2 + $0x1e]]
    %v1141 = vstv %s1140
    %v1142 = vmul.f32 %v1139, %v1141
    %s1143 = sld [smem:[#allocation2 + $0x22]]
    %v1144 = vstv %s1143
    %v1145 = vmul.f32 %v1135, %v1144
    %v1146 = vadd.f32 %v1113, %v1118
    %1148 = vrot.lane.b32.xlu0 %v1126, 1
    %v1149 = vpop.permute.xlu0 %1148
    %v1151 = vadd.f32 %v1121, %v1149
    %1153 = vrot.lane.b32.xlu0 %v1134, 127
    %v1154 = vpop.permute.xlu0 %1153
    %v1156 = vadd.f32 %v1131, %v1154
    %v1157 = vadd.f32 %v1138, %v1142
    %1159 = vrot.lane.b32.xlu0 %v1151, 127
    %v1160 = vpop.permute.xlu0 %1159
    %v1162 = vadd.f32 %v1146, %v1160
    %v1163 = vadd.f32 %v1156, %v1157
    %v1164 = vadd.f32 %v1162, %v1163
    %1166 = vrot.lane.b32.xlu0 %v1145, 127
    %v1167 = vpop.permute.xlu0 %1166
    %v1169 = vadd.f32 %v1164, %v1167
    %s1170 = sld [smem:[#allocation4 + $0x2]]
    %v1171 = vstv %s1170
    %v1172 = vadd.f32 %v1169, %v1171
    %vm1173 = vcmp.ge.f32.partialorder %v1172, 0.0
    %v1174 = vmul.f32 %v1172, 0.01
    %v1175 = vsel %vm1173, %v1172, %v1174
    %s1176 = scalar_lea.vmem %s0, 448
    %v1177 = vld [vmem:[%s1176] sm:$0xff]
    %s1178 = sld [smem:[#allocation2 + $0x3]]
    %v1179 = vstv %s1178
    %v1180 = vmul.f32 %v1177, %v1179
    %s1181 = scalar_lea.vmem %s0, 464
    %v1182 = vld [vmem:[%s1181] sm:$0xff]
    %s1183 = sld [smem:[#allocation2 + $0x7]]
    %v1184 = vstv %s1183
    %v1185 = vmul.f32 %v1182, %v1184
    %s1186 = sld [smem:[#allocation2 + $0xb]]
    %v1187 = vstv %s1186
    %v1188 = vmul.f32 %v1177, %v1187
    %s1189 = scalar_lea.vmem %s0, 480
    %v1190 = vld [vmem:[%s1189] sm:$0xff]
    %s1191 = sld [smem:[#allocation2 + $0xf]]
    %v1192 = vstv %s1191
    %v1193 = vmul.f32 %v1190, %v1192
    %s1194 = scalar_lea.vmem %s0, 496
    %v1195 = vld [vmem:[%s1194] sm:$0xff]
    %s1196 = sld [smem:[#allocation2 + $0x13]]
    %v1197 = vstv %s1196
    %v1198 = vmul.f32 %v1195, %v1197
    %s1199 = sld [smem:[#allocation2 + $0x17]]
    %v1200 = vstv %s1199
    %v1201 = vmul.f32 %v1190, %v1200
    %v1202 = vld [vmem:[%s1176 + $0x1] sm:$0xff]
    %s1203 = sld [smem:[#allocation2 + $0x1b]]
    %v1204 = vstv %s1203
    %v1205 = vmul.f32 %v1202, %v1204
    %v1206 = vld [vmem:[%s1181 + $0x1] sm:$0xff]
    %s1207 = sld [smem:[#allocation2 + $0x1f]]
    %v1208 = vstv %s1207
    %v1209 = vmul.f32 %v1206, %v1208
    %s1210 = sld [smem:[#allocation2 + $0x23]]
    %v1211 = vstv %s1210
    %v1212 = vmul.f32 %v1202, %v1211
    %v1213 = vadd.f32 %v1180, %v1185
    %1215 = vrot.lane.b32.xlu0 %v1193, 1
    %v1216 = vpop.permute.xlu0 %1215
    %v1218 = vadd.f32 %v1188, %v1216
    %1220 = vrot.lane.b32.xlu0 %v1201, 127
    %v1221 = vpop.permute.xlu0 %1220
    %v1223 = vadd.f32 %v1198, %v1221
    %v1224 = vadd.f32 %v1205, %v1209
    %1226 = vrot.lane.b32.xlu0 %v1218, 127
    %v1227 = vpop.permute.xlu0 %1226
    %v1229 = vadd.f32 %v1213, %v1227
    %v1230 = vadd.f32 %v1223, %v1224
    %v1231 = vadd.f32 %v1229, %v1230
    %1233 = vrot.lane.b32.xlu0 %v1212, 127
    %v1234 = vpop.permute.xlu0 %1233
    %v1236 = vadd.f32 %v1231, %v1234
    %s1237 = sld [smem:[#allocation4 + $0x3]]
    %v1238 = vstv %s1237
    %v1239 = vadd.f32 %v1236, %v1238
    %vm1240 = vcmp.ge.f32.partialorder %v1239, 0.0
    %v1241 = vmul.f32 %v1239, 0.01
    %v1242 = vsel %vm1240, %v1239, %v1241
    %s1243 = sld [smem:[#allocation6]]
    %v1244 = vstv %s1243
    %v1245 = vmul.f32 %v1041, %v1244
    %s1246 = sld [smem:[#allocation6 + $0x1]]
    %v1247 = vstv %s1246
    %v1248 = vmul.f32 %v1108, %v1247
    %v1249 = vadd.f32 %v1245, %v1248
    %s1250 = sld [smem:[#allocation6 + $0x2]]
    %v1251 = vstv %s1250
    %v1252 = vmul.f32 %v1175, %v1251
    %v1253 = vadd.f32 %v1249, %v1252
    %s1254 = sld [smem:[#allocation6 + $0x3]]
    %v1255 = vstv %s1254
    %v1256 = vmul.f32 %v1242, %v1255
    %v1257 = vadd.f32 %v1253, %v1256
    %s1258 = sld [smem:[#allocation7]]
    %v1259 = vstv %s1258
    %v1260 = vadd.f32 %v1257, %v1259
    %s1261 = scalar_lea.vmem %s5, 256
    %1262 = vst.msk [vmem:[%s1261] sm:$0xff] %vm353, %v1260
    %s1263 = sld [smem:[#allocation6 + $0x4]]
    %v1264 = vstv %s1263
    %v1265 = vmul.f32 %v1041, %v1264
    %s1266 = sld [smem:[#allocation6 + $0x5]]
    %v1267 = vstv %s1266
    %v1268 = vmul.f32 %v1108, %v1267
    %v1269 = vadd.f32 %v1265, %v1268
    %s1270 = sld [smem:[#allocation6 + $0x6]]
    %v1271 = vstv %s1270
    %v1272 = vmul.f32 %v1175, %v1271
    %v1273 = vadd.f32 %v1269, %v1272
    %s1274 = sld [smem:[#allocation6 + $0x7]]
    %v1275 = vstv %s1274
    %v1276 = vmul.f32 %v1242, %v1275
    %v1277 = vadd.f32 %v1273, %v1276
    %s1278 = sld [smem:[#allocation7 + $0x1]]
    %v1279 = vstv %s1278
    %v1280 = vadd.f32 %v1277, %v1279
    %s1281 = scalar_lea.vmem %s5, 264
    %1282 = vst.msk [vmem:[%s1281] sm:$0xff] %vm353, %v1280
    %s1283 = sld [smem:[#allocation6 + $0x8]]
    %v1284 = vstv %s1283
    %v1285 = vmul.f32 %v1041, %v1284
    %s1286 = sld [smem:[#allocation6 + $0x9]]
    %v1287 = vstv %s1286
    %v1288 = vmul.f32 %v1108, %v1287
    %v1289 = vadd.f32 %v1285, %v1288
    %s1290 = sld [smem:[#allocation6 + $0xa]]
    %v1291 = vstv %s1290
    %v1292 = vmul.f32 %v1175, %v1291
    %v1293 = vadd.f32 %v1289, %v1292
    %s1294 = sld [smem:[#allocation6 + $0xb]]
    %v1295 = vstv %s1294
    %v1296 = vmul.f32 %v1242, %v1295
    %v1297 = vadd.f32 %v1293, %v1296
    %s1298 = sld [smem:[#allocation7 + $0x2]]
    %v1299 = vstv %s1298
    %v1300 = vadd.f32 %v1297, %v1299
    %s1301 = scalar_lea.vmem %s5, 272
    %1302 = vst.msk [vmem:[%s1301] sm:$0xff] %vm353, %v1300
    %s1303 = sld [smem:[#allocation6 + $0xc]]
    %v1304 = vstv %s1303
    %v1305 = vmul.f32 %v1041, %v1304
    %s1306 = sld [smem:[#allocation6 + $0xd]]
    %v1307 = vstv %s1306
    %v1308 = vmul.f32 %v1108, %v1307
    %v1309 = vadd.f32 %v1305, %v1308
    %s1310 = sld [smem:[#allocation6 + $0xe]]
    %v1311 = vstv %s1310
    %v1312 = vmul.f32 %v1175, %v1311
    %v1313 = vadd.f32 %v1309, %v1312
    %s1314 = sld [smem:[#allocation6 + $0xf]]
    %v1315 = vstv %s1314
    %v1316 = vmul.f32 %v1242, %v1315
    %v1317 = vadd.f32 %v1313, %v1316
    %s1318 = sld [smem:[#allocation7 + $0x3]]
    %v1319 = vstv %s1318
    %v1320 = vadd.f32 %v1317, %v1319
    %s1321 = scalar_lea.vmem %s5, 280
    %1322 = vst.msk [vmem:[%s1321] sm:$0xff] %vm353, %v1320
    %s1323 = sld [smem:[#allocation6 + $0x10]]
    %v1324 = vstv %s1323
    %v1325 = vmul.f32 %v1041, %v1324
    %s1326 = sld [smem:[#allocation6 + $0x11]]
    %v1327 = vstv %s1326
    %v1328 = vmul.f32 %v1108, %v1327
    %v1329 = vadd.f32 %v1325, %v1328
    %s1330 = sld [smem:[#allocation6 + $0x12]]
    %v1331 = vstv %s1330
    %v1332 = vmul.f32 %v1175, %v1331
    %v1333 = vadd.f32 %v1329, %v1332
    %s1334 = sld [smem:[#allocation6 + $0x13]]
    %v1335 = vstv %s1334
    %v1336 = vmul.f32 %v1242, %v1335
    %v1337 = vadd.f32 %v1333, %v1336
    %s1338 = sld [smem:[#allocation7 + $0x4]]
    %v1339 = vstv %s1338
    %v1340 = vadd.f32 %v1337, %v1339
    %s1341 = scalar_lea.vmem %s5, 288
    %1342 = vst.msk [vmem:[%s1341] sm:$0xff] %vm353, %v1340
    %s1343 = sld [smem:[#allocation6 + $0x14]]
    %v1344 = vstv %s1343
    %v1345 = vmul.f32 %v1041, %v1344
    %s1346 = sld [smem:[#allocation6 + $0x15]]
    %v1347 = vstv %s1346
    %v1348 = vmul.f32 %v1108, %v1347
    %v1349 = vadd.f32 %v1345, %v1348
    %s1350 = sld [smem:[#allocation6 + $0x16]]
    %v1351 = vstv %s1350
    %v1352 = vmul.f32 %v1175, %v1351
    %v1353 = vadd.f32 %v1349, %v1352
    %s1354 = sld [smem:[#allocation6 + $0x17]]
    %v1355 = vstv %s1354
    %v1356 = vmul.f32 %v1242, %v1355
    %v1357 = vadd.f32 %v1353, %v1356
    %s1358 = sld [smem:[#allocation7 + $0x5]]
    %v1359 = vstv %s1358
    %v1360 = vadd.f32 %v1357, %v1359
    %s1361 = scalar_lea.vmem %s5, 296
    %1362 = vst.msk [vmem:[%s1361] sm:$0xff] %vm353, %v1360
    %s1363 = sld [smem:[#allocation6 + $0x18]]
    %v1364 = vstv %s1363
    %v1365 = vmul.f32 %v1041, %v1364
    %s1366 = sld [smem:[#allocation6 + $0x19]]
    %v1367 = vstv %s1366
    %v1368 = vmul.f32 %v1108, %v1367
    %v1369 = vadd.f32 %v1365, %v1368
    %s1370 = sld [smem:[#allocation6 + $0x1a]]
    %v1371 = vstv %s1370
    %v1372 = vmul.f32 %v1175, %v1371
    %v1373 = vadd.f32 %v1369, %v1372
    %s1374 = sld [smem:[#allocation6 + $0x1b]]
    %v1375 = vstv %s1374
    %v1376 = vmul.f32 %v1242, %v1375
    %v1377 = vadd.f32 %v1373, %v1376
    %s1378 = sld [smem:[#allocation7 + $0x6]]
    %v1379 = vstv %s1378
    %v1380 = vadd.f32 %v1377, %v1379
    %s1381 = scalar_lea.vmem %s5, 304
    %1382 = vst.msk [vmem:[%s1381] sm:$0xff] %vm353, %v1380
    %s1383 = sld [smem:[#allocation6 + $0x1c]]
    %v1384 = vstv %s1383
    %v1385 = vmul.f32 %v1041, %v1384
    %s1386 = sld [smem:[#allocation6 + $0x1d]]
    %v1387 = vstv %s1386
    %v1388 = vmul.f32 %v1108, %v1387
    %v1389 = vadd.f32 %v1385, %v1388
    %s1390 = sld [smem:[#allocation6 + $0x1e]]
    %v1391 = vstv %s1390
    %v1392 = vmul.f32 %v1175, %v1391
    %v1393 = vadd.f32 %v1389, %v1392
    %s1394 = sld [smem:[#allocation6 + $0x1f]]
    %v1395 = vstv %s1394
    %v1396 = vmul.f32 %v1242, %v1395
    %v1397 = vadd.f32 %v1393, %v1396
    %s1398 = sld [smem:[#allocation7 + $0x7]]
    %v1399 = vstv %s1398
    %v1400 = vadd.f32 %v1397, %v1399
    %s1401 = scalar_lea.vmem %s5, 312
    %1402 = vst.msk [vmem:[%s1401] sm:$0xff] %vm353, %v1400
    %s1403 = sld [smem:[#allocation6 + $0x20]]
    %v1404 = vstv %s1403
    %v1405 = vmul.f32 %v1041, %v1404
    %s1406 = sld [smem:[#allocation6 + $0x21]]
    %v1407 = vstv %s1406
    %v1408 = vmul.f32 %v1108, %v1407
    %v1409 = vadd.f32 %v1405, %v1408
    %s1410 = sld [smem:[#allocation6 + $0x22]]
    %v1411 = vstv %s1410
    %v1412 = vmul.f32 %v1175, %v1411
    %v1413 = vadd.f32 %v1409, %v1412
    %s1414 = sld [smem:[#allocation6 + $0x23]]
    %v1415 = vstv %s1414
    %v1416 = vmul.f32 %v1242, %v1415
    %v1417 = vadd.f32 %v1413, %v1416
    %s1418 = sld [smem:[#allocation7 + $0x8]]
    %v1419 = vstv %s1418
    %v1420 = vadd.f32 %v1417, %v1419
    %s1421 = scalar_lea.vmem %s5, 320
    %1422 = vst.msk [vmem:[%s1421] sm:$0xff] %vm353, %v1420
    %s1423 = sld [smem:[#allocation6 + $0x24]]
    %v1424 = vstv %s1423
    %v1425 = vmul.f32 %v1041, %v1424
    %s1426 = sld [smem:[#allocation6 + $0x25]]
    %v1427 = vstv %s1426
    %v1428 = vmul.f32 %v1108, %v1427
    %v1429 = vadd.f32 %v1425, %v1428
    %s1430 = sld [smem:[#allocation6 + $0x26]]
    %v1431 = vstv %s1430
    %v1432 = vmul.f32 %v1175, %v1431
    %v1433 = vadd.f32 %v1429, %v1432
    %s1434 = sld [smem:[#allocation6 + $0x27]]
    %v1435 = vstv %s1434
    %v1436 = vmul.f32 %v1242, %v1435
    %v1437 = vadd.f32 %v1433, %v1436
    %s1438 = sld [smem:[#allocation7 + $0x9]]
    %v1439 = vstv %s1438
    %v1440 = vadd.f32 %v1437, %v1439
    %s1441 = scalar_lea.vmem %s5, 328
    %1442 = vst.msk [vmem:[%s1441] sm:$0xff] %vm353, %v1440
    %s1443 = sld [smem:[#allocation6 + $0x28]]
    %v1444 = vstv %s1443
    %v1445 = vmul.f32 %v1041, %v1444
    %s1446 = sld [smem:[#allocation6 + $0x29]]
    %v1447 = vstv %s1446
    %v1448 = vmul.f32 %v1108, %v1447
    %v1449 = vadd.f32 %v1445, %v1448
    %s1450 = sld [smem:[#allocation6 + $0x2a]]
    %v1451 = vstv %s1450
    %v1452 = vmul.f32 %v1175, %v1451
    %v1453 = vadd.f32 %v1449, %v1452
    %s1454 = sld [smem:[#allocation6 + $0x2b]]
    %v1455 = vstv %s1454
    %v1456 = vmul.f32 %v1242, %v1455
    %v1457 = vadd.f32 %v1453, %v1456
    %s1458 = sld [smem:[#allocation7 + $0xa]]
    %v1459 = vstv %s1458
    %v1460 = vadd.f32 %v1457, %v1459
    %s1461 = scalar_lea.vmem %s5, 336
    %1462 = vst.msk [vmem:[%s1461] sm:$0xff] %vm353, %v1460
    %s1463 = sld [smem:[#allocation6 + $0x2c]]
    %v1464 = vstv %s1463
    %v1465 = vmul.f32 %v1041, %v1464
    %s1466 = sld [smem:[#allocation6 + $0x2d]]
    %v1467 = vstv %s1466
    %v1468 = vmul.f32 %v1108, %v1467
    %v1469 = vadd.f32 %v1465, %v1468
    %s1470 = sld [smem:[#allocation6 + $0x2e]]
    %v1471 = vstv %s1470
    %v1472 = vmul.f32 %v1175, %v1471
    %v1473 = vadd.f32 %v1469, %v1472
    %s1474 = sld [smem:[#allocation6 + $0x2f]]
    %v1475 = vstv %s1474
    %v1476 = vmul.f32 %v1242, %v1475
    %v1477 = vadd.f32 %v1473, %v1476
    %s1478 = sld [smem:[#allocation7 + $0xb]]
    %v1479 = vstv %s1478
    %v1480 = vadd.f32 %v1477, %v1479
    %s1481 = scalar_lea.vmem %s5, 344
    %1482 = vst.msk [vmem:[%s1481] sm:$0xff] %vm353, %v1480
    %s1483 = sld [smem:[#allocation6 + $0x30]]
    %v1484 = vstv %s1483
    %v1485 = vmul.f32 %v1041, %v1484
    %s1486 = sld [smem:[#allocation6 + $0x31]]
    %v1487 = vstv %s1486
    %v1488 = vmul.f32 %v1108, %v1487
    %v1489 = vadd.f32 %v1485, %v1488
    %s1490 = sld [smem:[#allocation6 + $0x32]]
    %v1491 = vstv %s1490
    %v1492 = vmul.f32 %v1175, %v1491
    %v1493 = vadd.f32 %v1489, %v1492
    %s1494 = sld [smem:[#allocation6 + $0x33]]
    %v1495 = vstv %s1494
    %v1496 = vmul.f32 %v1242, %v1495
    %v1497 = vadd.f32 %v1493, %v1496
    %s1498 = sld [smem:[#allocation7 + $0xc]]
    %v1499 = vstv %s1498
    %v1500 = vadd.f32 %v1497, %v1499
    %s1501 = scalar_lea.vmem %s5, 352
    %1502 = vst.msk [vmem:[%s1501] sm:$0xff] %vm353, %v1500
    %s1503 = sld [smem:[#allocation6 + $0x34]]
    %v1504 = vstv %s1503
    %v1505 = vmul.f32 %v1041, %v1504
    %s1506 = sld [smem:[#allocation6 + $0x35]]
    %v1507 = vstv %s1506
    %v1508 = vmul.f32 %v1108, %v1507
    %v1509 = vadd.f32 %v1505, %v1508
    %s1510 = sld [smem:[#allocation6 + $0x36]]
    %v1511 = vstv %s1510
    %v1512 = vmul.f32 %v1175, %v1511
    %v1513 = vadd.f32 %v1509, %v1512
    %s1514 = sld [smem:[#allocation6 + $0x37]]
    %v1515 = vstv %s1514
    %v1516 = vmul.f32 %v1242, %v1515
    %v1517 = vadd.f32 %v1513, %v1516
    %s1518 = sld [smem:[#allocation7 + $0xd]]
    %v1519 = vstv %s1518
    %v1520 = vadd.f32 %v1517, %v1519
    %s1521 = scalar_lea.vmem %s5, 360
    %1522 = vst.msk [vmem:[%s1521] sm:$0xff] %vm353, %v1520
    %s1523 = sld [smem:[#allocation6 + $0x38]]
    %v1524 = vstv %s1523
    %v1525 = vmul.f32 %v1041, %v1524
    %s1526 = sld [smem:[#allocation6 + $0x39]]
    %v1527 = vstv %s1526
    %v1528 = vmul.f32 %v1108, %v1527
    %v1529 = vadd.f32 %v1525, %v1528
    %s1530 = sld [smem:[#allocation6 + $0x3a]]
    %v1531 = vstv %s1530
    %v1532 = vmul.f32 %v1175, %v1531
    %v1533 = vadd.f32 %v1529, %v1532
    %s1534 = sld [smem:[#allocation6 + $0x3b]]
    %v1535 = vstv %s1534
    %v1536 = vmul.f32 %v1242, %v1535
    %v1537 = vadd.f32 %v1533, %v1536
    %s1538 = sld [smem:[#allocation7 + $0xe]]
    %v1539 = vstv %s1538
    %v1540 = vadd.f32 %v1537, %v1539
    %s1541 = scalar_lea.vmem %s5, 368
    %1542 = vst.msk [vmem:[%s1541] sm:$0xff] %vm353, %v1540
    %s1543 = sld [smem:[#allocation6 + $0x3c]]
    %v1544 = vstv %s1543
    %v1545 = vmul.f32 %v1041, %v1544
    %s1546 = sld [smem:[#allocation6 + $0x3d]]
    %v1547 = vstv %s1546
    %v1548 = vmul.f32 %v1108, %v1547
    %v1549 = vadd.f32 %v1545, %v1548
    %s1550 = sld [smem:[#allocation6 + $0x3e]]
    %v1551 = vstv %s1550
    %v1552 = vmul.f32 %v1175, %v1551
    %v1553 = vadd.f32 %v1549, %v1552
    %s1554 = sld [smem:[#allocation6 + $0x3f]]
    %v1555 = vstv %s1554
    %v1556 = vmul.f32 %v1242, %v1555
    %v1557 = vadd.f32 %v1553, %v1556
    %s1558 = sld [smem:[#allocation7 + $0xf]]
    %v1559 = vstv %s1558
    %v1560 = vadd.f32 %v1557, %v1559
    %s1561 = scalar_lea.vmem %s5, 376
    %1562 = vst.msk [vmem:[%s1561] sm:$0xff] %vm353, %v1560
    %s1563 = sld [smem:[#allocation6 + $0x40]]
    %v1564 = vstv %s1563
    %v1565 = vmul.f32 %v1041, %v1564
    %s1566 = sld [smem:[#allocation6 + $0x41]]
    %v1567 = vstv %s1566
    %v1568 = vmul.f32 %v1108, %v1567
    %v1569 = vadd.f32 %v1565, %v1568
    %s1570 = sld [smem:[#allocation6 + $0x42]]
    %v1571 = vstv %s1570
    %v1572 = vmul.f32 %v1175, %v1571
    %v1573 = vadd.f32 %v1569, %v1572
    %s1574 = sld [smem:[#allocation6 + $0x43]]
    %v1575 = vstv %s1574
    %v1576 = vmul.f32 %v1242, %v1575
    %v1577 = vadd.f32 %v1573, %v1576
    %s1578 = sld [smem:[#allocation7 + $0x10]]
    %v1579 = vstv %s1578
    %v1580 = vadd.f32 %v1577, %v1579
    %s1581 = scalar_lea.vmem %s5, 384
    %1582 = vst.msk [vmem:[%s1581] sm:$0xff] %vm353, %v1580
    %s1583 = sld [smem:[#allocation6 + $0x44]]
    %v1584 = vstv %s1583
    %v1585 = vmul.f32 %v1041, %v1584
    %s1586 = sld [smem:[#allocation6 + $0x45]]
    %v1587 = vstv %s1586
    %v1588 = vmul.f32 %v1108, %v1587
    %v1589 = vadd.f32 %v1585, %v1588
    %s1590 = sld [smem:[#allocation6 + $0x46]]
    %v1591 = vstv %s1590
    %v1592 = vmul.f32 %v1175, %v1591
    %v1593 = vadd.f32 %v1589, %v1592
    %s1594 = sld [smem:[#allocation6 + $0x47]]
    %v1595 = vstv %s1594
    %v1596 = vmul.f32 %v1242, %v1595
    %v1597 = vadd.f32 %v1593, %v1596
    %s1598 = sld [smem:[#allocation7 + $0x11]]
    %v1599 = vstv %s1598
    %v1600 = vadd.f32 %v1597, %v1599
    %s1601 = scalar_lea.vmem %s5, 392
    %1602 = vst.msk [vmem:[%s1601] sm:$0xff] %vm353, %v1600
    %s1603 = sld [smem:[#allocation6 + $0x48]]
    %v1604 = vstv %s1603
    %v1605 = vmul.f32 %v1041, %v1604
    %s1606 = sld [smem:[#allocation6 + $0x49]]
    %v1607 = vstv %s1606
    %v1608 = vmul.f32 %v1108, %v1607
    %v1609 = vadd.f32 %v1605, %v1608
    %s1610 = sld [smem:[#allocation6 + $0x4a]]
    %v1611 = vstv %s1610
    %v1612 = vmul.f32 %v1175, %v1611
    %v1613 = vadd.f32 %v1609, %v1612
    %s1614 = sld [smem:[#allocation6 + $0x4b]]
    %v1615 = vstv %s1614
    %v1616 = vmul.f32 %v1242, %v1615
    %v1617 = vadd.f32 %v1613, %v1616
    %s1618 = sld [smem:[#allocation7 + $0x12]]
    %v1619 = vstv %s1618
    %v1620 = vadd.f32 %v1617, %v1619
    %s1621 = scalar_lea.vmem %s5, 400
    %1622 = vst.msk [vmem:[%s1621] sm:$0xff] %vm353, %v1620
    %s1623 = sld [smem:[#allocation6 + $0x4c]]
    %v1624 = vstv %s1623
    %v1625 = vmul.f32 %v1041, %v1624
    %s1626 = sld [smem:[#allocation6 + $0x4d]]
    %v1627 = vstv %s1626
    %v1628 = vmul.f32 %v1108, %v1627
    %v1629 = vadd.f32 %v1625, %v1628
    %s1630 = sld [smem:[#allocation6 + $0x4e]]
    %v1631 = vstv %s1630
    %v1632 = vmul.f32 %v1175, %v1631
    %v1633 = vadd.f32 %v1629, %v1632
    %s1634 = sld [smem:[#allocation6 + $0x4f]]
    %v1635 = vstv %s1634
    %v1636 = vmul.f32 %v1242, %v1635
    %v1637 = vadd.f32 %v1633, %v1636
    %s1638 = sld [smem:[#allocation7 + $0x13]]
    %v1639 = vstv %s1638
    %v1640 = vadd.f32 %v1637, %v1639
    %s1641 = scalar_lea.vmem %s5, 408
    %1642 = vst.msk [vmem:[%s1641] sm:$0xff] %vm353, %v1640
    %s1643 = sld [smem:[#allocation6 + $0x50]]
    %v1644 = vstv %s1643
    %v1645 = vmul.f32 %v1041, %v1644
    %s1646 = sld [smem:[#allocation6 + $0x51]]
    %v1647 = vstv %s1646
    %v1648 = vmul.f32 %v1108, %v1647
    %v1649 = vadd.f32 %v1645, %v1648
    %s1650 = sld [smem:[#allocation6 + $0x52]]
    %v1651 = vstv %s1650
    %v1652 = vmul.f32 %v1175, %v1651
    %v1653 = vadd.f32 %v1649, %v1652
    %s1654 = sld [smem:[#allocation6 + $0x53]]
    %v1655 = vstv %s1654
    %v1656 = vmul.f32 %v1242, %v1655
    %v1657 = vadd.f32 %v1653, %v1656
    %s1658 = sld [smem:[#allocation7 + $0x14]]
    %v1659 = vstv %s1658
    %v1660 = vadd.f32 %v1657, %v1659
    %s1661 = scalar_lea.vmem %s5, 416
    %1662 = vst.msk [vmem:[%s1661] sm:$0xff] %vm353, %v1660
    %s1663 = sld [smem:[#allocation6 + $0x54]]
    %v1664 = vstv %s1663
    %v1665 = vmul.f32 %v1041, %v1664
    %s1666 = sld [smem:[#allocation6 + $0x55]]
    %v1667 = vstv %s1666
    %v1668 = vmul.f32 %v1108, %v1667
    %v1669 = vadd.f32 %v1665, %v1668
    %s1670 = sld [smem:[#allocation6 + $0x56]]
    %v1671 = vstv %s1670
    %v1672 = vmul.f32 %v1175, %v1671
    %v1673 = vadd.f32 %v1669, %v1672
    %s1674 = sld [smem:[#allocation6 + $0x57]]
    %v1675 = vstv %s1674
    %v1676 = vmul.f32 %v1242, %v1675
    %v1677 = vadd.f32 %v1673, %v1676
    %s1678 = sld [smem:[#allocation7 + $0x15]]
    %v1679 = vstv %s1678
    %v1680 = vadd.f32 %v1677, %v1679
    %s1681 = scalar_lea.vmem %s5, 424
    %1682 = vst.msk [vmem:[%s1681] sm:$0xff] %vm353, %v1680
    %s1683 = sld [smem:[#allocation6 + $0x58]]
    %v1684 = vstv %s1683
    %v1685 = vmul.f32 %v1041, %v1684
    %s1686 = sld [smem:[#allocation6 + $0x59]]
    %v1687 = vstv %s1686
    %v1688 = vmul.f32 %v1108, %v1687
    %v1689 = vadd.f32 %v1685, %v1688
    %s1690 = sld [smem:[#allocation6 + $0x5a]]
    %v1691 = vstv %s1690
    %v1692 = vmul.f32 %v1175, %v1691
    %v1693 = vadd.f32 %v1689, %v1692
    %s1694 = sld [smem:[#allocation6 + $0x5b]]
    %v1695 = vstv %s1694
    %v1696 = vmul.f32 %v1242, %v1695
    %v1697 = vadd.f32 %v1693, %v1696
    %s1698 = sld [smem:[#allocation7 + $0x16]]
    %v1699 = vstv %s1698
    %v1700 = vadd.f32 %v1697, %v1699
    %s1701 = scalar_lea.vmem %s5, 432
    %1702 = vst.msk [vmem:[%s1701] sm:$0xff] %vm353, %v1700
    %s1703 = sld [smem:[#allocation6 + $0x5c]]
    %v1704 = vstv %s1703
    %v1705 = vmul.f32 %v1041, %v1704
    %s1706 = sld [smem:[#allocation6 + $0x5d]]
    %v1707 = vstv %s1706
    %v1708 = vmul.f32 %v1108, %v1707
    %v1709 = vadd.f32 %v1705, %v1708
    %s1710 = sld [smem:[#allocation6 + $0x5e]]
    %v1711 = vstv %s1710
    %v1712 = vmul.f32 %v1175, %v1711
    %v1713 = vadd.f32 %v1709, %v1712
    %s1714 = sld [smem:[#allocation6 + $0x5f]]
    %v1715 = vstv %s1714
    %v1716 = vmul.f32 %v1242, %v1715
    %v1717 = vadd.f32 %v1713, %v1716
    %s1718 = sld [smem:[#allocation7 + $0x17]]
    %v1719 = vstv %s1718
    %v1720 = vadd.f32 %v1717, %v1719
    %s1721 = scalar_lea.vmem %s5, 440
    %1722 = vst.msk [vmem:[%s1721] sm:$0xff] %vm353, %v1720
    %s1723 = sld [smem:[#allocation6 + $0x60]]
    %v1724 = vstv %s1723
    %v1725 = vmul.f32 %v1041, %v1724
    %s1726 = sld [smem:[#allocation6 + $0x61]]
    %v1727 = vstv %s1726
    %v1728 = vmul.f32 %v1108, %v1727
    %v1729 = vadd.f32 %v1725, %v1728
    %s1730 = sld [smem:[#allocation6 + $0x62]]
    %v1731 = vstv %s1730
    %v1732 = vmul.f32 %v1175, %v1731
    %v1733 = vadd.f32 %v1729, %v1732
    %s1734 = sld [smem:[#allocation6 + $0x63]]
    %v1735 = vstv %s1734
    %v1736 = vmul.f32 %v1242, %v1735
    %v1737 = vadd.f32 %v1733, %v1736
    %s1738 = sld [smem:[#allocation7 + $0x18]]
    %v1739 = vstv %s1738
    %v1740 = vadd.f32 %v1737, %v1739
    %s1741 = scalar_lea.vmem %s5, 448
    %1742 = vst.msk [vmem:[%s1741] sm:$0xff] %vm353, %v1740
    %s1743 = sld [smem:[#allocation6 + $0x64]]
    %v1744 = vstv %s1743
    %v1745 = vmul.f32 %v1041, %v1744
    %s1746 = sld [smem:[#allocation6 + $0x65]]
    %v1747 = vstv %s1746
    %v1748 = vmul.f32 %v1108, %v1747
    %v1749 = vadd.f32 %v1745, %v1748
    %s1750 = sld [smem:[#allocation6 + $0x66]]
    %v1751 = vstv %s1750
    %v1752 = vmul.f32 %v1175, %v1751
    %v1753 = vadd.f32 %v1749, %v1752
    %s1754 = sld [smem:[#allocation6 + $0x67]]
    %v1755 = vstv %s1754
    %v1756 = vmul.f32 %v1242, %v1755
    %v1757 = vadd.f32 %v1753, %v1756
    %s1758 = sld [smem:[#allocation7 + $0x19]]
    %v1759 = vstv %s1758
    %v1760 = vadd.f32 %v1757, %v1759
    %s1761 = scalar_lea.vmem %s5, 456
    %1762 = vst.msk [vmem:[%s1761] sm:$0xff] %vm353, %v1760
    %s1763 = sld [smem:[#allocation6 + $0x68]]
    %v1764 = vstv %s1763
    %v1765 = vmul.f32 %v1041, %v1764
    %s1766 = sld [smem:[#allocation6 + $0x69]]
    %v1767 = vstv %s1766
    %v1768 = vmul.f32 %v1108, %v1767
    %v1769 = vadd.f32 %v1765, %v1768
    %s1770 = sld [smem:[#allocation6 + $0x6a]]
    %v1771 = vstv %s1770
    %v1772 = vmul.f32 %v1175, %v1771
    %v1773 = vadd.f32 %v1769, %v1772
    %s1774 = sld [smem:[#allocation6 + $0x6b]]
    %v1775 = vstv %s1774
    %v1776 = vmul.f32 %v1242, %v1775
    %v1777 = vadd.f32 %v1773, %v1776
    %s1778 = sld [smem:[#allocation7 + $0x1a]]
    %v1779 = vstv %s1778
    %v1780 = vadd.f32 %v1777, %v1779
    %s1781 = scalar_lea.vmem %s5, 464
    %1782 = vst.msk [vmem:[%s1781] sm:$0xff] %vm353, %v1780
    %s1783 = sld [smem:[#allocation6 + $0x6c]]
    %v1784 = vstv %s1783
    %v1785 = vmul.f32 %v1041, %v1784
    %s1786 = sld [smem:[#allocation6 + $0x6d]]
    %v1787 = vstv %s1786
    %v1788 = vmul.f32 %v1108, %v1787
    %v1789 = vadd.f32 %v1785, %v1788
    %s1790 = sld [smem:[#allocation6 + $0x6e]]
    %v1791 = vstv %s1790
    %v1792 = vmul.f32 %v1175, %v1791
    %v1793 = vadd.f32 %v1789, %v1792
    %s1794 = sld [smem:[#allocation6 + $0x6f]]
    %v1795 = vstv %s1794
    %v1796 = vmul.f32 %v1242, %v1795
    %v1797 = vadd.f32 %v1793, %v1796
    %s1798 = sld [smem:[#allocation7 + $0x1b]]
    %v1799 = vstv %s1798
    %v1800 = vadd.f32 %v1797, %v1799
    %s1801 = scalar_lea.vmem %s5, 472
    %1802 = vst.msk [vmem:[%s1801] sm:$0xff] %vm353, %v1800
    %s1803 = sld [smem:[#allocation6 + $0x70]]
    %v1804 = vstv %s1803
    %v1805 = vmul.f32 %v1041, %v1804
    %s1806 = sld [smem:[#allocation6 + $0x71]]
    %v1807 = vstv %s1806
    %v1808 = vmul.f32 %v1108, %v1807
    %v1809 = vadd.f32 %v1805, %v1808
    %s1810 = sld [smem:[#allocation6 + $0x72]]
    %v1811 = vstv %s1810
    %v1812 = vmul.f32 %v1175, %v1811
    %v1813 = vadd.f32 %v1809, %v1812
    %s1814 = sld [smem:[#allocation6 + $0x73]]
    %v1815 = vstv %s1814
    %v1816 = vmul.f32 %v1242, %v1815
    %v1817 = vadd.f32 %v1813, %v1816
    %s1818 = sld [smem:[#allocation7 + $0x1c]]
    %v1819 = vstv %s1818
    %v1820 = vadd.f32 %v1817, %v1819
    %s1821 = scalar_lea.vmem %s5, 480
    %1822 = vst.msk [vmem:[%s1821] sm:$0xff] %vm353, %v1820
    %s1823 = sld [smem:[#allocation6 + $0x74]]
    %v1824 = vstv %s1823
    %v1825 = vmul.f32 %v1041, %v1824
    %s1826 = sld [smem:[#allocation6 + $0x75]]
    %v1827 = vstv %s1826
    %v1828 = vmul.f32 %v1108, %v1827
    %v1829 = vadd.f32 %v1825, %v1828
    %s1830 = sld [smem:[#allocation6 + $0x76]]
    %v1831 = vstv %s1830
    %v1832 = vmul.f32 %v1175, %v1831
    %v1833 = vadd.f32 %v1829, %v1832
    %s1834 = sld [smem:[#allocation6 + $0x77]]
    %v1835 = vstv %s1834
    %v1836 = vmul.f32 %v1242, %v1835
    %v1837 = vadd.f32 %v1833, %v1836
    %s1838 = sld [smem:[#allocation7 + $0x1d]]
    %v1839 = vstv %s1838
    %v1840 = vadd.f32 %v1837, %v1839
    %s1841 = scalar_lea.vmem %s5, 488
    %1842 = vst.msk [vmem:[%s1841] sm:$0xff] %vm353, %v1840
    %s1843 = sld [smem:[#allocation6 + $0x78]]
    %v1844 = vstv %s1843
    %v1845 = vmul.f32 %v1041, %v1844
    %s1846 = sld [smem:[#allocation6 + $0x79]]
    %v1847 = vstv %s1846
    %v1848 = vmul.f32 %v1108, %v1847
    %v1849 = vadd.f32 %v1845, %v1848
    %s1850 = sld [smem:[#allocation6 + $0x7a]]
    %v1851 = vstv %s1850
    %v1852 = vmul.f32 %v1175, %v1851
    %v1853 = vadd.f32 %v1849, %v1852
    %s1854 = sld [smem:[#allocation6 + $0x7b]]
    %v1855 = vstv %s1854
    %v1856 = vmul.f32 %v1242, %v1855
    %v1857 = vadd.f32 %v1853, %v1856
    %s1858 = sld [smem:[#allocation7 + $0x1e]]
    %v1859 = vstv %s1858
    %v1860 = vadd.f32 %v1857, %v1859
    %s1861 = scalar_lea.vmem %s5, 496
    %1862 = vst.msk [vmem:[%s1861] sm:$0xff] %vm353, %v1860
    %s1863 = sld [smem:[#allocation6 + $0x7c]]
    %v1864 = vstv %s1863
    %v1865 = vmul.f32 %v1041, %v1864
    %s1866 = sld [smem:[#allocation6 + $0x7d]]
    %v1867 = vstv %s1866
    %v1868 = vmul.f32 %v1108, %v1867
    %v1869 = vadd.f32 %v1865, %v1868
    %s1870 = sld [smem:[#allocation6 + $0x7e]]
    %v1871 = vstv %s1870
    %v1872 = vmul.f32 %v1175, %v1871
    %v1873 = vadd.f32 %v1869, %v1872
    %s1874 = sld [smem:[#allocation6 + $0x7f]]
    %v1875 = vstv %s1874
    %v1876 = vmul.f32 %v1242, %v1875
    %v1877 = vadd.f32 %v1873, %v1876
    %s1878 = sld [smem:[#allocation7 + $0x1f]]
    %v1879 = vstv %s1878
    %v1880 = vadd.f32 %v1877, %v1879
    %s1881 = scalar_lea.vmem %s5, 504
    %1882 = vst.msk [vmem:[%s1881] sm:$0xff] %vm353, %v1880
    // Predicated region
    $region38: #{tpu_custom_call.1} parent=1 // pred_check
      _
    $region39: #{tpu_custom_call.1} parent=1 // pred_check_branch
      %1884 = sbr.rel (0) target = $region41
    $region40: #{tpu_custom_call.1} parent=1 // pred_region
      _
    $region41: #{tpu_custom_call.1} parent=1 // pred_fallthru
      _
    // Predicated region
    $region42: #{tpu_custom_call.1} parent=1 // pred_check
      _
    $region43: #{tpu_custom_call.1} parent=1 // pred_check_branch
      %1886 = sbr.rel (0) target = $region45
    $region44: #{tpu_custom_call.1} parent=1 // pred_region
      _
    $region45: #{tpu_custom_call.1} parent=1 // pred_fallthru
      _
    %1887 = vsyncpa [#allocation3], 1
    %1888 = vsyncpa [#allocation5], 1
    %1889 = vsyncpa [#allocation8], 1

</llo_original>
